<compile_context>
chip_gen: v7x
topology: tpu7x:2x2x1
jax: 0.10.0
libtpu: 0.0.40
codegen_flags: <defaults>
</compile_context>

<pallas_src>
import functools
import math

import jax
import jax.numpy as jnp
from jax.experimental import pallas as pl
from jax.experimental.pallas import tpu as pltpu


# --- global knobs -----------------------------------------------------------
# bf16 MXU operands on all generations (v5e/v6e/v7x MXUs are bf16-native);
# accumulation stays f32.  LN / softmax math is kept in f32 (v5e has no bf16
# VPU/EUP).
MXU_DTYPE = jnp.bfloat16
# dtype for intermediate activations that only feed another matmul (halves
# their HBM round-trip traffic).  Residual stream / final logits stay f32.
ACT_DTYPE = jnp.bfloat16
# Set False for exact 1/l softmax normalization (strict parity tests).
APPROX_RECIPROCAL = True


def _vmem_budget():
    """Generation-aware scoped-VMEM budget: half of physical per-TC VMEM,
    capped at 64 MiB (v5e/v6e 128 MiB -> 64 MiB, v7x 64 MiB -> 32 MiB)."""
    try:
        cap = pltpu.get_tpu_info().vmem_capacity_bytes
    except Exception:  # conservative fallback
        cap = 64 * 1024 * 1024
    return max(16 * 1024 * 1024, min(cap // 2, 64 * 1024 * 1024))


VMEM_LIMIT = _vmem_budget()
# Spend big-VMEM generations (v5e/v6e) on a deeper K stream per block.
DEFAULT_TK = 1024 if VMEM_LIMIT >= 48 * 1024 * 1024 else 512
# bf16 packs 16 rows per sublane pair -> keep M tiles 16-aligned.
TM_ALIGN = 16 if MXU_DTYPE == jnp.bfloat16 else 8


def _pick_tile(dim, want, align):
    """Largest divisor of `dim` that is <= `want` and a multiple of `align`;
    falls back to the full dim (always a legal BlockSpec block)."""
    if dim <= want:
        return dim
    t = (min(want, dim) // align) * align
    while t >= align:
        if dim % t == 0:
            return t
        t -= align
    return dim


# ---------------------------------------------------------------------------
# Tiled matmul kernel with optional fused LayerNorm / bias / ReLU / residual
# ---------------------------------------------------------------------------
def _linear_kernel(*refs, nk, activation, fuse_ln, has_residual, eps,
                   mxu_dtype):
    i = 0
    x_ref = refs[i]; i += 1
    w_ref = refs[i]; i += 1
    b_ref = refs[i]; i += 1
    if fuse_ln:
        g_ref = refs[i]; i += 1
        bt_ref = refs[i]; i += 1
    if has_residual:
        r_ref = refs[i]; i += 1
    o_ref = refs[i]; i += 1
    acc_ref = refs[i]

    k = pl.program_id(2)

    @pl.when(k == 0)
    def _init():
        acc_ref[...] = jnp.zeros_like(acc_ref)

    if fuse_ln:
        # LayerNorm over the (fully resident) feature axis, in f32, fused
        # right before the MXU.  NOTE: recomputed per N-tile; caching it in
        # scratch across j would break under megacore sharding of the
        # parallel j axis and N/tn is tiny here, so the recompute is accepted.
        x = x_ref[...].astype(jnp.float32)
        mu = jnp.mean(x, axis=-1, keepdims=True)
        var = jnp.mean(jnp.square(x - mu), axis=-1, keepdims=True)
        x = (x - mu) * jax.lax.rsqrt(var + eps)
        x = (x * g_ref[...] + bt_ref[...]).astype(mxu_dtype)
    else:
        x = x_ref[...].astype(mxu_dtype)

    acc_ref[...] += jnp.dot(x, w_ref[...].astype(mxu_dtype),
                            preferred_element_type=jnp.float32)

    @pl.when(k == nk - 1)
    def _finalize():
        # Bias / activation / residual only in the epilogue (keeps the inner
        # K loop pure MXU + accumulate).
        out = acc_ref[...] + b_ref[...]
        if activation == "relu":
            out = jnp.maximum(out, 0.0)
        if has_residual:
            out = out + r_ref[...].astype(jnp.float32)
        o_ref[...] = out.astype(o_ref.dtype)


def pallas_linear(x, w, b=None, *, gamma=None, beta=None, residual=None,
                  activation=None, out_dtype=jnp.float32,
                  tm=256, tn=256, tk=None):
    """out = act(LN(x) @ w + b) [+ residual]; LN optional (gamma/beta).
    Weights may be bf16 (cast to MXU_DTYPE in-kernel); accumulation is f32."""
    if tk is None:
        tk = DEFAULT_TK
    M, K = x.shape
    _, N = w.shape
    fuse_ln = gamma is not None
    has_res = residual is not None
    if b is None:
        b = jnp.zeros((N,), jnp.float32)
    if fuse_ln:
        tk = K                      # LN needs the whole feature axis per tile
    tm = _pick_tile(M, tm, TM_ALIGN)
    tn = _pick_tile(N, tn, 128)
    tk = _pick_tile(K, tk, 128)
    nk = K // tk
    # TODO(synk): at inference shapes (M // tm == 1) only the N/K axes have
    # >1 block, so one v7x TensorCore can idle; batching independent linears
    # (or fusing the whole decoder block) would restore 2-TC utilization.
    grid = (M // tm, N // tn, nk)

    in_specs = [
        pl.BlockSpec((tm, tk), lambda i, j, k: (i, k)),
        pl.BlockSpec((tk, tn), lambda i, j, k: (k, j)),
        pl.BlockSpec((1, tn), lambda i, j, k: (0, j)),
    ]
    args = [x, w, b.reshape(1, N)]
    if fuse_ln:
        in_specs += [pl.BlockSpec((1, tk), lambda i, j, k: (0, 0)),
                     pl.BlockSpec((1, tk), lambda i, j, k: (0, 0))]
        args += [gamma.reshape(1, K), beta.reshape(1, K)]
    if has_res:
        in_specs.append(pl.BlockSpec((tm, tn), lambda i, j, k: (i, j)))
        args.append(residual)

    kernel = functools.partial(
        _linear_kernel, nk=nk, activation=activation, fuse_ln=fuse_ln,
        has_residual=has_res, eps=1e-5, mxu_dtype=MXU_DTYPE)

    return pl.pallas_call(
        kernel,
        out_shape=jax.ShapeDtypeStruct((M, N), out_dtype),
        grid=grid,
        in_specs=in_specs,
        out_specs=pl.BlockSpec((tm, tn), lambda i, j, k: (i, j)),
        scratch_shapes=[pltpu.VMEM((tm, tn), jnp.float32)],
        compiler_params=pltpu.CompilerParams(
            dimension_semantics=("parallel", "parallel", "arbitrary"),
            vmem_limit_bytes=VMEM_LIMIT),
    )(*args)


# ---------------------------------------------------------------------------
# Flash-style attention (online softmax, in-kernel causal mask + block skip,
# key padding as scalar-prefetched per-batch lengths, packed q/k/v inputs)
# ---------------------------------------------------------------------------
def _flash_attn_kernel(*refs, causal, has_len, nkv, tq, tkv):
    i = 0
    len_ref = None
    if has_len:
        len_ref = refs[i]; i += 1       # SMEM [B] int32 (scalar prefetch)
    q_ref = refs[i]; i += 1
    k_ref = refs[i]; i += 1
    v_ref = refs[i]; i += 1
    o_ref = refs[i]; i += 1
    m_scr = refs[i]; i += 1
    l_scr = refs[i]; i += 1
    acc_scr = refs[i]

    b = pl.program_id(0)
    qi = pl.program_id(1)
    ki = pl.program_id(2)

    @pl.when(ki == 0)
    def _init():
        m_scr[...] = jnp.full_like(m_scr, -jnp.inf)
        l_scr[...] = jnp.zeros_like(l_scr)
        acc_scr[...] = jnp.zeros_like(acc_scr)

    def _step():
        q = q_ref[0].astype(jnp.float32)      # pre-scaled by 1/sqrt(D)
        k = k_ref[0].astype(jnp.float32)
        v = v_ref[0]
        # Contract last dims directly (no in-kernel transpose of K).
        s = jax.lax.dot_general(q, k, (((1,), (1,)), ((), ())),
                                preferred_element_type=jnp.float32)

        # -1e30 (not -inf) so fully-masked tiles never produce NaN; a fully
        # key-padded query degenerates to a uniform average (documented gap
        # vs. PyTorch's NaN for all-masked rows).
        neg = jnp.float32(-1e30)
        if causal or has_len:
            col = jax.lax.broadcasted_iota(jnp.int32, (tq, tkv), 1) + ki * tkv
        if causal:
            row = jax.lax.broadcasted_iota(jnp.int32, (tq, tkv), 0) + qi * tq
            s = jnp.where(row >= col, s, neg)
        if has_len:
            s = jnp.where(col < len_ref[b], s, neg)

        m_prev = m_scr[...]
        m_new = jnp.maximum(m_prev, jnp.max(s, axis=-1, keepdims=True))
        alpha = jnp.exp(m_prev - m_new)
        p = jnp.exp(s - m_new)
        l_scr[...] = alpha * l_scr[...] + jnp.sum(p, axis=-1, keepdims=True)
        acc_scr[...] = alpha * acc_scr[...] + jnp.dot(
            p.astype(v.dtype), v, preferred_element_type=jnp.float32)
        m_scr[...] = m_new

    if causal:
        # Skip kv tiles strictly above the causal diagonal: no MXU / softmax
        # work for blocks that would be fully masked anyway.
        pl.when(ki * tkv <= qi * tq + (tq - 1))(_step)
    else:
        _step()

    @pl.when(ki == nkv - 1)
    def _finalize():
        if APPROX_RECIPROCAL:
            inv_l = pl.reciprocal(l_scr[...], approx=True)   # EUP slot
        else:
            inv_l = 1.0 / l_scr[...]
        o_ref[0] = (acc_scr[...] * inv_l).astype(o_ref.dtype)


def flash_attention(q_arr, kv_arr, *, head_dim, q_block, k_block, v_block,
                    lens=None, causal, out_dtype=jnp.float32,
                    tq=128, tkv=128):
    """q_arr: [B, T, nq*D] packed projections, q in column-block `q_block`.
    kv_arr: [B, S, nkv*D] packed projections, k/v in blocks k_block/v_block.
    lens: optional [B] int32 valid-key counts (contiguous prefix padding).
    q is expected pre-scaled by 1/sqrt(D) (folded into the projection)."""
    B, T, _ = q_arr.shape
    S = kv_arr.shape[1]
    D = head_dim
    tq = _pick_tile(T, tq, 8)
    tkv = _pick_tile(S, tkv, 128)
    nkv = S // tkv
    grid = (B, T // tq, nkv)
    has_len = lens is not None

    # Reading q/k/v straight out of the packed buffers (column-block index
    # maps) avoids XLA slice copies between the projection and this kernel.
    in_specs = [
        pl.BlockSpec((1, tq, D), lambda b, qi, ki, *_: (b, qi, q_block)),
        pl.BlockSpec((1, tkv, D), lambda b, qi, ki, *_: (b, ki, k_block)),
        pl.BlockSpec((1, tkv, D), lambda b, qi, ki, *_: (b, ki, v_block)),
    ]
    out_spec = pl.BlockSpec((1, tq, D), lambda b, qi, ki, *_: (b, qi, 0))

    kernel = functools.partial(
        _flash_attn_kernel, causal=causal, has_len=has_len,
        nkv=nkv, tq=tq, tkv=tkv)

    grid_spec = pltpu.PrefetchScalarGridSpec(
        num_scalar_prefetch=1 if has_len else 0,
        grid=grid,
        in_specs=in_specs,
        out_specs=out_spec,
        scratch_shapes=[pltpu.VMEM((tq, 1), jnp.float32),
                        pltpu.VMEM((tq, 1), jnp.float32),
                        pltpu.VMEM((tq, D), jnp.float32)])

    args = ([lens] if has_len else []) + [q_arr, kv_arr, kv_arr]
    return pl.pallas_call(
        kernel,
        out_shape=jax.ShapeDtypeStruct((B, T, D), out_dtype),
        grid_spec=grid_spec,
        compiler_params=pltpu.CompilerParams(
            dimension_semantics=("parallel", "parallel", "arbitrary"),
            vmem_limit_bytes=VMEM_LIMIT),
    )(*args)


# ---------------------------------------------------------------------------
# Parameters
# ---------------------------------------------------------------------------
def init_params(key, C, P, D, V, F):
    ks = jax.random.split(key, 12)

    def w(k, shape, scale=0.02):
        return (scale * jax.random.normal(k, shape)).astype(jnp.float32)

    z = lambda n: jnp.zeros((n,), jnp.float32)
    o = lambda n: jnp.ones((n,), jnp.float32)
    return dict(
        # encoder: patch-embedding conv (kernel=stride=P)
        w_patch=w(ks[0], (C * P * P, D)), b_patch=z(D),
        # decoder: token embedding
        embed=w(ks[1], (V, D)),
        # fused self-attention projections q|k|v and output
        w_qkv=w(ks[2], (D, 3 * D)), wo=w(ks[3], (D, D)),
        # cross-attention: q, fused k|v, output
        cq=w(ks[4], (D, D)), w_ckv=w(ks[5], (D, 2 * D)), co=w(ks[6], (D, D)),
        # FFN
        w1=w(ks[7], (D, F)), b1=z(F),
        w2=w(ks[8], (F, D)), b2=z(D),
        # decoder.encoder_dim final Linear
        w_out=w(ks[9], (D, V)), b_out=z(V),
        # layernorms
        ln1_g=o(D), ln1_b=z(D),
        ln2_g=o(D), ln2_b=z(D),
        ln3_g=o(D), ln3_b=z(D),
    )


def prepare_params(params, D):
    """One-time parameter transformation (NOT part of the per-step forward):
    fold the 1/sqrt(D) attention scale into the q projections (so the flash
    inner loop never scales the score matrix) and store all matmul weights
    as bf16 in HBM.  Biases, LN params and the embedding table stay f32."""
    p = dict(params)
    scale = 1.0 / math.sqrt(D)
    w_qkv = p["w_qkv"]
    p["w_qkv"] = jnp.concatenate([w_qkv[:, :D] * scale, w_qkv[:, D:]], axis=1)
    p["cq"] = p["cq"] * scale
    for name in ("w_patch", "w_qkv", "wo", "cq", "w_ckv", "co",
                 "w1", "w2", "w_out"):
        p[name] = p[name].astype(MXU_DTYPE)
    return p


# ---------------------------------------------------------------------------
# Forward pass == Image2SMILES.forward(image, text_in, xmask)
# ---------------------------------------------------------------------------
def image2smiles_forward(params, image, text_in, xmask, *, patch=4):
    B, C, H, W = image.shape
    P = patch
    Hp, Wp = H // P, W // P
    S = Hp * Wp
    D = params["wo"].shape[0]

    # ---- encoder(image): patch-embedding conv + ReLU -----------------------
    # TODO(synk): fuse the im2col patchify into the patch matmul (grid over
    # (B,Hp,Wp) windows / NHWC pre-permute) to avoid the XLA transpose copy
    # and the sub-128-lane K = C*P*P input tile.
    patches = (image.reshape(B, C, Hp, P, Wp, P)
                    .transpose(0, 2, 4, 1, 3, 5)
                    .reshape(B * S, C * P * P))
    img = pallas_linear(patches, params["w_patch"], params["b_patch"],
                        activation="relu", out_dtype=ACT_DTYPE)   # [B*S, D]

    # ---- decoder(text_in, image_feature, x_mask=xmask) ---------------------
    T = text_in.shape[1]
    x = jnp.take(params["embed"], text_in, axis=0)                # [B, T, D]
    x2d = x.reshape(B * T, D)                     # f32 residual stream

    # Key padding as per-batch valid-length scalars (SMEM scalar prefetch).
    # NOTE: assumes xmask marks a contiguous valid prefix (standard padding).
    lens = jnp.sum(xmask.astype(jnp.int32), axis=1)               # [B]

    # -- masked self-attention: fused LN1+QKV (q pre-scaled), flash, O + res -
    qkv = pallas_linear(x2d, params["w_qkv"],
                        gamma=params["ln1_g"], beta=params["ln1_b"],
                        out_dtype=ACT_DTYPE)                      # [B*T, 3D]
    qkv3 = qkv.reshape(B, T, 3 * D)       # free reshape, no XLA slice copies
    attn = flash_attention(qkv3, qkv3, head_dim=D,
                           q_block=0, k_block=1, v_block=2,
                           lens=lens, causal=True, out_dtype=ACT_DTYPE)
    x2d = pallas_linear(attn.reshape(B * T, D), params["wo"], residual=x2d)

    # -- cross-attention over image features: fused LN2+Q, fused K|V ---------
    q = pallas_linear(x2d, params["cq"],
                      gamma=params["ln2_g"], beta=params["ln2_b"],
                      out_dtype=ACT_DTYPE)                        # [B*T, D]
    kv = pallas_linear(img, params["w_ckv"], out_dtype=ACT_DTYPE) # [B*S, 2D]
    attn = flash_attention(q.reshape(B, T, D), kv.reshape(B, S, 2 * D),
                           head_dim=D, q_block=0, k_block=0, v_block=1,
                           causal=False, out_dtype=ACT_DTYPE)
    x2d = pallas_linear(attn.reshape(B * T, D), params["co"], residual=x2d)

    # -- feed-forward: fused LN3 + W1 + ReLU, residual fused into W2 ---------
    h = pallas_linear(x2d, params["w1"], params["b1"],
                      gamma=params["ln3_g"], beta=params["ln3_b"],
                      activation="relu", out_dtype=ACT_DTYPE)
    x2d = pallas_linear(h, params["w2"], params["b2"], residual=x2d)

    # -- decoder.encoder_dim(...) final projection ---------------------------
    out = pallas_linear(x2d, params["w_out"], params["b_out"])
    # TODO(synk): at these small inference shapes the whole decoder block
    # (activation working set < 1 MiB) could be fused into one pallas_call
    # with x resident in VMEM; kept per-op here so the same kernels scale to
    # training-size batches.
    return out.reshape(B, T, -1)


# ---------------------------------------------------------------------------
if __name__ == "__main__":
    # Small but lane-dense shapes: feature dims are multiples of 128.
    B, C, H, W = 2, 4, 16, 16            # image (NCHW)
    T, V, D, F, P = 8, 128, 128, 256, 4  # seq, vocab, model dim, ffn dim, patch

    key = jax.random.PRNGKey(0)
    k_par, k_img, k_txt = jax.random.split(key, 3)
    params = prepare_params(init_params(k_par, C, P, D, V, F), D)

    image = jax.random.normal(k_img, (B, C, H, W), jnp.float32)
    text_in = jax.random.randint(k_txt, (B, T), 0, V, dtype=jnp.int32)
    xmask = jnp.ones((B, T), jnp.bool_)   # all tokens valid (padding mask)

    fwd = jax.jit(functools.partial(image2smiles_forward, params, patch=P))
    out = fwd(image, text_in, xmask)
    jax.block_until_ready(out)
    assert out.shape == (B, T, V) and out.dtype == jnp.float32
    assert bool(jnp.all(jnp.isfinite(out)))
    print("KERNEL_OK")
</pallas_src>

<mosaic_0001>
module attributes {stable_mosaic.version = 11 : i64} {
  func.func @_linear_kernel(%arg0: i32, %arg1: i32, %arg2: i32, %arg3: memref<16x128xf32, #tpu.memory_space<vmem>>, %arg4: memref<128x128xbf16, #tpu.memory_space<vmem>>, %arg5: memref<1x128xf32, #tpu.memory_space<vmem>>, %arg6: memref<1x128xf32, #tpu.memory_space<vmem>>, %arg7: memref<1x128xf32, #tpu.memory_space<vmem>>, %arg8: memref<16x128xbf16, #tpu.memory_space<vmem>>, %arg9: memref<16x128xf32, #tpu.memory_space<vmem>>) attributes {dimension_semantics = [#tpu.dimension_semantics<parallel>, #tpu.dimension_semantics<parallel>, #tpu.dimension_semantics<arbitrary>], iteration_bounds = array<i64: 1, 3, 1>, scalar_prefetch = 0 : i64, scratch_operands = 1 : i64, tpu.core_type = #tpu.core_type<tc>, window_params = [{transform_indices = @transform_0, window_bounds = array<i64: 16, 128>}, {transform_indices = @transform_1, window_bounds = array<i64: 128, 128>}, {transform_indices = @transform_2, window_bounds = array<i64: 1, 128>}, {pipeline_mode = #tpu.pipeline_mode<synchronous>, transform_indices = @transform_3, window_bounds = array<i64: 1, 128>}, {pipeline_mode = #tpu.pipeline_mode<synchronous>, transform_indices = @transform_4, window_bounds = array<i64: 1, 128>}, {transform_indices = @transform_5, window_bounds = array<i64: 16, 128>}]} {
    %c0_i32 = arith.constant 0 : i32
    %0 = arith.cmpi eq, %arg2, %c0_i32 : i32
    %1 = arith.extui %0 : i1 to i32
    %c0_i32_0 = arith.constant 0 : i32
    %2 = arith.cmpi ne, %1, %c0_i32_0 : i32
    scf.if %2 {
      %cst_19 = arith.constant 0.000000e+00 : f32
      %37 = vector.broadcast %cst_19 : f32 to vector<16x128xf32>
      %c0_20 = arith.constant 0 : index
      %c0_21 = arith.constant 0 : index
      %38 = vector.load %arg9[%c0_20, %c0_21] : memref<16x128xf32, #tpu.memory_space<vmem>>, vector<16x128xf32>
      tpu.vector_store %arg9[%c0_20, %c0_21], %37 {strides = array<i32>} : memref<16x128xf32, #tpu.memory_space<vmem>>, vector<16x128xf32>,
    } else {
    }
    %c0 = arith.constant 0 : index
    %c0_1 = arith.constant 0 : index
    %3 = vector.load %arg3[%c0, %c0_1] : memref<16x128xf32, #tpu.memory_space<vmem>>, vector<16x128xf32>
    %cst = arith.constant dense<0.000000e+00> : vector<16xf32>
    %4 = vector.multi_reduction <add>, %3, %cst [1] : vector<16x128xf32> to vector<16xf32>
    %5 = vector.shape_cast %4 : vector<16xf32> to vector<16x1xf32>
    %cst_2 = arith.constant 1.280000e+02 : f32
    %6 = vector.broadcast %cst_2 : f32 to vector<16x1xf32>
    %7 = arith.divf %5, %6 : vector<16x1xf32>
    %8 = vector.broadcast %7 : vector<16x1xf32> to vector<16x128xf32>
    %9 = arith.subf %3, %8 : vector<16x128xf32>
    %10 = arith.mulf %9, %9 : vector<16x128xf32>
    %cst_3 = arith.constant dense<0.000000e+00> : vector<16xf32>
    %11 = vector.multi_reduction <add>, %10, %cst_3 [1] : vector<16x128xf32> to vector<16xf32>
    %12 = vector.shape_cast %11 : vector<16xf32> to vector<16x1xf32>
    %cst_4 = arith.constant 1.280000e+02 : f32
    %13 = vector.broadcast %cst_4 : f32 to vector<16x1xf32>
    %14 = arith.divf %12, %13 : vector<16x1xf32>
    %15 = vector.broadcast %7 : vector<16x1xf32> to vector<16x128xf32>
    %16 = arith.subf %3, %15 : vector<16x128xf32>
    %cst_5 = arith.constant 9.99999974E-6 : f32
    %17 = vector.broadcast %cst_5 : f32 to vector<16x1xf32>
    %18 = arith.addf %14, %17 : vector<16x1xf32>
    %19 = math.rsqrt %18 : vector<16x1xf32>
    %20 = vector.broadcast %19 : vector<16x1xf32> to vector<16x128xf32>
    %21 = arith.mulf %16, %20 : vector<16x128xf32>
    %c0_6 = arith.constant 0 : index
    %c0_7 = arith.constant 0 : index
    %22 = vector.load %arg6[%c0_6, %c0_7] : memref<1x128xf32, #tpu.memory_space<vmem>>, vector<1x128xf32>
    %23 = vector.broadcast %22 : vector<1x128xf32> to vector<16x128xf32>
    %24 = arith.mulf %21, %23 : vector<16x128xf32>
    %c0_8 = arith.constant 0 : index
    %c0_9 = arith.constant 0 : index
    %25 = vector.load %arg7[%c0_8, %c0_9] : memref<1x128xf32, #tpu.memory_space<vmem>>, vector<1x128xf32>
    %26 = vector.broadcast %25 : vector<1x128xf32> to vector<16x128xf32>
    %27 = arith.addf %24, %26 : vector<16x128xf32>
    %28 = arith.truncf %27 : vector<16x128xf32> to vector<16x128xbf16>
    %c0_10 = arith.constant 0 : index
    %c0_11 = arith.constant 0 : index
    %29 = vector.load %arg9[%c0_10, %c0_11] : memref<16x128xf32, #tpu.memory_space<vmem>>, vector<16x128xf32>
    %c0_12 = arith.constant 0 : index
    %c0_13 = arith.constant 0 : index
    %30 = vector.load %arg4[%c0_12, %c0_13] : memref<128x128xbf16, #tpu.memory_space<vmem>>, vector<128x128xbf16>
    %cst_14 = arith.constant dense<0.000000e+00> : vector<16x128xf32>
    %31 = tpu.matmul %28, %30, %cst_14 {dimension_numbers = #tpu.dot_dimension_numbers<[1], [0], [0], [1], [0, 0, 1, 1], [], []>} : vector<16x128xbf16>, vector<128x128xbf16>, vector<16x128xf32> -> vector<16x128xf32>
    %32 = arith.addf %29, %31 : vector<16x128xf32>
    %c0_15 = arith.constant 0 : index
    %c0_16 = arith.constant 0 : index
    %33 = vector.load %arg9[%c0_15, %c0_16] : memref<16x128xf32, #tpu.memory_space<vmem>>, vector<16x128xf32>
    tpu.vector_store %arg9[%c0_15, %c0_16], %32 {strides = array<i32>} : memref<16x128xf32, #tpu.memory_space<vmem>>, vector<16x128xf32>,
    %c0_i32_17 = arith.constant 0 : i32
    %34 = arith.cmpi eq, %arg2, %c0_i32_17 : i32
    %35 = arith.extui %34 : i1 to i32
    %c0_i32_18 = arith.constant 0 : i32
    %36 = arith.cmpi ne, %35, %c0_i32_18 : i32
    scf.if %36 {
      %c0_19 = arith.constant 0 : index
      %c0_20 = arith.constant 0 : index
      %37 = vector.load %arg9[%c0_19, %c0_20] : memref<16x128xf32, #tpu.memory_space<vmem>>, vector<16x128xf32>
      %c0_21 = arith.constant 0 : index
      %c0_22 = arith.constant 0 : index
      %38 = vector.load %arg5[%c0_21, %c0_22] : memref<1x128xf32, #tpu.memory_space<vmem>>, vector<1x128xf32>
      %39 = vector.broadcast %38 : vector<1x128xf32> to vector<16x128xf32>
      %40 = arith.addf %37, %39 : vector<16x128xf32>
      %41 = arith.truncf %40 : vector<16x128xf32> to vector<16x128xbf16>
      %c0_23 = arith.constant 0 : index
      %c0_24 = arith.constant 0 : index
      %42 = vector.load %arg8[%c0_23, %c0_24] : memref<16x128xbf16, #tpu.memory_space<vmem>>, vector<16x128xbf16>
      tpu.vector_store %arg8[%c0_23, %c0_24], %41 {strides = array<i32>} : memref<16x128xbf16, #tpu.memory_space<vmem>>, vector<16x128xbf16>,
    } else {
    }
    return
  }
  func.func @transform_0(%arg0: i32, %arg1: i32, %arg2: i32) -> (i32, i32) {
    %c0_i32 = arith.constant 0 : i32
    return %arg0, %arg2 : i32, i32
  }
  func.func @transform_1(%arg0: i32, %arg1: i32, %arg2: i32) -> (i32, i32) {
    %c0_i32 = arith.constant 0 : i32
    return %arg2, %arg1 : i32, i32
  }
  func.func @transform_2(%arg0: i32, %arg1: i32, %arg2: i32) -> (i32, i32) {
    %c0_i32 = arith.constant 0 : i32
    %c0_i32_0 = arith.constant 0 : i32
    return %c0_i32, %arg1 : i32, i32
  }
  func.func @transform_3(%arg0: i32, %arg1: i32, %arg2: i32) -> (i32, i32) {
    %c0_i32 = arith.constant 0 : i32
    %c0_i32_0 = arith.constant 0 : i32
    %c0_i32_1 = arith.constant 0 : i32
    return %c0_i32, %c0_i32_0 : i32, i32
  }
  func.func @transform_4(%arg0: i32, %arg1: i32, %arg2: i32) -> (i32, i32) {
    %c0_i32 = arith.constant 0 : i32
    %c0_i32_0 = arith.constant 0 : i32
    %c0_i32_1 = arith.constant 0 : i32
    return %c0_i32, %c0_i32_0 : i32, i32
  }
  func.func @transform_5(%arg0: i32, %arg1: i32, %arg2: i32) -> (i32, i32) {
    %c0_i32 = arith.constant 0 : i32
    return %arg0, %arg1 : i32, i32
  }
}

module attributes {stable_mosaic.version = 11 : i64} {
  func.func @_flash_attn_kernel(%arg0: i32, %arg1: i32, %arg2: i32, %arg3: memref<2xi32, #tpu.memory_space<smem>>, %arg4: memref<1x8x128xbf16, #tpu.memory_space<vmem>>, %arg5: memref<1x8x128xbf16, #tpu.memory_space<vmem>>, %arg6: memref<1x8x128xbf16, #tpu.memory_space<vmem>>, %arg7: memref<1x8x128xbf16, #tpu.memory_space<vmem>>, %arg8: memref<8x1xf32, #tpu.memory_space<vmem>>, %arg9: memref<8x1xf32, #tpu.memory_space<vmem>>, %arg10: memref<8x128xf32, #tpu.memory_space<vmem>>) attributes {dimension_semantics = [#tpu.dimension_semantics<parallel>, #tpu.dimension_semantics<parallel>, #tpu.dimension_semantics<arbitrary>], iteration_bounds = array<i64: 2, 1, 1>, scalar_prefetch = 1 : i64, scratch_operands = 3 : i64, tpu.core_type = #tpu.core_type<tc>, window_params = [{transform_indices = @transform_0, window_bounds = array<i64: 1, 8, 128>}, {transform_indices = @transform_1, window_bounds = array<i64: 1, 8, 128>}, {transform_indices = @transform_2, window_bounds = array<i64: 1, 8, 128>}, {transform_indices = @transform_3, window_bounds = array<i64: 1, 8, 128>}]} {
    %c0_i32 = arith.constant 0 : i32
    %0 = arith.cmpi eq, %arg2, %c0_i32 : i32
    %1 = arith.extui %0 : i1 to i32
    %c0_i32_0 = arith.constant 0 : i32
    %2 = arith.cmpi ne, %1, %c0_i32_0 : i32
    scf.if %2 {
      %cst = arith.constant 0xFF800000 : f32
      %12 = vector.broadcast %cst : f32 to vector<8x1xf32>
      %c0 = arith.constant 0 : index
      %c0_5 = arith.constant 0 : index
      %13 = vector.load %arg8[%c0, %c0_5] : memref<8x1xf32, #tpu.memory_space<vmem>>, vector<8x1xf32>
      tpu.vector_store %arg8[%c0, %c0_5], %12 {strides = array<i32>} : memref<8x1xf32, #tpu.memory_space<vmem>>, vector<8x1xf32>,
      %cst_6 = arith.constant 0.000000e+00 : f32
      %14 = vector.broadcast %cst_6 : f32 to vector<8x1xf32>
      %c0_7 = arith.constant 0 : index
      %c0_8 = arith.constant 0 : index
      %15 = vector.load %arg9[%c0_7, %c0_8] : memref<8x1xf32, #tpu.memory_space<vmem>>, vector<8x1xf32>
      tpu.vector_store %arg9[%c0_7, %c0_8], %14 {strides = array<i32>} : memref<8x1xf32, #tpu.memory_space<vmem>>, vector<8x1xf32>,
      %cst_9 = arith.constant 0.000000e+00 : f32
      %16 = vector.broadcast %cst_9 : f32 to vector<8x128xf32>
      %c0_10 = arith.constant 0 : index
      %c0_11 = arith.constant 0 : index
      %17 = vector.load %arg10[%c0_10, %c0_11] : memref<8x128xf32, #tpu.memory_space<vmem>>, vector<8x128xf32>
      tpu.vector_store %arg10[%c0_10, %c0_11], %16 {strides = array<i32>} : memref<8x128xf32, #tpu.memory_space<vmem>>, vector<8x128xf32>,
    } else {
    }
    %c8_i32 = arith.constant 8 : i32
    %3 = arith.muli %arg2, %c8_i32 : i32
    %c8_i32_1 = arith.constant 8 : i32
    %4 = arith.muli %arg1, %c8_i32_1 : i32
    %c7_i32 = arith.constant 7 : i32
    %5 = arith.addi %4, %c7_i32 : i32
    %6 = arith.cmpi sle, %3, %5 : i32
    %7 = arith.extui %6 : i1 to i32
    %c0_i32_2 = arith.constant 0 : i32
    %8 = arith.cmpi ne, %7, %c0_i32_2 : i32
    scf.if %8 {
      %c0 = arith.constant 0 : index
      %c0_5 = arith.constant 0 : index
      %c0_6 = arith.constant 0 : index
      %12 = vector.load %arg4[%c0, %c0_5, %c0_6] : memref<1x8x128xbf16, #tpu.memory_space<vmem>>, vector<1x8x128xbf16>
      %13 = vector.shape_cast %12 : vector<1x8x128xbf16> to vector<8x128xbf16>
      %14 = arith.extf %13 : vector<8x128xbf16> to vector<8x128xf32>
      %c0_7 = arith.constant 0 : index
      %c0_8 = arith.constant 0 : index
      %c0_9 = arith.constant 0 : index
      %15 = vector.load %arg5[%c0_7, %c0_8, %c0_9] : memref<1x8x128xbf16, #tpu.memory_space<vmem>>, vector<1x8x128xbf16>
      %16 = vector.shape_cast %15 : vector<1x8x128xbf16> to vector<8x128xbf16>
      %17 = arith.extf %16 : vector<8x128xbf16> to vector<8x128xf32>
      %c0_10 = arith.constant 0 : index
      %c0_11 = arith.constant 0 : index
      %c0_12 = arith.constant 0 : index
      %18 = vector.load %arg6[%c0_10, %c0_11, %c0_12] : memref<1x8x128xbf16, #tpu.memory_space<vmem>>, vector<1x8x128xbf16>
      %19 = vector.shape_cast %18 : vector<1x8x128xbf16> to vector<8x128xbf16>
      %cst = arith.constant dense<0.000000e+00> : vector<8x8xf32>
      %20 = tpu.matmul %14, %17, %cst {dimension_numbers = #tpu.dot_dimension_numbers<[1], [1], [0], [0], [0, 0, 1, 0], [], []>} : vector<8x128xf32>, vector<8x128xf32>, vector<8x8xf32> -> vector<8x8xf32>
      %21 = tpu.iota {dimensions = array<i32: 1>} : vector<8x8xi32>
      %c8_i32_13 = arith.constant 8 : i32
      %22 = arith.muli %arg2, %c8_i32_13 : i32
      %23 = vector.broadcast %22 : i32 to vector<8x8xi32>
      %24 = arith.addi %21, %23 : vector<8x8xi32>
      %25 = tpu.iota {dimensions = array<i32: 0>} : vector<8x8xi32>
      %c8_i32_14 = arith.constant 8 : i32
      %26 = arith.muli %arg1, %c8_i32_14 : i32
      %27 = vector.broadcast %26 : i32 to vector<8x8xi32>
      %28 = arith.addi %25, %27 : vector<8x8xi32>
      %29 = arith.cmpi sge, %28, %24 : vector<8x8xi32>
      %cst_15 = arith.constant -1.000000e+30 : f32
      %30 = vector.broadcast %cst_15 : f32 to vector<8x8xf32>
      %31 = arith.select %29, %20, %30 : vector<8x8xi1>, vector<8x8xf32>
      %32 = arith.index_cast %arg0 : i32 to index
      %33 = memref.load %arg3[%32] : memref<2xi32, #tpu.memory_space<smem>>
      %34 = vector.broadcast %33 : i32 to vector<8x8xi32>
      %35 = arith.cmpi slt, %24, %34 : vector<8x8xi32>
      %cst_16 = arith.constant -1.000000e+30 : f32
      %36 = vector.broadcast %cst_16 : f32 to vector<8x8xf32>
      %37 = arith.select %35, %31, %36 : vector<8x8xi1>, vector<8x8xf32>
      %c0_17 = arith.constant 0 : index
      %c0_18 = arith.constant 0 : index
      %38 = vector.load %arg8[%c0_17, %c0_18] : memref<8x1xf32, #tpu.memory_space<vmem>>, vector<8x1xf32>
      %cst_19 = arith.constant dense<0xFF800000> : vector<8xf32>
      %39 = vector.multi_reduction <maximumf>, %37, %cst_19 [1] : vector<8x8xf32> to vector<8xf32>
      %40 = vector.shape_cast %39 : vector<8xf32> to vector<8x1xf32>
      %41 = arith.maximumf %38, %40 : vector<8x1xf32>
      %42 = arith.subf %38, %41 : vector<8x1xf32>
      %43 = math.exp %42 : vector<8x1xf32>
      %44 = vector.broadcast %41 : vector<8x1xf32> to vector<8x8xf32>
      %45 = arith.subf %37, %44 : vector<8x8xf32>
      %46 = math.exp %45 : vector<8x8xf32>
      %c0_20 = arith.constant 0 : index
      %c0_21 = arith.constant 0 : index
      %47 = vector.load %arg9[%c0_20, %c0_21] : memref<8x1xf32, #tpu.memory_space<vmem>>, vector<8x1xf32>
      %48 = arith.mulf %43, %47 : vector<8x1xf32>
      %cst_22 = arith.constant dense<0.000000e+00> : vector<8xf32>
      %49 = vector.multi_reduction <add>, %46, %cst_22 [1] : vector<8x8xf32> to vector<8xf32>
      %50 = vector.shape_cast %49 : vector<8xf32> to vector<8x1xf32>
      %51 = arith.addf %48, %50 : vector<8x1xf32>
      %c0_23 = arith.constant 0 : index
      %c0_24 = arith.constant 0 : index
      %52 = vector.load %arg9[%c0_23, %c0_24] : memref<8x1xf32, #tpu.memory_space<vmem>>, vector<8x1xf32>
      tpu.vector_store %arg9[%c0_23, %c0_24], %51 {strides = array<i32>} : memref<8x1xf32, #tpu.memory_space<vmem>>, vector<8x1xf32>,
      %c0_25 = arith.constant 0 : index
      %c0_26 = arith.constant 0 : index
      %53 = vector.load %arg10[%c0_25, %c0_26] : memref<8x128xf32, #tpu.memory_space<vmem>>, vector<8x128xf32>
      %54 = vector.broadcast %43 : vector<8x1xf32> to vector<8x128xf32>
      %55 = arith.mulf %54, %53 : vector<8x128xf32>
      %56 = arith.truncf %46 : vector<8x8xf32> to vector<8x8xbf16>
      %cst_27 = arith.constant dense<0.000000e+00> : vector<8x128xf32>
      %57 = tpu.matmul %56, %19, %cst_27 {dimension_numbers = #tpu.dot_dimension_numbers<[1], [0], [0], [1], [0, 0, 1, 1], [], []>} : vector<8x8xbf16>, vector<8x128xbf16>, vector<8x128xf32> -> vector<8x128xf32>
      %58 = arith.addf %55, %57 : vector<8x128xf32>
      %c0_28 = arith.constant 0 : index
      %c0_29 = arith.constant 0 : index
      %59 = vector.load %arg10[%c0_28, %c0_29] : memref<8x128xf32, #tpu.memory_space<vmem>>, vector<8x128xf32>
      tpu.vector_store %arg10[%c0_28, %c0_29], %58 {strides = array<i32>} : memref<8x128xf32, #tpu.memory_space<vmem>>, vector<8x128xf32>,
      %c0_30 = arith.constant 0 : index
      %c0_31 = arith.constant 0 : index
      %60 = vector.load %arg8[%c0_30, %c0_31] : memref<8x1xf32, #tpu.memory_space<vmem>>, vector<8x1xf32>
      tpu.vector_store %arg8[%c0_30, %c0_31], %41 {strides = array<i32>} : memref<8x1xf32, #tpu.memory_space<vmem>>, vector<8x1xf32>,
    } else {
    }
    %c0_i32_3 = arith.constant 0 : i32
    %9 = arith.cmpi eq, %arg2, %c0_i32_3 : i32
    %10 = arith.extui %9 : i1 to i32
    %c0_i32_4 = arith.constant 0 : i32
    %11 = arith.cmpi ne, %10, %c0_i32_4 : i32
    scf.if %11 {
      %c0 = arith.constant 0 : index
      %c0_5 = arith.constant 0 : index
      %12 = vector.load %arg9[%c0, %c0_5] : memref<8x1xf32, #tpu.memory_space<vmem>>, vector<8x1xf32>
      %13 = tpu.reciprocal %12 {approx = true} : vector<8x1xf32> -> vector<8x1xf32>
      %c0_6 = arith.constant 0 : index
      %c0_7 = arith.constant 0 : index
      %14 = vector.load %arg10[%c0_6, %c0_7] : memref<8x128xf32, #tpu.memory_space<vmem>>, vector<8x128xf32>
      %15 = vector.broadcast %13 : vector<8x1xf32> to vector<8x128xf32>
      %16 = arith.mulf %14, %15 : vector<8x128xf32>
      %17 = arith.truncf %16 : vector<8x128xf32> to vector<8x128xbf16>
      %c0_8 = arith.constant 0 : index
      %c0_9 = arith.constant 0 : index
      %c0_10 = arith.constant 0 : index
      %18 = vector.load %arg7[%c0_8, %c0_9, %c0_10] : memref<1x8x128xbf16, #tpu.memory_space<vmem>>, vector<1x8x128xbf16>
      %19 = vector.shape_cast %18 : vector<1x8x128xbf16> to vector<8x128xbf16>
      %20 = vector.shape_cast %17 : vector<8x128xbf16> to vector<1x8x128xbf16>
      tpu.vector_store %arg7[%c0_8, %c0_9, %c0_10], %20 {strides = array<i32>} : memref<1x8x128xbf16, #tpu.memory_space<vmem>>, vector<1x8x128xbf16>,
    } else {
    }
    return
  }
  func.func @transform_0(%arg0: i32, %arg1: i32, %arg2: i32, %arg3: memref<2xi32, #tpu.memory_space<smem>>) -> (i32, i32, i32) {
    %c0_i32 = arith.constant 0 : i32
    %c0_i32_0 = arith.constant 0 : i32
    return %arg0, %arg1, %c0_i32 : i32, i32, i32
  }
  func.func @transform_1(%arg0: i32, %arg1: i32, %arg2: i32, %arg3: memref<2xi32, #tpu.memory_space<smem>>) -> (i32, i32, i32) {
    %c1_i32 = arith.constant 1 : i32
    %c0_i32 = arith.constant 0 : i32
    return %arg0, %arg2, %c1_i32 : i32, i32, i32
  }
  func.func @transform_2(%arg0: i32, %arg1: i32, %arg2: i32, %arg3: memref<2xi32, #tpu.memory_space<smem>>) -> (i32, i32, i32) {
    %c2_i32 = arith.constant 2 : i32
    %c0_i32 = arith.constant 0 : i32
    return %arg0, %arg2, %c2_i32 : i32, i32, i32
  }
  func.func @transform_3(%arg0: i32, %arg1: i32, %arg2: i32, %arg3: memref<2xi32, #tpu.memory_space<smem>>) -> (i32, i32, i32) {
    %c0_i32 = arith.constant 0 : i32
    %c0_i32_0 = arith.constant 0 : i32
    return %arg0, %arg1, %c0_i32 : i32, i32, i32
  }
}

module attributes {stable_mosaic.version = 11 : i64} {
  func.func @_linear_kernel(%arg0: i32, %arg1: i32, %arg2: i32, %arg3: memref<16x128xbf16, #tpu.memory_space<vmem>>, %arg4: memref<128x128xbf16, #tpu.memory_space<vmem>>, %arg5: memref<1x128xf32, #tpu.memory_space<vmem>>, %arg6: memref<16x128xf32, #tpu.memory_space<vmem>>, %arg7: memref<16x128xf32, #tpu.memory_space<vmem>>, %arg8: memref<16x128xf32, #tpu.memory_space<vmem>>) attributes {dimension_semantics = [#tpu.dimension_semantics<parallel>, #tpu.dimension_semantics<parallel>, #tpu.dimension_semantics<arbitrary>], iteration_bounds = array<i64: 1, 1, 1>, scalar_prefetch = 0 : i64, scratch_operands = 1 : i64, tpu.core_type = #tpu.core_type<tc>, window_params = [{transform_indices = @transform_0, window_bounds = array<i64: 16, 128>}, {transform_indices = @transform_1, window_bounds = array<i64: 128, 128>}, {transform_indices = @transform_2, window_bounds = array<i64: 1, 128>}, {transform_indices = @transform_3, window_bounds = array<i64: 16, 128>}, {transform_indices = @transform_4, window_bounds = array<i64: 16, 128>}]} {
    %c0_i32 = arith.constant 0 : i32
    %0 = arith.cmpi eq, %arg2, %c0_i32 : i32
    %1 = arith.extui %0 : i1 to i32
    %c0_i32_0 = arith.constant 0 : i32
    %2 = arith.cmpi ne, %1, %c0_i32_0 : i32
    scf.if %2 {
      %cst_10 = arith.constant 0.000000e+00 : f32
      %12 = vector.broadcast %cst_10 : f32 to vector<16x128xf32>
      %c0_11 = arith.constant 0 : index
      %c0_12 = arith.constant 0 : index
      %13 = vector.load %arg8[%c0_11, %c0_12] : memref<16x128xf32, #tpu.memory_space<vmem>>, vector<16x128xf32>
      tpu.vector_store %arg8[%c0_11, %c0_12], %12 {strides = array<i32>} : memref<16x128xf32, #tpu.memory_space<vmem>>, vector<16x128xf32>,
    } else {
    }
    %c0 = arith.constant 0 : index
    %c0_1 = arith.constant 0 : index
    %3 = vector.load %arg3[%c0, %c0_1] : memref<16x128xbf16, #tpu.memory_space<vmem>>, vector<16x128xbf16>
    %c0_2 = arith.constant 0 : index
    %c0_3 = arith.constant 0 : index
    %4 = vector.load %arg8[%c0_2, %c0_3] : memref<16x128xf32, #tpu.memory_space<vmem>>, vector<16x128xf32>
    %c0_4 = arith.constant 0 : index
    %c0_5 = arith.constant 0 : index
    %5 = vector.load %arg4[%c0_4, %c0_5] : memref<128x128xbf16, #tpu.memory_space<vmem>>, vector<128x128xbf16>
    %cst = arith.constant dense<0.000000e+00> : vector<16x128xf32>
    %6 = tpu.matmul %3, %5, %cst {dimension_numbers = #tpu.dot_dimension_numbers<[1], [0], [0], [1], [0, 0, 1, 1], [], []>} : vector<16x128xbf16>, vector<128x128xbf16>, vector<16x128xf32> -> vector<16x128xf32>
    %7 = arith.addf %4, %6 : vector<16x128xf32>
    %c0_6 = arith.constant 0 : index
    %c0_7 = arith.constant 0 : index
    %8 = vector.load %arg8[%c0_6, %c0_7] : memref<16x128xf32, #tpu.memory_space<vmem>>, vector<16x128xf32>
    tpu.vector_store %arg8[%c0_6, %c0_7], %7 {strides = array<i32>} : memref<16x128xf32, #tpu.memory_space<vmem>>, vector<16x128xf32>,
    %c0_i32_8 = arith.constant 0 : i32
    %9 = arith.cmpi eq, %arg2, %c0_i32_8 : i32
    %10 = arith.extui %9 : i1 to i32
    %c0_i32_9 = arith.constant 0 : i32
    %11 = arith.cmpi ne, %10, %c0_i32_9 : i32
    scf.if %11 {
      %c0_10 = arith.constant 0 : index
      %c0_11 = arith.constant 0 : index
      %12 = vector.load %arg8[%c0_10, %c0_11] : memref<16x128xf32, #tpu.memory_space<vmem>>, vector<16x128xf32>
      %c0_12 = arith.constant 0 : index
      %c0_13 = arith.constant 0 : index
      %13 = vector.load %arg5[%c0_12, %c0_13] : memref<1x128xf32, #tpu.memory_space<vmem>>, vector<1x128xf32>
      %14 = vector.broadcast %13 : vector<1x128xf32> to vector<16x128xf32>
      %15 = arith.addf %12, %14 : vector<16x128xf32>
      %c0_14 = arith.constant 0 : index
      %c0_15 = arith.constant 0 : index
      %16 = vector.load %arg6[%c0_14, %c0_15] : memref<16x128xf32, #tpu.memory_space<vmem>>, vector<16x128xf32>
      %17 = arith.addf %15, %16 : vector<16x128xf32>
      %c0_16 = arith.constant 0 : index
      %c0_17 = arith.constant 0 : index
      %18 = vector.load %arg7[%c0_16, %c0_17] : memref<16x128xf32, #tpu.memory_space<vmem>>, vector<16x128xf32>
      tpu.vector_store %arg7[%c0_16, %c0_17], %17 {strides = array<i32>} : memref<16x128xf32, #tpu.memory_space<vmem>>, vector<16x128xf32>,
    } else {
    }
    return
  }
  func.func @transform_0(%arg0: i32, %arg1: i32, %arg2: i32) -> (i32, i32) {
    %c0_i32 = arith.constant 0 : i32
    return %arg0, %arg2 : i32, i32
  }
  func.func @transform_1(%arg0: i32, %arg1: i32, %arg2: i32) -> (i32, i32) {
    %c0_i32 = arith.constant 0 : i32
    return %arg2, %arg1 : i32, i32
  }
  func.func @transform_2(%arg0: i32, %arg1: i32, %arg2: i32) -> (i32, i32) {
    %c0_i32 = arith.constant 0 : i32
    %c0_i32_0 = arith.constant 0 : i32
    return %c0_i32, %arg1 : i32, i32
  }
  func.func @transform_3(%arg0: i32, %arg1: i32, %arg2: i32) -> (i32, i32) {
    %c0_i32 = arith.constant 0 : i32
    return %arg0, %arg1 : i32, i32
  }
  func.func @transform_4(%arg0: i32, %arg1: i32, %arg2: i32) -> (i32, i32) {
    %c0_i32 = arith.constant 0 : i32
    return %arg0, %arg1 : i32, i32
  }
}

module attributes {stable_mosaic.version = 11 : i64} {
  func.func @_linear_kernel(%arg0: i32, %arg1: i32, %arg2: i32, %arg3: memref<16x128xf32, #tpu.memory_space<vmem>>, %arg4: memref<128x128xbf16, #tpu.memory_space<vmem>>, %arg5: memref<1x128xf32, #tpu.memory_space<vmem>>, %arg6: memref<1x128xf32, #tpu.memory_space<vmem>>, %arg7: memref<1x128xf32, #tpu.memory_space<vmem>>, %arg8: memref<16x128xbf16, #tpu.memory_space<vmem>>, %arg9: memref<16x128xf32, #tpu.memory_space<vmem>>) attributes {dimension_semantics = [#tpu.dimension_semantics<parallel>, #tpu.dimension_semantics<parallel>, #tpu.dimension_semantics<arbitrary>], iteration_bounds = array<i64: 1, 1, 1>, scalar_prefetch = 0 : i64, scratch_operands = 1 : i64, tpu.core_type = #tpu.core_type<tc>, window_params = [{transform_indices = @transform_0, window_bounds = array<i64: 16, 128>}, {transform_indices = @transform_1, window_bounds = array<i64: 128, 128>}, {transform_indices = @transform_2, window_bounds = array<i64: 1, 128>}, {pipeline_mode = #tpu.pipeline_mode<synchronous>, transform_indices = @transform_3, window_bounds = array<i64: 1, 128>}, {pipeline_mode = #tpu.pipeline_mode<synchronous>, transform_indices = @transform_4, window_bounds = array<i64: 1, 128>}, {transform_indices = @transform_5, window_bounds = array<i64: 16, 128>}]} {
    %c0_i32 = arith.constant 0 : i32
    %0 = arith.cmpi eq, %arg2, %c0_i32 : i32
    %1 = arith.extui %0 : i1 to i32
    %c0_i32_0 = arith.constant 0 : i32
    %2 = arith.cmpi ne, %1, %c0_i32_0 : i32
    scf.if %2 {
      %cst_19 = arith.constant 0.000000e+00 : f32
      %37 = vector.broadcast %cst_19 : f32 to vector<16x128xf32>
      %c0_20 = arith.constant 0 : index
      %c0_21 = arith.constant 0 : index
      %38 = vector.load %arg9[%c0_20, %c0_21] : memref<16x128xf32, #tpu.memory_space<vmem>>, vector<16x128xf32>
      tpu.vector_store %arg9[%c0_20, %c0_21], %37 {strides = array<i32>} : memref<16x128xf32, #tpu.memory_space<vmem>>, vector<16x128xf32>,
    } else {
    }
    %c0 = arith.constant 0 : index
    %c0_1 = arith.constant 0 : index
    %3 = vector.load %arg3[%c0, %c0_1] : memref<16x128xf32, #tpu.memory_space<vmem>>, vector<16x128xf32>
    %cst = arith.constant dense<0.000000e+00> : vector<16xf32>
    %4 = vector.multi_reduction <add>, %3, %cst [1] : vector<16x128xf32> to vector<16xf32>
    %5 = vector.shape_cast %4 : vector<16xf32> to vector<16x1xf32>
    %cst_2 = arith.constant 1.280000e+02 : f32
    %6 = vector.broadcast %cst_2 : f32 to vector<16x1xf32>
    %7 = arith.divf %5, %6 : vector<16x1xf32>
    %8 = vector.broadcast %7 : vector<16x1xf32> to vector<16x128xf32>
    %9 = arith.subf %3, %8 : vector<16x128xf32>
    %10 = arith.mulf %9, %9 : vector<16x128xf32>
    %cst_3 = arith.constant dense<0.000000e+00> : vector<16xf32>
    %11 = vector.multi_reduction <add>, %10, %cst_3 [1] : vector<16x128xf32> to vector<16xf32>
    %12 = vector.shape_cast %11 : vector<16xf32> to vector<16x1xf32>
    %cst_4 = arith.constant 1.280000e+02 : f32
    %13 = vector.broadcast %cst_4 : f32 to vector<16x1xf32>
    %14 = arith.divf %12, %13 : vector<16x1xf32>
    %15 = vector.broadcast %7 : vector<16x1xf32> to vector<16x128xf32>
    %16 = arith.subf %3, %15 : vector<16x128xf32>
    %cst_5 = arith.constant 9.99999974E-6 : f32
    %17 = vector.broadcast %cst_5 : f32 to vector<16x1xf32>
    %18 = arith.addf %14, %17 : vector<16x1xf32>
    %19 = math.rsqrt %18 : vector<16x1xf32>
    %20 = vector.broadcast %19 : vector<16x1xf32> to vector<16x128xf32>
    %21 = arith.mulf %16, %20 : vector<16x128xf32>
    %c0_6 = arith.constant 0 : index
    %c0_7 = arith.constant 0 : index
    %22 = vector.load %arg6[%c0_6, %c0_7] : memref<1x128xf32, #tpu.memory_space<vmem>>, vector<1x128xf32>
    %23 = vector.broadcast %22 : vector<1x128xf32> to vector<16x128xf32>
    %24 = arith.mulf %21, %23 : vector<16x128xf32>
    %c0_8 = arith.constant 0 : index
    %c0_9 = arith.constant 0 : index
    %25 = vector.load %arg7[%c0_8, %c0_9] : memref<1x128xf32, #tpu.memory_space<vmem>>, vector<1x128xf32>
    %26 = vector.broadcast %25 : vector<1x128xf32> to vector<16x128xf32>
    %27 = arith.addf %24, %26 : vector<16x128xf32>
    %28 = arith.truncf %27 : vector<16x128xf32> to vector<16x128xbf16>
    %c0_10 = arith.constant 0 : index
    %c0_11 = arith.constant 0 : index
    %29 = vector.load %arg9[%c0_10, %c0_11] : memref<16x128xf32, #tpu.memory_space<vmem>>, vector<16x128xf32>
    %c0_12 = arith.constant 0 : index
    %c0_13 = arith.constant 0 : index
    %30 = vector.load %arg4[%c0_12, %c0_13] : memref<128x128xbf16, #tpu.memory_space<vmem>>, vector<128x128xbf16>
    %cst_14 = arith.constant dense<0.000000e+00> : vector<16x128xf32>
    %31 = tpu.matmul %28, %30, %cst_14 {dimension_numbers = #tpu.dot_dimension_numbers<[1], [0], [0], [1], [0, 0, 1, 1], [], []>} : vector<16x128xbf16>, vector<128x128xbf16>, vector<16x128xf32> -> vector<16x128xf32>
    %32 = arith.addf %29, %31 : vector<16x128xf32>
    %c0_15 = arith.constant 0 : index
    %c0_16 = arith.constant 0 : index
    %33 = vector.load %arg9[%c0_15, %c0_16] : memref<16x128xf32, #tpu.memory_space<vmem>>, vector<16x128xf32>
    tpu.vector_store %arg9[%c0_15, %c0_16], %32 {strides = array<i32>} : memref<16x128xf32, #tpu.memory_space<vmem>>, vector<16x128xf32>,
    %c0_i32_17 = arith.constant 0 : i32
    %34 = arith.cmpi eq, %arg2, %c0_i32_17 : i32
    %35 = arith.extui %34 : i1 to i32
    %c0_i32_18 = arith.constant 0 : i32
    %36 = arith.cmpi ne, %35, %c0_i32_18 : i32
    scf.if %36 {
      %c0_19 = arith.constant 0 : index
      %c0_20 = arith.constant 0 : index
      %37 = vector.load %arg9[%c0_19, %c0_20] : memref<16x128xf32, #tpu.memory_space<vmem>>, vector<16x128xf32>
      %c0_21 = arith.constant 0 : index
      %c0_22 = arith.constant 0 : index
      %38 = vector.load %arg5[%c0_21, %c0_22] : memref<1x128xf32, #tpu.memory_space<vmem>>, vector<1x128xf32>
      %39 = vector.broadcast %38 : vector<1x128xf32> to vector<16x128xf32>
      %40 = arith.addf %37, %39 : vector<16x128xf32>
      %41 = arith.truncf %40 : vector<16x128xf32> to vector<16x128xbf16>
      %c0_23 = arith.constant 0 : index
      %c0_24 = arith.constant 0 : index
      %42 = vector.load %arg8[%c0_23, %c0_24] : memref<16x128xbf16, #tpu.memory_space<vmem>>, vector<16x128xbf16>
      tpu.vector_store %arg8[%c0_23, %c0_24], %41 {strides = array<i32>} : memref<16x128xbf16, #tpu.memory_space<vmem>>, vector<16x128xbf16>,
    } else {
    }
    return
  }
  func.func @transform_0(%arg0: i32, %arg1: i32, %arg2: i32) -> (i32, i32) {
    %c0_i32 = arith.constant 0 : i32
    return %arg0, %arg2 : i32, i32
  }
  func.func @transform_1(%arg0: i32, %arg1: i32, %arg2: i32) -> (i32, i32) {
    %c0_i32 = arith.constant 0 : i32
    return %arg2, %arg1 : i32, i32
  }
  func.func @transform_2(%arg0: i32, %arg1: i32, %arg2: i32) -> (i32, i32) {
    %c0_i32 = arith.constant 0 : i32
    %c0_i32_0 = arith.constant 0 : i32
    return %c0_i32, %arg1 : i32, i32
  }
  func.func @transform_3(%arg0: i32, %arg1: i32, %arg2: i32) -> (i32, i32) {
    %c0_i32 = arith.constant 0 : i32
    %c0_i32_0 = arith.constant 0 : i32
    %c0_i32_1 = arith.constant 0 : i32
    return %c0_i32, %c0_i32_0 : i32, i32
  }
  func.func @transform_4(%arg0: i32, %arg1: i32, %arg2: i32) -> (i32, i32) {
    %c0_i32 = arith.constant 0 : i32
    %c0_i32_0 = arith.constant 0 : i32
    %c0_i32_1 = arith.constant 0 : i32
    return %c0_i32, %c0_i32_0 : i32, i32
  }
  func.func @transform_5(%arg0: i32, %arg1: i32, %arg2: i32) -> (i32, i32) {
    %c0_i32 = arith.constant 0 : i32
    return %arg0, %arg1 : i32, i32
  }
}

module attributes {stable_mosaic.version = 11 : i64} {
  func.func @_linear_kernel(%arg0: i32, %arg1: i32, %arg2: i32, %arg3: memref<32x64xf32, #tpu.memory_space<vmem>>, %arg4: memref<64x128xbf16, #tpu.memory_space<vmem>>, %arg5: memref<1x128xf32, #tpu.memory_space<vmem>>, %arg6: memref<32x128xbf16, #tpu.memory_space<vmem>>, %arg7: memref<32x128xf32, #tpu.memory_space<vmem>>) attributes {dimension_semantics = [#tpu.dimension_semantics<parallel>, #tpu.dimension_semantics<parallel>, #tpu.dimension_semantics<arbitrary>], iteration_bounds = array<i64: 1, 1, 1>, scalar_prefetch = 0 : i64, scratch_operands = 1 : i64, tpu.core_type = #tpu.core_type<tc>, window_params = [{transform_indices = @transform_0, window_bounds = array<i64: 32, 64>}, {transform_indices = @transform_1, window_bounds = array<i64: 64, 128>}, {transform_indices = @transform_2, window_bounds = array<i64: 1, 128>}, {transform_indices = @transform_3, window_bounds = array<i64: 32, 128>}]} {
    %c0_i32 = arith.constant 0 : i32
    %0 = arith.cmpi eq, %arg2, %c0_i32 : i32
    %1 = arith.extui %0 : i1 to i32
    %c0_i32_0 = arith.constant 0 : i32
    %2 = arith.cmpi ne, %1, %c0_i32_0 : i32
    scf.if %2 {
      %cst_10 = arith.constant 0.000000e+00 : f32
      %13 = vector.broadcast %cst_10 : f32 to vector<32x128xf32>
      %c0_11 = arith.constant 0 : index
      %c0_12 = arith.constant 0 : index
      %14 = vector.load %arg7[%c0_11, %c0_12] : memref<32x128xf32, #tpu.memory_space<vmem>>, vector<32x128xf32>
      tpu.vector_store %arg7[%c0_11, %c0_12], %13 {strides = array<i32>} : memref<32x128xf32, #tpu.memory_space<vmem>>, vector<32x128xf32>,
    } else {
    }
    %c0 = arith.constant 0 : index
    %c0_1 = arith.constant 0 : index
    %3 = vector.load %arg3[%c0, %c0_1] : memref<32x64xf32, #tpu.memory_space<vmem>>, vector<32x64xf32>
    %4 = arith.truncf %3 : vector<32x64xf32> to vector<32x64xbf16>
    %c0_2 = arith.constant 0 : index
    %c0_3 = arith.constant 0 : index
    %5 = vector.load %arg7[%c0_2, %c0_3] : memref<32x128xf32, #tpu.memory_space<vmem>>, vector<32x128xf32>
    %c0_4 = arith.constant 0 : index
    %c0_5 = arith.constant 0 : index
    %6 = vector.load %arg4[%c0_4, %c0_5] : memref<64x128xbf16, #tpu.memory_space<vmem>>, vector<64x128xbf16>
    %cst = arith.constant dense<0.000000e+00> : vector<32x128xf32>
    %7 = tpu.matmul %4, %6, %cst {dimension_numbers = #tpu.dot_dimension_numbers<[1], [0], [0], [1], [0, 0, 1, 1], [], []>} : vector<32x64xbf16>, vector<64x128xbf16>, vector<32x128xf32> -> vector<32x128xf32>
    %8 = arith.addf %5, %7 : vector<32x128xf32>
    %c0_6 = arith.constant 0 : index
    %c0_7 = arith.constant 0 : index
    %9 = vector.load %arg7[%c0_6, %c0_7] : memref<32x128xf32, #tpu.memory_space<vmem>>, vector<32x128xf32>
    tpu.vector_store %arg7[%c0_6, %c0_7], %8 {strides = array<i32>} : memref<32x128xf32, #tpu.memory_space<vmem>>, vector<32x128xf32>,
    %c0_i32_8 = arith.constant 0 : i32
    %10 = arith.cmpi eq, %arg2, %c0_i32_8 : i32
    %11 = arith.extui %10 : i1 to i32
    %c0_i32_9 = arith.constant 0 : i32
    %12 = arith.cmpi ne, %11, %c0_i32_9 : i32
    scf.if %12 {
      %c0_10 = arith.constant 0 : index
      %c0_11 = arith.constant 0 : index
      %13 = vector.load %arg7[%c0_10, %c0_11] : memref<32x128xf32, #tpu.memory_space<vmem>>, vector<32x128xf32>
      %c0_12 = arith.constant 0 : index
      %c0_13 = arith.constant 0 : index
      %14 = vector.load %arg5[%c0_12, %c0_13] : memref<1x128xf32, #tpu.memory_space<vmem>>, vector<1x128xf32>
      %15 = vector.broadcast %14 : vector<1x128xf32> to vector<32x128xf32>
      %16 = arith.addf %13, %15 : vector<32x128xf32>
      %cst_14 = arith.constant 0.000000e+00 : f32
      %17 = vector.broadcast %cst_14 : f32 to vector<32x128xf32>
      %18 = arith.maximumf %16, %17 : vector<32x128xf32>
      %19 = arith.truncf %18 : vector<32x128xf32> to vector<32x128xbf16>
      %c0_15 = arith.constant 0 : index
      %c0_16 = arith.constant 0 : index
      %20 = vector.load %arg6[%c0_15, %c0_16] : memref<32x128xbf16, #tpu.memory_space<vmem>>, vector<32x128xbf16>
      tpu.vector_store %arg6[%c0_15, %c0_16], %19 {strides = array<i32>} : memref<32x128xbf16, #tpu.memory_space<vmem>>, vector<32x128xbf16>,
    } else {
    }
    return
  }
  func.func @transform_0(%arg0: i32, %arg1: i32, %arg2: i32) -> (i32, i32) {
    %c0_i32 = arith.constant 0 : i32
    return %arg0, %arg2 : i32, i32
  }
  func.func @transform_1(%arg0: i32, %arg1: i32, %arg2: i32) -> (i32, i32) {
    %c0_i32 = arith.constant 0 : i32
    return %arg2, %arg1 : i32, i32
  }
  func.func @transform_2(%arg0: i32, %arg1: i32, %arg2: i32) -> (i32, i32) {
    %c0_i32 = arith.constant 0 : i32
    %c0_i32_0 = arith.constant 0 : i32
    return %c0_i32, %arg1 : i32, i32
  }
  func.func @transform_3(%arg0: i32, %arg1: i32, %arg2: i32) -> (i32, i32) {
    %c0_i32 = arith.constant 0 : i32
    return %arg0, %arg1 : i32, i32
  }
}

module attributes {stable_mosaic.version = 11 : i64} {
  func.func @_linear_kernel(%arg0: i32, %arg1: i32, %arg2: i32, %arg3: memref<32x128xbf16, #tpu.memory_space<vmem>>, %arg4: memref<128x256xbf16, #tpu.memory_space<vmem>>, %arg5: memref<1x256xf32, #tpu.memory_space<vmem>>, %arg6: memref<32x256xbf16, #tpu.memory_space<vmem>>, %arg7: memref<32x256xf32, #tpu.memory_space<vmem>>) attributes {dimension_semantics = [#tpu.dimension_semantics<parallel>, #tpu.dimension_semantics<parallel>, #tpu.dimension_semantics<arbitrary>], iteration_bounds = array<i64: 1, 1, 1>, scalar_prefetch = 0 : i64, scratch_operands = 1 : i64, tpu.core_type = #tpu.core_type<tc>, window_params = [{transform_indices = @transform_0, window_bounds = array<i64: 32, 128>}, {transform_indices = @transform_1, window_bounds = array<i64: 128, 256>}, {transform_indices = @transform_2, window_bounds = array<i64: 1, 256>}, {transform_indices = @transform_3, window_bounds = array<i64: 32, 256>}]} {
    %c0_i32 = arith.constant 0 : i32
    %0 = arith.cmpi eq, %arg2, %c0_i32 : i32
    %1 = arith.extui %0 : i1 to i32
    %c0_i32_0 = arith.constant 0 : i32
    %2 = arith.cmpi ne, %1, %c0_i32_0 : i32
    scf.if %2 {
      %cst_10 = arith.constant 0.000000e+00 : f32
      %12 = vector.broadcast %cst_10 : f32 to vector<32x256xf32>
      %c0_11 = arith.constant 0 : index
      %c0_12 = arith.constant 0 : index
      %13 = vector.load %arg7[%c0_11, %c0_12] : memref<32x256xf32, #tpu.memory_space<vmem>>, vector<32x256xf32>
      tpu.vector_store %arg7[%c0_11, %c0_12], %12 {strides = array<i32>} : memref<32x256xf32, #tpu.memory_space<vmem>>, vector<32x256xf32>,
    } else {
    }
    %c0 = arith.constant 0 : index
    %c0_1 = arith.constant 0 : index
    %3 = vector.load %arg3[%c0, %c0_1] : memref<32x128xbf16, #tpu.memory_space<vmem>>, vector<32x128xbf16>
    %c0_2 = arith.constant 0 : index
    %c0_3 = arith.constant 0 : index
    %4 = vector.load %arg7[%c0_2, %c0_3] : memref<32x256xf32, #tpu.memory_space<vmem>>, vector<32x256xf32>
    %c0_4 = arith.constant 0 : index
    %c0_5 = arith.constant 0 : index
    %5 = vector.load %arg4[%c0_4, %c0_5] : memref<128x256xbf16, #tpu.memory_space<vmem>>, vector<128x256xbf16>
    %cst = arith.constant dense<0.000000e+00> : vector<32x256xf32>
    %6 = tpu.matmul %3, %5, %cst {dimension_numbers = #tpu.dot_dimension_numbers<[1], [0], [0], [1], [0, 0, 1, 1], [], []>} : vector<32x128xbf16>, vector<128x256xbf16>, vector<32x256xf32> -> vector<32x256xf32>
    %7 = arith.addf %4, %6 : vector<32x256xf32>
    %c0_6 = arith.constant 0 : index
    %c0_7 = arith.constant 0 : index
    %8 = vector.load %arg7[%c0_6, %c0_7] : memref<32x256xf32, #tpu.memory_space<vmem>>, vector<32x256xf32>
    tpu.vector_store %arg7[%c0_6, %c0_7], %7 {strides = array<i32>} : memref<32x256xf32, #tpu.memory_space<vmem>>, vector<32x256xf32>,
    %c0_i32_8 = arith.constant 0 : i32
    %9 = arith.cmpi eq, %arg2, %c0_i32_8 : i32
    %10 = arith.extui %9 : i1 to i32
    %c0_i32_9 = arith.constant 0 : i32
    %11 = arith.cmpi ne, %10, %c0_i32_9 : i32
    scf.if %11 {
      %c0_10 = arith.constant 0 : index
      %c0_11 = arith.constant 0 : index
      %12 = vector.load %arg7[%c0_10, %c0_11] : memref<32x256xf32, #tpu.memory_space<vmem>>, vector<32x256xf32>
      %c0_12 = arith.constant 0 : index
      %c0_13 = arith.constant 0 : index
      %13 = vector.load %arg5[%c0_12, %c0_13] : memref<1x256xf32, #tpu.memory_space<vmem>>, vector<1x256xf32>
      %14 = vector.broadcast %13 : vector<1x256xf32> to vector<32x256xf32>
      %15 = arith.addf %12, %14 : vector<32x256xf32>
      %16 = arith.truncf %15 : vector<32x256xf32> to vector<32x256xbf16>
      %c0_14 = arith.constant 0 : index
      %c0_15 = arith.constant 0 : index
      %17 = vector.load %arg6[%c0_14, %c0_15] : memref<32x256xbf16, #tpu.memory_space<vmem>>, vector<32x256xbf16>
      tpu.vector_store %arg6[%c0_14, %c0_15], %16 {strides = array<i32>} : memref<32x256xbf16, #tpu.memory_space<vmem>>, vector<32x256xbf16>,
    } else {
    }
    return
  }
  func.func @transform_0(%arg0: i32, %arg1: i32, %arg2: i32) -> (i32, i32) {
    %c0_i32 = arith.constant 0 : i32
    return %arg0, %arg2 : i32, i32
  }
  func.func @transform_1(%arg0: i32, %arg1: i32, %arg2: i32) -> (i32, i32) {
    %c0_i32 = arith.constant 0 : i32
    return %arg2, %arg1 : i32, i32
  }
  func.func @transform_2(%arg0: i32, %arg1: i32, %arg2: i32) -> (i32, i32) {
    %c0_i32 = arith.constant 0 : i32
    %c0_i32_0 = arith.constant 0 : i32
    return %c0_i32, %arg1 : i32, i32
  }
  func.func @transform_3(%arg0: i32, %arg1: i32, %arg2: i32) -> (i32, i32) {
    %c0_i32 = arith.constant 0 : i32
    return %arg0, %arg1 : i32, i32
  }
}

module attributes {stable_mosaic.version = 11 : i64} {
  func.func @_flash_attn_kernel(%arg0: i32, %arg1: i32, %arg2: i32, %arg3: memref<1x8x128xbf16, #tpu.memory_space<vmem>>, %arg4: memref<1x16x128xbf16, #tpu.memory_space<vmem>>, %arg5: memref<1x16x128xbf16, #tpu.memory_space<vmem>>, %arg6: memref<1x8x128xbf16, #tpu.memory_space<vmem>>, %arg7: memref<8x1xf32, #tpu.memory_space<vmem>>, %arg8: memref<8x1xf32, #tpu.memory_space<vmem>>, %arg9: memref<8x128xf32, #tpu.memory_space<vmem>>) attributes {dimension_semantics = [#tpu.dimension_semantics<parallel>, #tpu.dimension_semantics<parallel>, #tpu.dimension_semantics<arbitrary>], iteration_bounds = array<i64: 2, 1, 1>, scalar_prefetch = 0 : i64, scratch_operands = 3 : i64, tpu.core_type = #tpu.core_type<tc>, window_params = [{transform_indices = @transform_0, window_bounds = array<i64: 1, 8, 128>}, {transform_indices = @transform_1, window_bounds = array<i64: 1, 16, 128>}, {transform_indices = @transform_2, window_bounds = array<i64: 1, 16, 128>}, {transform_indices = @transform_3, window_bounds = array<i64: 1, 8, 128>}]} {
    %c0_i32 = arith.constant 0 : i32
    %0 = arith.cmpi eq, %arg2, %c0_i32 : i32
    %1 = arith.extui %0 : i1 to i32
    %c0_i32_0 = arith.constant 0 : i32
    %2 = arith.cmpi ne, %1, %c0_i32_0 : i32
    scf.if %2 {
      %cst_26 = arith.constant 0xFF800000 : f32
      %38 = vector.broadcast %cst_26 : f32 to vector<8x1xf32>
      %c0_27 = arith.constant 0 : index
      %c0_28 = arith.constant 0 : index
      %39 = vector.load %arg7[%c0_27, %c0_28] : memref<8x1xf32, #tpu.memory_space<vmem>>, vector<8x1xf32>
      tpu.vector_store %arg7[%c0_27, %c0_28], %38 {strides = array<i32>} : memref<8x1xf32, #tpu.memory_space<vmem>>, vector<8x1xf32>,
      %cst_29 = arith.constant 0.000000e+00 : f32
      %40 = vector.broadcast %cst_29 : f32 to vector<8x1xf32>
      %c0_30 = arith.constant 0 : index
      %c0_31 = arith.constant 0 : index
      %41 = vector.load %arg8[%c0_30, %c0_31] : memref<8x1xf32, #tpu.memory_space<vmem>>, vector<8x1xf32>
      tpu.vector_store %arg8[%c0_30, %c0_31], %40 {strides = array<i32>} : memref<8x1xf32, #tpu.memory_space<vmem>>, vector<8x1xf32>,
      %cst_32 = arith.constant 0.000000e+00 : f32
      %42 = vector.broadcast %cst_32 : f32 to vector<8x128xf32>
      %c0_33 = arith.constant 0 : index
      %c0_34 = arith.constant 0 : index
      %43 = vector.load %arg9[%c0_33, %c0_34] : memref<8x128xf32, #tpu.memory_space<vmem>>, vector<8x128xf32>
      tpu.vector_store %arg9[%c0_33, %c0_34], %42 {strides = array<i32>} : memref<8x128xf32, #tpu.memory_space<vmem>>, vector<8x128xf32>,
    } else {
    }
    %c0 = arith.constant 0 : index
    %c0_1 = arith.constant 0 : index
    %c0_2 = arith.constant 0 : index
    %3 = vector.load %arg3[%c0, %c0_1, %c0_2] : memref<1x8x128xbf16, #tpu.memory_space<vmem>>, vector<1x8x128xbf16>
    %4 = vector.shape_cast %3 : vector<1x8x128xbf16> to vector<8x128xbf16>
    %5 = arith.extf %4 : vector<8x128xbf16> to vector<8x128xf32>
    %c0_3 = arith.constant 0 : index
    %c0_4 = arith.constant 0 : index
    %c0_5 = arith.constant 0 : index
    %6 = vector.load %arg4[%c0_3, %c0_4, %c0_5] : memref<1x16x128xbf16, #tpu.memory_space<vmem>>, vector<1x16x128xbf16>
    %7 = vector.shape_cast %6 : vector<1x16x128xbf16> to vector<16x128xbf16>
    %8 = arith.extf %7 : vector<16x128xbf16> to vector<16x128xf32>
    %c0_6 = arith.constant 0 : index
    %c0_7 = arith.constant 0 : index
    %c0_8 = arith.constant 0 : index
    %9 = vector.load %arg5[%c0_6, %c0_7, %c0_8] : memref<1x16x128xbf16, #tpu.memory_space<vmem>>, vector<1x16x128xbf16>
    %10 = vector.shape_cast %9 : vector<1x16x128xbf16> to vector<16x128xbf16>
    %cst = arith.constant dense<0.000000e+00> : vector<8x16xf32>
    %11 = tpu.matmul %5, %8, %cst {dimension_numbers = #tpu.dot_dimension_numbers<[1], [1], [0], [0], [0, 0, 1, 0], [], []>} : vector<8x128xf32>, vector<16x128xf32>, vector<8x16xf32> -> vector<8x16xf32>
    %c0_9 = arith.constant 0 : index
    %c0_10 = arith.constant 0 : index
    %12 = vector.load %arg7[%c0_9, %c0_10] : memref<8x1xf32, #tpu.memory_space<vmem>>, vector<8x1xf32>
    %cst_11 = arith.constant dense<0xFF800000> : vector<8xf32>
    %13 = vector.multi_reduction <maximumf>, %11, %cst_11 [1] : vector<8x16xf32> to vector<8xf32>
    %14 = vector.shape_cast %13 : vector<8xf32> to vector<8x1xf32>
    %15 = arith.maximumf %12, %14 : vector<8x1xf32>
    %16 = arith.subf %12, %15 : vector<8x1xf32>
    %17 = math.exp %16 : vector<8x1xf32>
    %18 = vector.broadcast %15 : vector<8x1xf32> to vector<8x16xf32>
    %19 = arith.subf %11, %18 : vector<8x16xf32>
    %20 = math.exp %19 : vector<8x16xf32>
    %c0_12 = arith.constant 0 : index
    %c0_13 = arith.constant 0 : index
    %21 = vector.load %arg8[%c0_12, %c0_13] : memref<8x1xf32, #tpu.memory_space<vmem>>, vector<8x1xf32>
    %22 = arith.mulf %17, %21 : vector<8x1xf32>
    %cst_14 = arith.constant dense<0.000000e+00> : vector<8xf32>
    %23 = vector.multi_reduction <add>, %20, %cst_14 [1] : vector<8x16xf32> to vector<8xf32>
    %24 = vector.shape_cast %23 : vector<8xf32> to vector<8x1xf32>
    %25 = arith.addf %22, %24 : vector<8x1xf32>
    %c0_15 = arith.constant 0 : index
    %c0_16 = arith.constant 0 : index
    %26 = vector.load %arg8[%c0_15, %c0_16] : memref<8x1xf32, #tpu.memory_space<vmem>>, vector<8x1xf32>
    tpu.vector_store %arg8[%c0_15, %c0_16], %25 {strides = array<i32>} : memref<8x1xf32, #tpu.memory_space<vmem>>, vector<8x1xf32>,
    %c0_17 = arith.constant 0 : index
    %c0_18 = arith.constant 0 : index
    %27 = vector.load %arg9[%c0_17, %c0_18] : memref<8x128xf32, #tpu.memory_space<vmem>>, vector<8x128xf32>
    %28 = vector.broadcast %17 : vector<8x1xf32> to vector<8x128xf32>
    %29 = arith.mulf %28, %27 : vector<8x128xf32>
    %30 = arith.truncf %20 : vector<8x16xf32> to vector<8x16xbf16>
    %cst_19 = arith.constant dense<0.000000e+00> : vector<8x128xf32>
    %31 = tpu.matmul %30, %10, %cst_19 {dimension_numbers = #tpu.dot_dimension_numbers<[1], [0], [0], [1], [0, 0, 1, 1], [], []>} : vector<8x16xbf16>, vector<16x128xbf16>, vector<8x128xf32> -> vector<8x128xf32>
    %32 = arith.addf %29, %31 : vector<8x128xf32>
    %c0_20 = arith.constant 0 : index
    %c0_21 = arith.constant 0 : index
    %33 = vector.load %arg9[%c0_20, %c0_21] : memref<8x128xf32, #tpu.memory_space<vmem>>, vector<8x128xf32>
    tpu.vector_store %arg9[%c0_20, %c0_21], %32 {strides = array<i32>} : memref<8x128xf32, #tpu.memory_space<vmem>>, vector<8x128xf32>,
    %c0_22 = arith.constant 0 : index
    %c0_23 = arith.constant 0 : index
    %34 = vector.load %arg7[%c0_22, %c0_23] : memref<8x1xf32, #tpu.memory_space<vmem>>, vector<8x1xf32>
    tpu.vector_store %arg7[%c0_22, %c0_23], %15 {strides = array<i32>} : memref<8x1xf32, #tpu.memory_space<vmem>>, vector<8x1xf32>,
    %c0_i32_24 = arith.constant 0 : i32
    %35 = arith.cmpi eq, %arg2, %c0_i32_24 : i32
    %36 = arith.extui %35 : i1 to i32
    %c0_i32_25 = arith.constant 0 : i32
    %37 = arith.cmpi ne, %36, %c0_i32_25 : i32
    scf.if %37 {
      %c0_26 = arith.constant 0 : index
      %c0_27 = arith.constant 0 : index
      %38 = vector.load %arg8[%c0_26, %c0_27] : memref<8x1xf32, #tpu.memory_space<vmem>>, vector<8x1xf32>
      %39 = tpu.reciprocal %38 {approx = true} : vector<8x1xf32> -> vector<8x1xf32>
      %c0_28 = arith.constant 0 : index
      %c0_29 = arith.constant 0 : index
      %40 = vector.load %arg9[%c0_28, %c0_29] : memref<8x128xf32, #tpu.memory_space<vmem>>, vector<8x128xf32>
      %41 = vector.broadcast %39 : vector<8x1xf32> to vector<8x128xf32>
      %42 = arith.mulf %40, %41 : vector<8x128xf32>
      %43 = arith.truncf %42 : vector<8x128xf32> to vector<8x128xbf16>
      %c0_30 = arith.constant 0 : index
      %c0_31 = arith.constant 0 : index
      %c0_32 = arith.constant 0 : index
      %44 = vector.load %arg6[%c0_30, %c0_31, %c0_32] : memref<1x8x128xbf16, #tpu.memory_space<vmem>>, vector<1x8x128xbf16>
      %45 = vector.shape_cast %44 : vector<1x8x128xbf16> to vector<8x128xbf16>
      %46 = vector.shape_cast %43 : vector<8x128xbf16> to vector<1x8x128xbf16>
      tpu.vector_store %arg6[%c0_30, %c0_31, %c0_32], %46 {strides = array<i32>} : memref<1x8x128xbf16, #tpu.memory_space<vmem>>, vector<1x8x128xbf16>,
    } else {
    }
    return
  }
  func.func @transform_0(%arg0: i32, %arg1: i32, %arg2: i32) -> (i32, i32, i32) {
    %c0_i32 = arith.constant 0 : i32
    %c0_i32_0 = arith.constant 0 : i32
    return %arg0, %arg1, %c0_i32 : i32, i32, i32
  }
  func.func @transform_1(%arg0: i32, %arg1: i32, %arg2: i32) -> (i32, i32, i32) {
    %c0_i32 = arith.constant 0 : i32
    %c0_i32_0 = arith.constant 0 : i32
    return %arg0, %arg2, %c0_i32 : i32, i32, i32
  }
  func.func @transform_2(%arg0: i32, %arg1: i32, %arg2: i32) -> (i32, i32, i32) {
    %c1_i32 = arith.constant 1 : i32
    %c0_i32 = arith.constant 0 : i32
    return %arg0, %arg2, %c1_i32 : i32, i32, i32
  }
  func.func @transform_3(%arg0: i32, %arg1: i32, %arg2: i32) -> (i32, i32, i32) {
    %c0_i32 = arith.constant 0 : i32
    %c0_i32_0 = arith.constant 0 : i32
    return %arg0, %arg1, %c0_i32 : i32, i32, i32
  }
}

module attributes {stable_mosaic.version = 11 : i64} {
  func.func @_linear_kernel(%arg0: i32, %arg1: i32, %arg2: i32, %arg3: memref<16x128xf32, #tpu.memory_space<vmem>>, %arg4: memref<128x256xbf16, #tpu.memory_space<vmem>>, %arg5: memref<1x256xf32, #tpu.memory_space<vmem>>, %arg6: memref<1x128xf32, #tpu.memory_space<vmem>>, %arg7: memref<1x128xf32, #tpu.memory_space<vmem>>, %arg8: memref<16x256xbf16, #tpu.memory_space<vmem>>, %arg9: memref<16x256xf32, #tpu.memory_space<vmem>>) attributes {dimension_semantics = [#tpu.dimension_semantics<parallel>, #tpu.dimension_semantics<parallel>, #tpu.dimension_semantics<arbitrary>], iteration_bounds = array<i64: 1, 1, 1>, scalar_prefetch = 0 : i64, scratch_operands = 1 : i64, tpu.core_type = #tpu.core_type<tc>, window_params = [{transform_indices = @transform_0, window_bounds = array<i64: 16, 128>}, {transform_indices = @transform_1, window_bounds = array<i64: 128, 256>}, {transform_indices = @transform_2, window_bounds = array<i64: 1, 256>}, {pipeline_mode = #tpu.pipeline_mode<synchronous>, transform_indices = @transform_3, window_bounds = array<i64: 1, 128>}, {pipeline_mode = #tpu.pipeline_mode<synchronous>, transform_indices = @transform_4, window_bounds = array<i64: 1, 128>}, {transform_indices = @transform_5, window_bounds = array<i64: 16, 256>}]} {
    %c0_i32 = arith.constant 0 : i32
    %0 = arith.cmpi eq, %arg2, %c0_i32 : i32
    %1 = arith.extui %0 : i1 to i32
    %c0_i32_0 = arith.constant 0 : i32
    %2 = arith.cmpi ne, %1, %c0_i32_0 : i32
    scf.if %2 {
      %cst_19 = arith.constant 0.000000e+00 : f32
      %37 = vector.broadcast %cst_19 : f32 to vector<16x256xf32>
      %c0_20 = arith.constant 0 : index
      %c0_21 = arith.constant 0 : index
      %38 = vector.load %arg9[%c0_20, %c0_21] : memref<16x256xf32, #tpu.memory_space<vmem>>, vector<16x256xf32>
      tpu.vector_store %arg9[%c0_20, %c0_21], %37 {strides = array<i32>} : memref<16x256xf32, #tpu.memory_space<vmem>>, vector<16x256xf32>,
    } else {
    }
    %c0 = arith.constant 0 : index
    %c0_1 = arith.constant 0 : index
    %3 = vector.load %arg3[%c0, %c0_1] : memref<16x128xf32, #tpu.memory_space<vmem>>, vector<16x128xf32>
    %cst = arith.constant dense<0.000000e+00> : vector<16xf32>
    %4 = vector.multi_reduction <add>, %3, %cst [1] : vector<16x128xf32> to vector<16xf32>
    %5 = vector.shape_cast %4 : vector<16xf32> to vector<16x1xf32>
    %cst_2 = arith.constant 1.280000e+02 : f32
    %6 = vector.broadcast %cst_2 : f32 to vector<16x1xf32>
    %7 = arith.divf %5, %6 : vector<16x1xf32>
    %8 = vector.broadcast %7 : vector<16x1xf32> to vector<16x128xf32>
    %9 = arith.subf %3, %8 : vector<16x128xf32>
    %10 = arith.mulf %9, %9 : vector<16x128xf32>
    %cst_3 = arith.constant dense<0.000000e+00> : vector<16xf32>
    %11 = vector.multi_reduction <add>, %10, %cst_3 [1] : vector<16x128xf32> to vector<16xf32>
    %12 = vector.shape_cast %11 : vector<16xf32> to vector<16x1xf32>
    %cst_4 = arith.constant 1.280000e+02 : f32
    %13 = vector.broadcast %cst_4 : f32 to vector<16x1xf32>
    %14 = arith.divf %12, %13 : vector<16x1xf32>
    %15 = vector.broadcast %7 : vector<16x1xf32> to vector<16x128xf32>
    %16 = arith.subf %3, %15 : vector<16x128xf32>
    %cst_5 = arith.constant 9.99999974E-6 : f32
    %17 = vector.broadcast %cst_5 : f32 to vector<16x1xf32>
    %18 = arith.addf %14, %17 : vector<16x1xf32>
    %19 = math.rsqrt %18 : vector<16x1xf32>
    %20 = vector.broadcast %19 : vector<16x1xf32> to vector<16x128xf32>
    %21 = arith.mulf %16, %20 : vector<16x128xf32>
    %c0_6 = arith.constant 0 : index
    %c0_7 = arith.constant 0 : index
    %22 = vector.load %arg6[%c0_6, %c0_7] : memref<1x128xf32, #tpu.memory_space<vmem>>, vector<1x128xf32>
    %23 = vector.broadcast %22 : vector<1x128xf32> to vector<16x128xf32>
    %24 = arith.mulf %21, %23 : vector<16x128xf32>
    %c0_8 = arith.constant 0 : index
    %c0_9 = arith.constant 0 : index
    %25 = vector.load %arg7[%c0_8, %c0_9] : memref<1x128xf32, #tpu.memory_space<vmem>>, vector<1x128xf32>
    %26 = vector.broadcast %25 : vector<1x128xf32> to vector<16x128xf32>
    %27 = arith.addf %24, %26 : vector<16x128xf32>
    %28 = arith.truncf %27 : vector<16x128xf32> to vector<16x128xbf16>
    %c0_10 = arith.constant 0 : index
    %c0_11 = arith.constant 0 : index
    %29 = vector.load %arg9[%c0_10, %c0_11] : memref<16x256xf32, #tpu.memory_space<vmem>>, vector<16x256xf32>
    %c0_12 = arith.constant 0 : index
    %c0_13 = arith.constant 0 : index
    %30 = vector.load %arg4[%c0_12, %c0_13] : memref<128x256xbf16, #tpu.memory_space<vmem>>, vector<128x256xbf16>
    %cst_14 = arith.constant dense<0.000000e+00> : vector<16x256xf32>
    %31 = tpu.matmul %28, %30, %cst_14 {dimension_numbers = #tpu.dot_dimension_numbers<[1], [0], [0], [1], [0, 0, 1, 1], [], []>} : vector<16x128xbf16>, vector<128x256xbf16>, vector<16x256xf32> -> vector<16x256xf32>
    %32 = arith.addf %29, %31 : vector<16x256xf32>
    %c0_15 = arith.constant 0 : index
    %c0_16 = arith.constant 0 : index
    %33 = vector.load %arg9[%c0_15, %c0_16] : memref<16x256xf32, #tpu.memory_space<vmem>>, vector<16x256xf32>
    tpu.vector_store %arg9[%c0_15, %c0_16], %32 {strides = array<i32>} : memref<16x256xf32, #tpu.memory_space<vmem>>, vector<16x256xf32>,
    %c0_i32_17 = arith.constant 0 : i32
    %34 = arith.cmpi eq, %arg2, %c0_i32_17 : i32
    %35 = arith.extui %34 : i1 to i32
    %c0_i32_18 = arith.constant 0 : i32
    %36 = arith.cmpi ne, %35, %c0_i32_18 : i32
    scf.if %36 {
      %c0_19 = arith.constant 0 : index
      %c0_20 = arith.constant 0 : index
      %37 = vector.load %arg9[%c0_19, %c0_20] : memref<16x256xf32, #tpu.memory_space<vmem>>, vector<16x256xf32>
      %c0_21 = arith.constant 0 : index
      %c0_22 = arith.constant 0 : index
      %38 = vector.load %arg5[%c0_21, %c0_22] : memref<1x256xf32, #tpu.memory_space<vmem>>, vector<1x256xf32>
      %39 = vector.broadcast %38 : vector<1x256xf32> to vector<16x256xf32>
      %40 = arith.addf %37, %39 : vector<16x256xf32>
      %cst_23 = arith.constant 0.000000e+00 : f32
      %41 = vector.broadcast %cst_23 : f32 to vector<16x256xf32>
      %42 = arith.maximumf %40, %41 : vector<16x256xf32>
      %43 = arith.truncf %42 : vector<16x256xf32> to vector<16x256xbf16>
      %c0_24 = arith.constant 0 : index
      %c0_25 = arith.constant 0 : index
      %44 = vector.load %arg8[%c0_24, %c0_25] : memref<16x256xbf16, #tpu.memory_space<vmem>>, vector<16x256xbf16>
      tpu.vector_store %arg8[%c0_24, %c0_25], %43 {strides = array<i32>} : memref<16x256xbf16, #tpu.memory_space<vmem>>, vector<16x256xbf16>,
    } else {
    }
    return
  }
  func.func @transform_0(%arg0: i32, %arg1: i32, %arg2: i32) -> (i32, i32) {
    %c0_i32 = arith.constant 0 : i32
    return %arg0, %arg2 : i32, i32
  }
  func.func @transform_1(%arg0: i32, %arg1: i32, %arg2: i32) -> (i32, i32) {
    %c0_i32 = arith.constant 0 : i32
    return %arg2, %arg1 : i32, i32
  }
  func.func @transform_2(%arg0: i32, %arg1: i32, %arg2: i32) -> (i32, i32) {
    %c0_i32 = arith.constant 0 : i32
    %c0_i32_0 = arith.constant 0 : i32
    return %c0_i32, %arg1 : i32, i32
  }
  func.func @transform_3(%arg0: i32, %arg1: i32, %arg2: i32) -> (i32, i32) {
    %c0_i32 = arith.constant 0 : i32
    %c0_i32_0 = arith.constant 0 : i32
    %c0_i32_1 = arith.constant 0 : i32
    return %c0_i32, %c0_i32_0 : i32, i32
  }
  func.func @transform_4(%arg0: i32, %arg1: i32, %arg2: i32) -> (i32, i32) {
    %c0_i32 = arith.constant 0 : i32
    %c0_i32_0 = arith.constant 0 : i32
    %c0_i32_1 = arith.constant 0 : i32
    return %c0_i32, %c0_i32_0 : i32, i32
  }
  func.func @transform_5(%arg0: i32, %arg1: i32, %arg2: i32) -> (i32, i32) {
    %c0_i32 = arith.constant 0 : i32
    return %arg0, %arg1 : i32, i32
  }
}

module attributes {stable_mosaic.version = 11 : i64} {
  func.func @_linear_kernel(%arg0: i32, %arg1: i32, %arg2: i32, %arg3: memref<16x256xbf16, #tpu.memory_space<vmem>>, %arg4: memref<256x128xbf16, #tpu.memory_space<vmem>>, %arg5: memref<1x128xf32, #tpu.memory_space<vmem>>, %arg6: memref<16x128xf32, #tpu.memory_space<vmem>>, %arg7: memref<16x128xf32, #tpu.memory_space<vmem>>, %arg8: memref<16x128xf32, #tpu.memory_space<vmem>>) attributes {dimension_semantics = [#tpu.dimension_semantics<parallel>, #tpu.dimension_semantics<parallel>, #tpu.dimension_semantics<arbitrary>], iteration_bounds = array<i64: 1, 1, 1>, scalar_prefetch = 0 : i64, scratch_operands = 1 : i64, tpu.core_type = #tpu.core_type<tc>, window_params = [{transform_indices = @transform_0, window_bounds = array<i64: 16, 256>}, {transform_indices = @transform_1, window_bounds = array<i64: 256, 128>}, {transform_indices = @transform_2, window_bounds = array<i64: 1, 128>}, {transform_indices = @transform_3, window_bounds = array<i64: 16, 128>}, {transform_indices = @transform_4, window_bounds = array<i64: 16, 128>}]} {
    %c0_i32 = arith.constant 0 : i32
    %0 = arith.cmpi eq, %arg2, %c0_i32 : i32
    %1 = arith.extui %0 : i1 to i32
    %c0_i32_0 = arith.constant 0 : i32
    %2 = arith.cmpi ne, %1, %c0_i32_0 : i32
    scf.if %2 {
      %cst_10 = arith.constant 0.000000e+00 : f32
      %12 = vector.broadcast %cst_10 : f32 to vector<16x128xf32>
      %c0_11 = arith.constant 0 : index
      %c0_12 = arith.constant 0 : index
      %13 = vector.load %arg8[%c0_11, %c0_12] : memref<16x128xf32, #tpu.memory_space<vmem>>, vector<16x128xf32>
      tpu.vector_store %arg8[%c0_11, %c0_12], %12 {strides = array<i32>} : memref<16x128xf32, #tpu.memory_space<vmem>>, vector<16x128xf32>,
    } else {
    }
    %c0 = arith.constant 0 : index
    %c0_1 = arith.constant 0 : index
    %3 = vector.load %arg3[%c0, %c0_1] : memref<16x256xbf16, #tpu.memory_space<vmem>>, vector<16x256xbf16>
    %c0_2 = arith.constant 0 : index
    %c0_3 = arith.constant 0 : index
    %4 = vector.load %arg8[%c0_2, %c0_3] : memref<16x128xf32, #tpu.memory_space<vmem>>, vector<16x128xf32>
    %c0_4 = arith.constant 0 : index
    %c0_5 = arith.constant 0 : index
    %5 = vector.load %arg4[%c0_4, %c0_5] : memref<256x128xbf16, #tpu.memory_space<vmem>>, vector<256x128xbf16>
    %cst = arith.constant dense<0.000000e+00> : vector<16x128xf32>
    %6 = tpu.matmul %3, %5, %cst {dimension_numbers = #tpu.dot_dimension_numbers<[1], [0], [0], [1], [0, 0, 1, 1], [], []>} : vector<16x256xbf16>, vector<256x128xbf16>, vector<16x128xf32> -> vector<16x128xf32>
    %7 = arith.addf %4, %6 : vector<16x128xf32>
    %c0_6 = arith.constant 0 : index
    %c0_7 = arith.constant 0 : index
    %8 = vector.load %arg8[%c0_6, %c0_7] : memref<16x128xf32, #tpu.memory_space<vmem>>, vector<16x128xf32>
    tpu.vector_store %arg8[%c0_6, %c0_7], %7 {strides = array<i32>} : memref<16x128xf32, #tpu.memory_space<vmem>>, vector<16x128xf32>,
    %c0_i32_8 = arith.constant 0 : i32
    %9 = arith.cmpi eq, %arg2, %c0_i32_8 : i32
    %10 = arith.extui %9 : i1 to i32
    %c0_i32_9 = arith.constant 0 : i32
    %11 = arith.cmpi ne, %10, %c0_i32_9 : i32
    scf.if %11 {
      %c0_10 = arith.constant 0 : index
      %c0_11 = arith.constant 0 : index
      %12 = vector.load %arg8[%c0_10, %c0_11] : memref<16x128xf32, #tpu.memory_space<vmem>>, vector<16x128xf32>
      %c0_12 = arith.constant 0 : index
      %c0_13 = arith.constant 0 : index
      %13 = vector.load %arg5[%c0_12, %c0_13] : memref<1x128xf32, #tpu.memory_space<vmem>>, vector<1x128xf32>
      %14 = vector.broadcast %13 : vector<1x128xf32> to vector<16x128xf32>
      %15 = arith.addf %12, %14 : vector<16x128xf32>
      %c0_14 = arith.constant 0 : index
      %c0_15 = arith.constant 0 : index
      %16 = vector.load %arg6[%c0_14, %c0_15] : memref<16x128xf32, #tpu.memory_space<vmem>>, vector<16x128xf32>
      %17 = arith.addf %15, %16 : vector<16x128xf32>
      %c0_16 = arith.constant 0 : index
      %c0_17 = arith.constant 0 : index
      %18 = vector.load %arg7[%c0_16, %c0_17] : memref<16x128xf32, #tpu.memory_space<vmem>>, vector<16x128xf32>
      tpu.vector_store %arg7[%c0_16, %c0_17], %17 {strides = array<i32>} : memref<16x128xf32, #tpu.memory_space<vmem>>, vector<16x128xf32>,
    } else {
    }
    return
  }
  func.func @transform_0(%arg0: i32, %arg1: i32, %arg2: i32) -> (i32, i32) {
    %c0_i32 = arith.constant 0 : i32
    return %arg0, %arg2 : i32, i32
  }
  func.func @transform_1(%arg0: i32, %arg1: i32, %arg2: i32) -> (i32, i32) {
    %c0_i32 = arith.constant 0 : i32
    return %arg2, %arg1 : i32, i32
  }
  func.func @transform_2(%arg0: i32, %arg1: i32, %arg2: i32) -> (i32, i32) {
    %c0_i32 = arith.constant 0 : i32
    %c0_i32_0 = arith.constant 0 : i32
    return %c0_i32, %arg1 : i32, i32
  }
  func.func @transform_3(%arg0: i32, %arg1: i32, %arg2: i32) -> (i32, i32) {
    %c0_i32 = arith.constant 0 : i32
    return %arg0, %arg1 : i32, i32
  }
  func.func @transform_4(%arg0: i32, %arg1: i32, %arg2: i32) -> (i32, i32) {
    %c0_i32 = arith.constant 0 : i32
    return %arg0, %arg1 : i32, i32
  }
}

module attributes {stable_mosaic.version = 11 : i64} {
  func.func @_linear_kernel(%arg0: i32, %arg1: i32, %arg2: i32, %arg3: memref<16x128xf32, #tpu.memory_space<vmem>>, %arg4: memref<128x128xbf16, #tpu.memory_space<vmem>>, %arg5: memref<1x128xf32, #tpu.memory_space<vmem>>, %arg6: memref<16x128xf32, #tpu.memory_space<vmem>>, %arg7: memref<16x128xf32, #tpu.memory_space<vmem>>) attributes {dimension_semantics = [#tpu.dimension_semantics<parallel>, #tpu.dimension_semantics<parallel>, #tpu.dimension_semantics<arbitrary>], iteration_bounds = array<i64: 1, 1, 1>, scalar_prefetch = 0 : i64, scratch_operands = 1 : i64, tpu.core_type = #tpu.core_type<tc>, window_params = [{transform_indices = @transform_0, window_bounds = array<i64: 16, 128>}, {transform_indices = @transform_1, window_bounds = array<i64: 128, 128>}, {transform_indices = @transform_2, window_bounds = array<i64: 1, 128>}, {transform_indices = @transform_3, window_bounds = array<i64: 16, 128>}]} {
    %c0_i32 = arith.constant 0 : i32
    %0 = arith.cmpi eq, %arg2, %c0_i32 : i32
    %1 = arith.extui %0 : i1 to i32
    %c0_i32_0 = arith.constant 0 : i32
    %2 = arith.cmpi ne, %1, %c0_i32_0 : i32
    scf.if %2 {
      %cst_10 = arith.constant 0.000000e+00 : f32
      %13 = vector.broadcast %cst_10 : f32 to vector<16x128xf32>
      %c0_11 = arith.constant 0 : index
      %c0_12 = arith.constant 0 : index
      %14 = vector.load %arg7[%c0_11, %c0_12] : memref<16x128xf32, #tpu.memory_space<vmem>>, vector<16x128xf32>
      tpu.vector_store %arg7[%c0_11, %c0_12], %13 {strides = array<i32>} : memref<16x128xf32, #tpu.memory_space<vmem>>, vector<16x128xf32>,
    } else {
    }
    %c0 = arith.constant 0 : index
    %c0_1 = arith.constant 0 : index
    %3 = vector.load %arg3[%c0, %c0_1] : memref<16x128xf32, #tpu.memory_space<vmem>>, vector<16x128xf32>
    %4 = arith.truncf %3 : vector<16x128xf32> to vector<16x128xbf16>
    %c0_2 = arith.constant 0 : index
    %c0_3 = arith.constant 0 : index
    %5 = vector.load %arg7[%c0_2, %c0_3] : memref<16x128xf32, #tpu.memory_space<vmem>>, vector<16x128xf32>
    %c0_4 = arith.constant 0 : index
    %c0_5 = arith.constant 0 : index
    %6 = vector.load %arg4[%c0_4, %c0_5] : memref<128x128xbf16, #tpu.memory_space<vmem>>, vector<128x128xbf16>
    %cst = arith.constant dense<0.000000e+00> : vector<16x128xf32>
    %7 = tpu.matmul %4, %6, %cst {dimension_numbers = #tpu.dot_dimension_numbers<[1], [0], [0], [1], [0, 0, 1, 1], [], []>} : vector<16x128xbf16>, vector<128x128xbf16>, vector<16x128xf32> -> vector<16x128xf32>
    %8 = arith.addf %5, %7 : vector<16x128xf32>
    %c0_6 = arith.constant 0 : index
    %c0_7 = arith.constant 0 : index
    %9 = vector.load %arg7[%c0_6, %c0_7] : memref<16x128xf32, #tpu.memory_space<vmem>>, vector<16x128xf32>
    tpu.vector_store %arg7[%c0_6, %c0_7], %8 {strides = array<i32>} : memref<16x128xf32, #tpu.memory_space<vmem>>, vector<16x128xf32>,
    %c0_i32_8 = arith.constant 0 : i32
    %10 = arith.cmpi eq, %arg2, %c0_i32_8 : i32
    %11 = arith.extui %10 : i1 to i32
    %c0_i32_9 = arith.constant 0 : i32
    %12 = arith.cmpi ne, %11, %c0_i32_9 : i32
    scf.if %12 {
      %c0_10 = arith.constant 0 : index
      %c0_11 = arith.constant 0 : index
      %13 = vector.load %arg7[%c0_10, %c0_11] : memref<16x128xf32, #tpu.memory_space<vmem>>, vector<16x128xf32>
      %c0_12 = arith.constant 0 : index
      %c0_13 = arith.constant 0 : index
      %14 = vector.load %arg5[%c0_12, %c0_13] : memref<1x128xf32, #tpu.memory_space<vmem>>, vector<1x128xf32>
      %15 = vector.broadcast %14 : vector<1x128xf32> to vector<16x128xf32>
      %16 = arith.addf %13, %15 : vector<16x128xf32>
      %c0_14 = arith.constant 0 : index
      %c0_15 = arith.constant 0 : index
      %17 = vector.load %arg6[%c0_14, %c0_15] : memref<16x128xf32, #tpu.memory_space<vmem>>, vector<16x128xf32>
      tpu.vector_store %arg6[%c0_14, %c0_15], %16 {strides = array<i32>} : memref<16x128xf32, #tpu.memory_space<vmem>>, vector<16x128xf32>,
    } else {
    }
    return
  }
  func.func @transform_0(%arg0: i32, %arg1: i32, %arg2: i32) -> (i32, i32) {
    %c0_i32 = arith.constant 0 : i32
    return %arg0, %arg2 : i32, i32
  }
  func.func @transform_1(%arg0: i32, %arg1: i32, %arg2: i32) -> (i32, i32) {
    %c0_i32 = arith.constant 0 : i32
    return %arg2, %arg1 : i32, i32
  }
  func.func @transform_2(%arg0: i32, %arg1: i32, %arg2: i32) -> (i32, i32) {
    %c0_i32 = arith.constant 0 : i32
    %c0_i32_0 = arith.constant 0 : i32
    return %c0_i32, %arg1 : i32, i32
  }
  func.func @transform_3(%arg0: i32, %arg1: i32, %arg2: i32) -> (i32, i32) {
    %c0_i32 = arith.constant 0 : i32
    return %arg0, %arg1 : i32, i32
  }
}

</mosaic_0001>

<llo_original>
// kernel: image2smiles_forward.13
$region0: #{image2smiles_forward.13}
  #allocation0 [shape = 'u32[]', space=smem, size = 0x4, offset = 0x4, fixed_abs, tag = 'smem constant byte address 0x4 - core index']
  #allocation1 [shape = 'u32[144,128]{1,0:T(1,128)}', space=vmem, size = 0x12000, scoped, tag = 'internal scratch']
  #allocation2 [shape = 'f32[8,1]{1,0:T(8,128)}', space=vmem, size = 0x1000, scoped, tag = 'scratch operand']
  #allocation3 [shape = 'f32[8,1]{1,0:T(8,128)}', space=vmem, size = 0x1000, scoped, tag = 'scratch operand']
  #allocation4 [shape = 'f32[8,128]{1,0:T(8,128)}', space=vmem, size = 0x1000, scoped, tag = 'scratch operand']
  #allocation5 [shape = 's32[1]{0}', space=sflag, size = 0x4, scoped, tag = 'scoped memory for image2smiles_forward.13']
  #allocation6 [shape = 'u8[512]{0}', space=smem, size = 0x200, scoped, tag = 'prefetched SMEM operand 0']
  %s0 = inlined_call_operand.vmem [shape: s32[2], index: 0, kind: input, shape index: {}]
  %s1 = inlined_call_operand.vmem [shape: bf16[2,8,384], index: 1, kind: input, shape index: {}, may-alias: {1,2,3}]
  %s2 = inlined_call_operand.vmem [shape: bf16[2,8,384], index: 2, kind: input, shape index: {}, may-alias: {1,2,3}]
  %s3 = inlined_call_operand.vmem [shape: bf16[2,8,384], index: 3, kind: input, shape index: {}, may-alias: {1,2,3}]
  %s4 = inlined_call_operand.vmem [shape: bf16[2,8,128], index: 4, kind: output, shape index: {}]
  %s5 = sld [smem:[#allocation0]]
  $region57: #{image2smiles_forward.13} parent=0
    _
  %s7 = ssub.s32 1, %s5
  %s8 = scalar_select 0, %s7, %s5
  %s9 = sshll.u32 %s0, 4
  %s10 = int_to_ptr.vmem [resolvable:$true] %s9
  %12 = dma.vmem_to_smem %s10, 16, [#allocation6], [#allocation5]
  %13 = dma.done [#allocation5], 16
  %14 = sfence
  loop: start=0, step=1, limit=4
  $region2: #{image2smiles_forward.13} parent=0 // loop_pre_header
    _
  $region3: #{image2smiles_forward.13} parent=0 // loop_header
    %s16 = sphi 0, %s20
    %p17 = scmp.ge.s32.totalorder %s16, 4
    %s23 = sphi 0, %s42
    %s24 = sphi 0, %s38
    %s25 = sphi 0, %s34
    %s26 = sphi 0, %s23
    %s27 = sphi 0, %s24
    %s28 = sphi 0, %s25
    %s29 = sphi 0, %s26
    %s30 = sphi 0, %s27
    %s31 = sphi 0, %s28
    %s47 = sphi 0, %s49
    %s50 = sphi 0, %s47
    %s51 = sphi 0, %s50
    %s67 = sphi 0, %s51
    %s75 = sphi 0, %s77
    %s78 = sphi 0, %s75
    %s79 = sphi 0, %s78
    %s95 = sphi 0, %s79
    %s103 = sphi 0, %s105
    %s106 = sphi 0, %s103
    %s107 = sphi 0, %s106
    %s123 = sphi 0, %s107
    %s131 = sphi 0, %s133
    %s134 = sphi 0, %s131
    %s135 = sphi 0, %s134
    %s151 = sphi 0, %s135
  $region4: #{image2smiles_forward.13} parent=0 // loop_header_branch
    %19 = sbr.rel (%p17) target = $region8
  $region5: #{image2smiles_forward.13} parent=0 // loop_body
    %s21 = ssub.s32 %s16, 1
    %s22 = ssub.s32 %s16, 2
    %s32 = sadd.s32 1, %s25
    %p33 = scmp.ge.s32.totalorder %s32, 1
    %s34 = scalar_select %p33, 0, %s32
    %s35 = sadd.s32 1, %s24
    %s36 = scalar_select %p33, %s35, %s24
    %p37 = scmp.ge.s32.totalorder %s36, 1
    %s38 = scalar_select %p37, 0, %s36
    %s39 = sadd.s32 1, %s23
    %s40 = scalar_select %p37, %s39, %s23
    %p41 = scmp.ge.s32.totalorder %s40, 2
    %s42 = scalar_select %p41, 0, %s40
    %s43 = ssub.s32 %s23, %s42
    %s44 = ssub.s32 %s24, %s38
    %s45 = sor.u32 %s43, %s44
    %p46 = scmp.eq.s32.totalorder %s45, 0
    %s48 = sadd.s32 %s47, 1
    %s49 = scalar_select %p46, %s47, %s48
    %p52 = pneg %p46
    %p53 = scmp.eq.s32.totalorder %s16, 1
    %p54 = por %p52, %p53
    %p55 = scmp.ne.s32.totalorder %s47, %s50
    %p56 = scmp.eq.s32.totalorder %s16, 0
    %p57 = por %p55, %p56
    %p58 = scmp.ne.s32.totalorder %s47, %s50
    %p59 = scmp.eq.s32.totalorder %s21, 1
    %p60 = por %p58, %p59
    %p61 = scmp.ne.s32.totalorder %s50, %s51
    %p62 = scmp.eq.s32.totalorder %s21, 0
    %p63 = por %p61, %p62
    %p64 = scmp.ne.s32.totalorder %s50, %s51
    %p65 = scmp.eq.s32.totalorder %s22, 1
    %p66 = por %p64, %p65
    %p68 = scmp.ne.s32.totalorder %s51, %s67
    %p69 = scmp.eq.s32.totalorder %s22, 0
    %p70 = por %p68, %p69
    %s71 = ssub.s32 %s23, %s42
    %s72 = ssub.s32 %s25, %s34
    %s73 = sor.u32 %s71, %s72
    %p74 = scmp.eq.s32.totalorder %s73, 0
    %s76 = sadd.s32 %s75, 1
    %s77 = scalar_select %p74, %s75, %s76
    %p80 = pneg %p74
    %p81 = scmp.eq.s32.totalorder %s16, 1
    %p82 = por %p80, %p81
    %p83 = scmp.ne.s32.totalorder %s75, %s78
    %p84 = scmp.eq.s32.totalorder %s16, 0
    %p85 = por %p83, %p84
    %p86 = scmp.ne.s32.totalorder %s75, %s78
    %p87 = scmp.eq.s32.totalorder %s21, 1
    %p88 = por %p86, %p87
    %p89 = scmp.ne.s32.totalorder %s78, %s79
    %p90 = scmp.eq.s32.totalorder %s21, 0
    %p91 = por %p89, %p90
    %p92 = scmp.ne.s32.totalorder %s78, %s79
    %p93 = scmp.eq.s32.totalorder %s22, 1
    %p94 = por %p92, %p93
    %p96 = scmp.ne.s32.totalorder %s79, %s95
    %p97 = scmp.eq.s32.totalorder %s22, 0
    %p98 = por %p96, %p97
    %s99 = ssub.s32 %s23, %s42
    %s100 = ssub.s32 %s25, %s34
    %s101 = sor.u32 %s99, %s100
    %p102 = scmp.eq.s32.totalorder %s101, 0
    %s104 = sadd.s32 %s103, 1
    %s105 = scalar_select %p102, %s103, %s104
    %p108 = pneg %p102
    %p109 = scmp.eq.s32.totalorder %s16, 1
    %p110 = por %p108, %p109
    %p111 = scmp.ne.s32.totalorder %s103, %s106
    %p112 = scmp.eq.s32.totalorder %s16, 0
    %p113 = por %p111, %p112
    %p114 = scmp.ne.s32.totalorder %s103, %s106
    %p115 = scmp.eq.s32.totalorder %s21, 1
    %p116 = por %p114, %p115
    %p117 = scmp.ne.s32.totalorder %s106, %s107
    %p118 = scmp.eq.s32.totalorder %s21, 0
    %p119 = por %p117, %p118
    %p120 = scmp.ne.s32.totalorder %s106, %s107
    %p121 = scmp.eq.s32.totalorder %s22, 1
    %p122 = por %p120, %p121
    %p124 = scmp.ne.s32.totalorder %s107, %s123
    %p125 = scmp.eq.s32.totalorder %s22, 0
    %p126 = por %p124, %p125
    %s127 = ssub.s32 %s23, %s42
    %s128 = ssub.s32 %s24, %s38
    %s129 = sor.u32 %s127, %s128
    %p130 = scmp.eq.s32.totalorder %s129, 0
    %s132 = sadd.s32 %s131, 1
    %s133 = scalar_select %p130, %s131, %s132
    %p136 = pneg %p130
    %p137 = scmp.eq.s32.totalorder %s16, 1
    %p138 = por %p136, %p137
    %p139 = scmp.ne.s32.totalorder %s131, %s134
    %p140 = scmp.eq.s32.totalorder %s16, 0
    %p141 = por %p139, %p140
    %p142 = scmp.ne.s32.totalorder %s131, %s134
    %p143 = scmp.eq.s32.totalorder %s21, 1
    %p144 = por %p142, %p143
    %p145 = scmp.ne.s32.totalorder %s134, %s135
    %p146 = scmp.eq.s32.totalorder %s21, 0
    %p147 = por %p145, %p146
    %p148 = scmp.ne.s32.totalorder %s134, %s135
    %p149 = scmp.eq.s32.totalorder %s22, 1
    %p150 = por %p148, %p149
    %p152 = scmp.ne.s32.totalorder %s135, %s151
    %p153 = scmp.eq.s32.totalorder %s22, 0
    %p154 = por %p152, %p153
    %p155 = scmp.le.s32.totalorder 1, %s16
    %p156 = scmp.lt.s32.totalorder %s16, 3
    %p157 = pnand %p155, %p156
    %p158 = pneg %p157
    // Predicated region
    $region9: #{image2smiles_forward.13} parent=5 // pred_check
      _
    $region10: #{image2smiles_forward.13} parent=5 // pred_check_branch
      %160 = sbr.rel (%p157) target = $region12
    $region11: #{image2smiles_forward.13} parent=5 // pred_region
      %s161 = ssub.s32 %s16, 1
    $region12: #{image2smiles_forward.13} parent=5 // pred_fallthru
      _
    %p162 = scmp.lt.s32.totalorder %s16, 2
    // Predicated region
    $region13: #{image2smiles_forward.13} parent=5 // pred_check
      %p163 = pneg %p162
    $region14: #{image2smiles_forward.13} parent=5 // pred_check_branch
      %165 = sbr.rel (%p163) target = $region16
    $region15: #{image2smiles_forward.13} parent=5 // pred_region
      // Predicated region
      $region17: #{image2smiles_forward.13} parent=15 // pred_check
        %p166 = pneg %p57
      $region18: #{image2smiles_forward.13} parent=15 // pred_check_branch
        %168 = sbr.rel (%p166) target = $region20
      $region19: #{image2smiles_forward.13} parent=15 // pred_region
        %p169 = scmp.lt.s32.totalorder %s23, 1
        %s170 = scalar_select %p169, %s23, 1
        %p171 = scmp.lt.s32.totalorder %s24, 0
        %s172 = scalar_select %p171, %s24, 0
        %s173 = smul.addr %s172, 3
        %s174 = smul.addr %s170, 3
        %s175 = sadd.s32 %s173, %s174
        %s176 = smul.addr %s175, 4
        %s177 = scalar_lea.vmem %s1, %s176
      $region20: #{image2smiles_forward.13} parent=15 // pred_fallthru
        _
      // Predicated region
      $region21: #{image2smiles_forward.13} parent=15 // pred_check
        %p178 = pneg %p85
      $region22: #{image2smiles_forward.13} parent=15 // pred_check_branch
        %180 = sbr.rel (%p178) target = $region24
      $region23: #{image2smiles_forward.13} parent=15 // pred_region
        %p181 = scmp.lt.s32.totalorder %s23, 1
        %s182 = scalar_select %p181, %s23, 1
        %p183 = scmp.lt.s32.totalorder %s25, 0
        %s184 = scalar_select %p183, %s25, 0
        %s185 = smul.addr %s184, 3
        %s186 = sadd.s32 1, %s185
        %s187 = smul.addr %s182, 3
        %s188 = sadd.s32 %s186, %s187
        %s189 = smul.addr %s188, 4
        %s190 = scalar_lea.vmem %s2, %s189
      $region24: #{image2smiles_forward.13} parent=15 // pred_fallthru
        _
      // Predicated region
      $region25: #{image2smiles_forward.13} parent=15 // pred_check
        %p191 = pneg %p113
      $region26: #{image2smiles_forward.13} parent=15 // pred_check_branch
        %193 = sbr.rel (%p191) target = $region28
      $region27: #{image2smiles_forward.13} parent=15 // pred_region
        %p194 = scmp.lt.s32.totalorder %s23, 1
        %s195 = scalar_select %p194, %s23, 1
        %p196 = scmp.lt.s32.totalorder %s25, 0
        %s197 = scalar_select %p196, %s25, 0
        %s198 = smul.addr %s197, 3
        %s199 = sadd.s32 2, %s198
        %s200 = smul.addr %s195, 3
        %s201 = sadd.s32 %s199, %s200
        %s202 = smul.addr %s201, 4
        %s203 = scalar_lea.vmem %s3, %s202
      $region28: #{image2smiles_forward.13} parent=15 // pred_fallthru
        _
    $region16: #{image2smiles_forward.13} parent=5 // pred_fallthru
      _
    %p204 = scmp.le.s32.totalorder 1, %s16
    %p205 = scmp.lt.s32.totalorder %s16, 3
    %p206 = pnand %p204, %p205
    %p207 = pneg %p206
    // Predicated region
    $region29: #{image2smiles_forward.13} parent=5 // pred_check
      _
    $region30: #{image2smiles_forward.13} parent=5 // pred_check_branch
      %209 = sbr.rel (%p206) target = $region32
    $region31: #{image2smiles_forward.13} parent=5 // pred_region
      %s210 = ssub.s32 %s16, 1
      %p211 = scmp.lt.s32.totalorder %s26, 1
      %s212 = scalar_select %p211, %s26, 1
      %p213 = scmp.lt.s32.totalorder %s27, 0
      %s214 = scalar_select %p213, %s27, 0
      %s215 = smul.addr %s214, 3
      %s216 = smul.addr %s212, 3
      %s217 = sadd.s32 %s215, %s216
      %s218 = smul.addr %s217, 4
      %s219 = scalar_lea.vmem %s1, %s218
      %p220 = pneg %p63
      %p221 = pneg %p60
      %p222 = scmp.lt.s32.totalorder %s26, 1
      %s223 = scalar_select %p222, %s26, 1
      %p224 = scmp.lt.s32.totalorder %s28, 0
      %s225 = scalar_select %p224, %s28, 0
      %s226 = smul.addr %s225, 3
      %s227 = sadd.s32 1, %s226
      %s228 = smul.addr %s223, 3
      %s229 = sadd.s32 %s227, %s228
      %s230 = smul.addr %s229, 4
      %s231 = scalar_lea.vmem %s2, %s230
      %p232 = pneg %p91
      %p233 = pneg %p88
      %p234 = scmp.lt.s32.totalorder %s26, 1
      %s235 = scalar_select %p234, %s26, 1
      %p236 = scmp.lt.s32.totalorder %s28, 0
      %s237 = scalar_select %p236, %s28, 0
      %s238 = smul.addr %s237, 3
      %s239 = sadd.s32 2, %s238
      %s240 = smul.addr %s235, 3
      %s241 = sadd.s32 %s239, %s240
      %s242 = smul.addr %s241, 4
      %s243 = scalar_lea.vmem %s3, %s242
      %p244 = pneg %p119
      %p245 = pneg %p116
      %p246 = pneg %p147
      %p247 = pneg %p144
      %p248 = scmp.lt.s32.totalorder %s26, 1
      %s249 = scalar_select %p248, %s26, 1
      %p250 = scmp.lt.s32.totalorder %s27, 0
      %s251 = scalar_select %p250, %s27, 0
      %s252 = sadd.s32 %s251, %s249
      %s253 = smul.addr %s252, 4
      %s254 = scalar_lea.vmem %s4, %s253
      %p255 = scmp.lt.s32.totalorder %s26, 1
      %s256 = scalar_select %p255, %s26, 1
      %p257 = scmp.lt.s32.totalorder %s27, 0
      %s258 = scalar_select %p257, %s27, 0
      %s259 = smul.addr %s258, 3
      %s260 = smul.addr %s256, 3
      %s261 = sadd.s32 %s259, %s260
      %s262 = smul.addr %s261, 4
      %s263 = scalar_lea.vmem %s1, %s262
      %p264 = scmp.lt.s32.totalorder %s26, 1
      %s265 = scalar_select %p264, %s26, 1
      %p266 = scmp.lt.s32.totalorder %s28, 0
      %s267 = scalar_select %p266, %s28, 0
      %s268 = smul.addr %s267, 3
      %s269 = sadd.s32 1, %s268
      %s270 = smul.addr %s265, 3
      %s271 = sadd.s32 %s269, %s270
      %s272 = smul.addr %s271, 4
      %s273 = scalar_lea.vmem %s2, %s272
      %p274 = scmp.lt.s32.totalorder %s26, 1
      %s275 = scalar_select %p274, %s26, 1
      %p276 = scmp.lt.s32.totalorder %s28, 0
      %s277 = scalar_select %p276, %s28, 0
      %s278 = smul.addr %s277, 3
      %s279 = sadd.s32 2, %s278
      %s280 = smul.addr %s275, 3
      %s281 = sadd.s32 %s279, %s280
      %s282 = smul.addr %s281, 4
      %s283 = scalar_lea.vmem %s3, %s282
      %p284 = scmp.lt.s32.totalorder %s26, 1
      %s285 = scalar_select %p284, %s26, 1
      %p286 = scmp.lt.s32.totalorder %s27, 0
      %s287 = scalar_select %p286, %s27, 0
      %s288 = sadd.s32 %s287, %s285
      %s289 = smul.addr %s288, 4
      %s290 = scalar_lea.vmem %s4, %s289
      %p292 = scmp.eq.s32.totalorder %s28, 0
      // Predicated region
      $region33: #{image2smiles_forward.13} parent=31 // pred_check
        %p293 = pneg %p292
      $region34: #{image2smiles_forward.13} parent=31 // pred_check_branch
        %295 = sbr.rel (%p293) target = $region36
      $region35: #{image2smiles_forward.13} parent=31 // pred_region
        %vm296 = vcmask 7168
        %297 = vst.msk [vmem:[#allocation2] sm:$0xff] %vm296, -inf
        %298 = vst.msk [vmem:[#allocation3] sm:$0xff] %vm296, 0.0
        %299 = vst [vmem:[#allocation4] sm:$0xff] 0.0
      $region36: #{image2smiles_forward.13} parent=31 // pred_fallthru
        _
      %s300 = smul.u32 %s28, 8
      %s301 = smul.u32 %s27, 8
      %s302 = sadd.s32 %s301, 7
      %p303 = scmp.le.s32.totalorder %s300, %s302
      // Predicated region
      $region37: #{image2smiles_forward.13} parent=31 // pred_check
        %p304 = pneg %p303
      $region38: #{image2smiles_forward.13} parent=31 // pred_check_branch
        %306 = sbr.rel (%p304) target = $region40
      $region39: #{image2smiles_forward.13} parent=31 // pred_region
        %v307 = vld [vmem:[%s263] sm:$0xf]
        %v308 = vunpack.c.l.bf16 %v307
        %v309 = vld [vmem:[%s273] sm:$0xf]
        %v310 = vunpack.c.l.bf16 %v309
        %v311 = vld [vmem:[%s283] sm:$0xf]
        %312 = vmatprep.subr.mxu0 0.0
        %313 = vmatpush1.xpose.msra.mxu0 %v310
        %314 = vmatprep.subr.mxu0 0.0
        %315 = vmatpush1.xpose.msra.mxu0 0.0
        %316 = vmatprep.subr.mxu0 0.0
        %317 = vmatpush1.xpose.msra.mxu0 0.0
        %318 = vmatprep.subr.mxu0 0.0
        %319 = vmatpush1.xpose.msra.mxu0 0.0
        %320 = vmatprep.subr.mxu0 0.0
        %321 = vmatpush1.xpose.msra.mxu0 0.0
        %322 = vmatprep.subr.mxu0 0.0
        %323 = vmatpush1.xpose.msra.mxu0 0.0
        %324 = vmatprep.subr.mxu0 0.0
        %325 = vmatpush1.xpose.msra.mxu0 0.0
        %326 = vmatprep.subr.mxu0 0.0
        %327 = vmatpush1.xpose.msra.mxu0 0.0
        %328 = vmatprep.subr.mxu0 0.0
        %329 = vmatpush1.xpose.msra.mxu0 0.0
        %330 = vmatprep.subr.mxu0 0.0
        %331 = vmatpush1.xpose.msra.mxu0 0.0
        %332 = vmatprep.subr.mxu0 0.0
        %333 = vmatpush1.xpose.msra.mxu0 0.0
        %334 = vmatprep.subr.mxu0 0.0
        %335 = vmatpush1.xpose.msra.mxu0 0.0
        %336 = vmatprep.subr.mxu0 0.0
        %337 = vmatpush1.xpose.msra.mxu0 0.0
        %338 = vmatprep.subr.mxu0 0.0
        %339 = vmatpush1.xpose.msra.mxu0 0.0
        %340 = vmatprep.subr.mxu0 0.0
        %341 = vmatpush1.xpose.msra.mxu0 0.0
        %342 = vmatprep.subr.mxu0 0.0
        %343 = vmatpush1.xpose.msra.mxu0 0.0
        %344 = vmatprep.subr.mxu0 0.0
        %345 = vmatpush1.xpose.msra.mxu0 0.0
        %346 = vmatprep.subr.mxu0 0.0
        %347 = vmatpush1.xpose.msra.mxu0 0.0
        %348 = vmatprep.subr.mxu0 0.0
        %349 = vmatpush1.xpose.msra.mxu0 0.0
        %350 = vmatprep.subr.mxu0 0.0
        %351 = vmatpush1.xpose.msra.mxu0 0.0
        %352 = vmatprep.subr.mxu0 0.0
        %353 = vmatpush1.xpose.msra.mxu0 0.0
        %354 = vmatprep.subr.mxu0 0.0
        %355 = vmatpush1.xpose.msra.mxu0 0.0
        %356 = vmatprep.subr.mxu0 0.0
        %357 = vmatpush1.xpose.msra.mxu0 0.0
        %358 = vmatprep.subr.mxu0 0.0
        %359 = vmatpush1.xpose.msra.mxu0 0.0
        %360 = vmatprep.subr.mxu0 0.0
        %361 = vmatpush1.xpose.msra.mxu0 0.0
        %362 = vmatprep.subr.mxu0 0.0
        %363 = vmatpush1.xpose.msra.mxu0 0.0
        %364 = vmatprep.subr.mxu0 0.0
        %365 = vmatpush1.xpose.msra.mxu0 0.0
        %366 = vmatprep.subr.mxu0 0.0
        %367 = vmatpush1.xpose.msra.mxu0 0.0
        %368 = vmatprep.subr.mxu0 0.0
        %369 = vmatpush1.xpose.msra.mxu0 0.0
        %370 = vmatprep.subr.mxu0 0.0
        %371 = vmatpush1.xpose.msra.mxu0 0.0
        %372 = vmatprep.subr.mxu0 0.0
        %373 = vmatpush1.xpose.msra.mxu0 0.0
        %374 = vmatprep.subr.mxu0 0.0
        %375 = vmatpush1.xpose.msra.mxu0 0.0
        %376 = vmatprep.mubr.f32.mxu0 0.0
        %377 = vmatmul.mubr.f32.gmra.mrb[0].mxu0 %v308
        %v378 = vpop.f32.mrb[0].mxu0
        %v379 = vadd.f32 0.0, %v378
        %v380 = vpop.f32.mrb[0].mxu0
        %381 = vdwg.mxu0
        %v382 = vlaneseq
        %v383 = vand.u32 %v382, 127
        %v384 = vstv %s300
        %v385 = vadd.s32 %v383, %v384
        %v386 = vlaneseq
        %v387 = vshrl.u32 %v386, 7
        %v388 = vstv %s301
        %v389 = vadd.s32 %v387, %v388
        %vm390 = vcmp.ge.s32.totalorder %v389, %v385
        %v391 = vsel %vm390, %v379, -1e+30
        %s392 = sld [smem:[#allocation6 + %s26]]
        %v393 = vstv %s392
        %vm394 = vcmp.lt.s32.totalorder %v385, %v393
        %v395 = vsel %vm394, %v391, -1e+30
        %v396 = vld [vmem:[#allocation2] sm:$0xff]
        %vm397 = vcmask 64512
        %v398 = vsel %vm397, %v395, -inf
        %399 = vmax.xlane.f32.xlu0 %v398
        %v400 = vpop.xlane.xlu0 %399
        %v401 = vmax.f32 %v396, %v400
        %v402 = vsub.f32 %v396, %v401
        %v403 = vmul.f32 %v402, 1.442695
        %v404 = vpow.pop %v403
        %406 = vset.pattern.permute.xlu0 0
        %407 = vperm.xlu0 %406, %v401
        %v408 = vpop.permute.xlu0 %407
        %v410 = vsub.f32 %v395, %v408
        %v411 = vmul.f32 %v410, 1.442695
        %v412 = vpow.pop %v411
        %v413 = vld [vmem:[#allocation3] sm:$0xff]
        %v414 = vmul.f32 %v404, %v413
        %v415 = vsel %vm397, %v412, 0.0
        %416 = vadd.xlane.f32.xlu0 %v415
        %v417 = vpop.xlane.xlu0 %416
        %v418 = vadd.f32 %v414, %v417
        %vm419 = vcmask 7168
        %420 = vst.msk [vmem:[#allocation3] sm:$0xff] %vm419, %v418
        %v421 = vld [vmem:[#allocation4] sm:$0xff]
        %423 = vset.pattern.permute.xlu0 0
        %424 = vperm.xlu0 %423, %v404
        %v425 = vpop.permute.xlu0 %424
        %v427 = vmul.f32 %v425, %v421
        %v428 = vpack.c.bf16 %v412, %v412
        %v430 = vsel %vm397, %v428, 0
        %vm432 = vcmask 1043456
        %v434 = vsel %vm432, %v311, 0
        %436 = vmatprep.subr.bf16.mxu0 0
        %437 = vmatpush1.bf16.msra.mxu0 %v434
        %438 = vmatprep.subr.bf16.mxu0 0
        %439 = vmatpush1.bf16.msra.mxu0 0
        %440 = vmatprep.subr.bf16.mxu0 0
        %441 = vmatpush1.bf16.msra.mxu0 0
        %442 = vmatprep.subr.bf16.mxu0 0
        %443 = vmatpush1.bf16.msra.mxu0 0
        %444 = vmatprep.subr.bf16.mxu0 0
        %445 = vmatpush1.bf16.msra.mxu0 0
        %446 = vmatprep.subr.bf16.mxu0 0
        %447 = vmatpush1.bf16.msra.mxu0 0
        %448 = vmatprep.subr.bf16.mxu0 0
        %449 = vmatpush1.bf16.msra.mxu0 0
        %450 = vmatprep.subr.bf16.mxu0 0
        %451 = vmatpush1.bf16.msra.mxu0 0
        %452 = vmatprep.subr.bf16.mxu0 0
        %453 = vmatpush1.bf16.msra.mxu0 0
        %454 = vmatprep.subr.bf16.mxu0 0
        %455 = vmatpush1.bf16.msra.mxu0 0
        %456 = vmatprep.subr.bf16.mxu0 0
        %457 = vmatpush1.bf16.msra.mxu0 0
        %458 = vmatprep.subr.bf16.mxu0 0
        %459 = vmatpush1.bf16.msra.mxu0 0
        %460 = vmatprep.subr.bf16.mxu0 0
        %461 = vmatpush1.bf16.msra.mxu0 0
        %462 = vmatprep.subr.bf16.mxu0 0
        %463 = vmatpush1.bf16.msra.mxu0 0
        %464 = vmatprep.subr.bf16.mxu0 0
        %465 = vmatpush1.bf16.msra.mxu0 0
        %466 = vmatprep.subr.bf16.mxu0 0
        %467 = vmatpush1.bf16.msra.mxu0 0
        %468 = vmatprep.mubr.bf16.mxu0 0
        %469 = vmatmul.mubr.bf16.gmra.mrb[0].mxu0 %v430
        %v470 = vpop.f32.mrb[0].mxu0
        %v471 = vadd.f32 0.0, %v470
        %v472 = vpop.f32.mrb[0].mxu0
        %v473 = vpop.f32.mrb[0].mxu0
        %v474 = vpop.f32.mrb[0].mxu0
        %475 = vdwg.mxu0
        %v476 = vadd.f32 %v427, %v471
        %477 = vst [vmem:[#allocation4] sm:$0xff] %v476
        %478 = vst.msk [vmem:[#allocation2] sm:$0xff] %vm419, %v401
      $region40: #{image2smiles_forward.13} parent=31 // pred_fallthru
        _
      // Predicated region
      $region41: #{image2smiles_forward.13} parent=31 // pred_check
        %p479 = pneg %p292
      $region42: #{image2smiles_forward.13} parent=31 // pred_check_branch
        %481 = sbr.rel (%p479) target = $region44
      $region43: #{image2smiles_forward.13} parent=31 // pred_region
        %v482 = vld [vmem:[#allocation3] sm:$0xff]
        %v483 = vrcp.pop %v482
        %v484 = vld [vmem:[#allocation4] sm:$0xff]
        %486 = vset.pattern.permute.xlu0 0
        %487 = vperm.xlu0 %486, %v483
        %v488 = vpop.permute.xlu0 %487
        %v490 = vmul.f32 %v484, %v488
        %v491 = vpack.c.bf16 %v490, %v490
        %492 = vst [vmem:[%s290] sm:$0xf] %v491
      $region44: #{image2smiles_forward.13} parent=31 // pred_fallthru
        _
      %p493 = scmp.lt.s32.totalorder %s26, 1
      %s494 = scalar_select %p493, %s26, 1
      %p495 = scmp.lt.s32.totalorder %s27, 0
      %s496 = scalar_select %p495, %s27, 0
      %s497 = sadd.s32 %s496, %s494
      %s498 = smul.addr %s497, 4
      %s499 = scalar_lea.vmem %s4, %s498
      // Predicated region
      $region45: #{image2smiles_forward.13} parent=31 // pred_check
        %p500 = pneg %p144
      $region46: #{image2smiles_forward.13} parent=31 // pred_check_branch
        %502 = sbr.rel (%p500) target = $region48
      $region47: #{image2smiles_forward.13} parent=31 // pred_region
        _
      $region48: #{image2smiles_forward.13} parent=31 // pred_fallthru
        _
    $region32: #{image2smiles_forward.13} parent=5 // pred_fallthru
      _
    %p503 = scmp.le.s32.totalorder 2, %s16
    // Predicated region
    $region49: #{image2smiles_forward.13} parent=5 // pred_check
      %p504 = pneg %p503
    $region50: #{image2smiles_forward.13} parent=5 // pred_check_branch
      %506 = sbr.rel (%p504) target = $region52
    $region51: #{image2smiles_forward.13} parent=5 // pred_region
      %s507 = ssub.s32 %s16, 2
      // Predicated region
      $region53: #{image2smiles_forward.13} parent=51 // pred_check
        %p508 = pneg %p150
      $region54: #{image2smiles_forward.13} parent=51 // pred_check_branch
        %510 = sbr.rel (%p508) target = $region56
      $region55: #{image2smiles_forward.13} parent=51 // pred_region
        %p511 = scmp.lt.s32.totalorder %s29, 1
        %s512 = scalar_select %p511, %s29, 1
        %p513 = scmp.lt.s32.totalorder %s30, 0
        %s514 = scalar_select %p513, %s30, 0
        %s515 = sadd.s32 %s514, %s512
        %s516 = smul.addr %s515, 4
        %s517 = scalar_lea.vmem %s4, %s516
      $region56: #{image2smiles_forward.13} parent=51 // pred_fallthru
        _
    $region52: #{image2smiles_forward.13} parent=5 // pred_fallthru
      _
  $region6: #{image2smiles_forward.13} parent=0 // loop_footer
    %s20 = sadd.s32 1, %s16
  $region7: #{image2smiles_forward.13} parent=0 // loop_footer_branch
    %15 = sbr.rel target = $region3
  $region8: #{image2smiles_forward.13} parent=0 // loop_exit
    _

// kernel: image2smiles_forward.15
$region0: #{image2smiles_forward.15}
  #allocation0 [shape = 'u32[]', space=smem, size = 0x4, offset = 0x4, fixed_abs, tag = 'smem constant byte address 0x4 - core index']
  #allocation1 [shape = 'u32[144,128]{1,0:T(1,128)}', space=vmem, size = 0x12000, scoped, tag = 'internal scratch']
  #allocation2 [shape = 'f32[16,128]{1,0:T(8,128)}', space=vmem, size = 0x2000, scoped, tag = 'scratch operand']
  %s0 = inlined_call_operand.vmem [shape: f32[16,128], index: 0, kind: input, shape index: {}]
  %s1 = inlined_call_operand.vmem [shape: bf16[128,128], index: 1, kind: input, shape index: {}]
  %s2 = inlined_call_operand.vmem [shape: f32[1,128], index: 2, kind: input, shape index: {}, may-alias: {2,4}]
  %s3 = inlined_call_operand.vmem [shape: f32[1,128], index: 3, kind: input, shape index: {}]
  %s4 = inlined_call_operand.vmem [shape: f32[1,128], index: 4, kind: input, shape index: {}, may-alias: {2,4}]
  %s5 = inlined_call_operand.vmem [shape: bf16[16,128], index: 5, kind: output, shape index: {}]
  %s6 = sld [smem:[#allocation0]]
  $region38: #{image2smiles_forward.15} parent=0
    _
  %s8 = ssub.s32 1, %s6
  %s9 = scalar_select 0, %s8, %s6
  // Predicated region
  $region2: #{image2smiles_forward.15} parent=0 // pred_check
    _
  $region3: #{image2smiles_forward.15} parent=0 // pred_check_branch
    %11 = sbr.rel (0) target = $region5
  $region4: #{image2smiles_forward.15} parent=0 // pred_region
    _
  $region5: #{image2smiles_forward.15} parent=0 // pred_fallthru
    _
  // Predicated region
  $region6: #{image2smiles_forward.15} parent=0 // pred_check
    _
  $region7: #{image2smiles_forward.15} parent=0 // pred_check_branch
    %13 = sbr.rel (0) target = $region9
  $region8: #{image2smiles_forward.15} parent=0 // pred_region
    _
  $region9: #{image2smiles_forward.15} parent=0 // pred_fallthru
    _
  // Predicated region
  $region10: #{image2smiles_forward.15} parent=0 // pred_check
    _
  $region11: #{image2smiles_forward.15} parent=0 // pred_check_branch
    %15 = sbr.rel (0) target = $region13
  $region12: #{image2smiles_forward.15} parent=0 // pred_region
    _
  $region13: #{image2smiles_forward.15} parent=0 // pred_fallthru
    _
  // Predicated region
  $region14: #{image2smiles_forward.15} parent=0 // pred_check
    _
  $region15: #{image2smiles_forward.15} parent=0 // pred_check_branch
    %17 = sbr.rel (0) target = $region17
  $region16: #{image2smiles_forward.15} parent=0 // pred_region
    _
  $region17: #{image2smiles_forward.15} parent=0 // pred_fallthru
    _
  // Predicated region
  $region18: #{image2smiles_forward.15} parent=0 // pred_check
    _
  $region19: #{image2smiles_forward.15} parent=0 // pred_check_branch
    %19 = sbr.rel (0) target = $region21
  $region20: #{image2smiles_forward.15} parent=0 // pred_region
    _
  $region21: #{image2smiles_forward.15} parent=0 // pred_fallthru
    _
  %p21 = scmp.eq.s32.totalorder 0, 0
  // Predicated region
  $region22: #{image2smiles_forward.15} parent=0 // pred_check
    %p22 = pneg %p21
  $region23: #{image2smiles_forward.15} parent=0 // pred_check_branch
    %24 = sbr.rel (%p22) target = $region25
  $region24: #{image2smiles_forward.15} parent=0 // pred_region
    %25 = vst [vmem:[#allocation2] sm:$0xff] 0.0
    %26 = vst [vmem:[#allocation2 + $0x8] sm:$0xff] 0.0
  $region25: #{image2smiles_forward.15} parent=0 // pred_fallthru
    _
  %v27 = vld [vmem:[%s0] sm:$0xff]
  %v28 = vld [vmem:[%s0 + $0x8] sm:$0xff]
  %29 = vadd.xlane.f32.xlu0 %v27
  %v30 = vpop.xlane.xlu0 %29
  %31 = vadd.xlane.f32.xlu0 %v28
  %v32 = vpop.xlane.xlu0 %31
  %v33 = vrcp.pop 128.0
  %v34 = vmul.f32 %v30, %v33
  %v35 = vmul.f32 %v32, %v33
  %v36 = vsub.f32 %v27, %v34
  %v37 = vsub.f32 %v28, %v35
  %v38 = vmul.f32 %v36, %v36
  %v39 = vmul.f32 %v37, %v37
  %40 = vadd.xlane.f32.xlu0 %v38
  %v41 = vpop.xlane.xlu0 %40
  %42 = vadd.xlane.f32.xlu0 %v39
  %v43 = vpop.xlane.xlu0 %42
  %v44 = vmul.f32 %v41, %v33
  %v45 = vmul.f32 %v43, %v33
  %v46 = vadd.f32 %v44, 1e-05
  %v47 = vadd.f32 %v45, 1e-05
  %v48 = vrsqrt.pop %v46
  %v49 = vrsqrt.pop %v47
  %v50 = vmul.f32 %v36, %v48
  %v51 = vmul.f32 %v37, %v49
  %v52 = vld [vmem:[%s3] sm:$0x1]
  %v54 = vlaneseq
  %v55 = vshrl.u32 %v54, 7
  %v56 = vsub.s32 0, %v55
  %v57 = vrot.slane %v52, %v56
  %v59 = vmul.f32 %v50, %v57
  %v60 = vmul.f32 %v51, %v57
  %v61 = vld [vmem:[%s4] sm:$0x1]
  %v63 = vlaneseq
  %v64 = vshrl.u32 %v63, 7
  %v65 = vsub.s32 0, %v64
  %v66 = vrot.slane %v61, %v65
  %v68 = vadd.f32 %v59, %v66
  %v69 = vadd.f32 %v60, %v66
  %v70 = vpack.c.bf16 %v69, %v68
  %v71 = vld [vmem:[#allocation2] sm:$0xff]
  %v72 = vld [vmem:[#allocation2 + $0x8] sm:$0xff]
  %v73 = vld [vmem:[%s1] sm:$0xf]
  %v74 = vld [vmem:[%s1 + $0x4] sm:$0xf]
  %v75 = vld [vmem:[%s1 + $0x8] sm:$0xf]
  %v76 = vld [vmem:[%s1 + $0xc] sm:$0xf]
  %v77 = vld [vmem:[%s1 + $0x10] sm:$0xf]
  %v78 = vld [vmem:[%s1 + $0x14] sm:$0xf]
  %v79 = vld [vmem:[%s1 + $0x18] sm:$0xf]
  %v80 = vld [vmem:[%s1 + $0x1c] sm:$0xf]
  %v81 = vld [vmem:[%s1 + $0x20] sm:$0xf]
  %v82 = vld [vmem:[%s1 + $0x24] sm:$0xf]
  %v83 = vld [vmem:[%s1 + $0x28] sm:$0xf]
  %v84 = vld [vmem:[%s1 + $0x2c] sm:$0xf]
  %v85 = vld [vmem:[%s1 + $0x30] sm:$0xf]
  %v86 = vld [vmem:[%s1 + $0x34] sm:$0xf]
  %v87 = vld [vmem:[%s1 + $0x38] sm:$0xf]
  %v88 = vld [vmem:[%s1 + $0x3c] sm:$0xf]
  %v105 = vunpack.c.l.b16 %v73
  %v106 = vunpack.c.l.b16 %v74
  %v107 = vunpack.c.l.b16 %v75
  %v108 = vunpack.c.l.b16 %v76
  %v109 = vunpack.c.l.b16 %v77
  %v110 = vunpack.c.l.b16 %v78
  %v111 = vunpack.c.l.b16 %v79
  %v112 = vunpack.c.l.b16 %v80
  %v113 = vunpack.c.l.b16 %v81
  %v114 = vunpack.c.l.b16 %v82
  %v115 = vunpack.c.l.b16 %v83
  %v116 = vunpack.c.l.b16 %v84
  %v117 = vunpack.c.l.b16 %v85
  %v118 = vunpack.c.l.b16 %v86
  %v119 = vunpack.c.l.b16 %v87
  %v120 = vunpack.c.l.b16 %v88
  %v121 = vpack.c.b16 %v106, %v105
  %v122 = vpack.c.b16 %v108, %v107
  %v123 = vpack.c.b16 %v110, %v109
  %v124 = vpack.c.b16 %v112, %v111
  %v125 = vpack.c.b16 %v114, %v113
  %v126 = vpack.c.b16 %v116, %v115
  %v127 = vpack.c.b16 %v118, %v117
  %v128 = vpack.c.b16 %v120, %v119
  %137 = vmatprep.subr.bf16.mxu0 0
  %138 = vmatpush1.bf16.msra.mxu0 %v121
  %139 = vmatprep.subr.bf16.mxu0 0
  %140 = vmatpush1.bf16.msra.mxu0 %v122
  %141 = vmatprep.subr.bf16.mxu0 0
  %142 = vmatpush1.bf16.msra.mxu0 %v123
  %143 = vmatprep.subr.bf16.mxu0 0
  %144 = vmatpush1.bf16.msra.mxu0 %v124
  %145 = vmatprep.subr.bf16.mxu0 0
  %146 = vmatpush1.bf16.msra.mxu0 %v125
  %147 = vmatprep.subr.bf16.mxu0 0
  %148 = vmatpush1.bf16.msra.mxu0 %v126
  %149 = vmatprep.subr.bf16.mxu0 0
  %150 = vmatpush1.bf16.msra.mxu0 %v127
  %151 = vmatprep.subr.bf16.mxu0 0
  %152 = vmatpush1.bf16.msra.mxu0 %v128
  %153 = vmatprep.subr.bf16.mxu0 0
  %154 = vmatpush1.bf16.msra.mxu0 0
  %155 = vmatprep.subr.bf16.mxu0 0
  %156 = vmatpush1.bf16.msra.mxu0 0
  %157 = vmatprep.subr.bf16.mxu0 0
  %158 = vmatpush1.bf16.msra.mxu0 0
  %159 = vmatprep.subr.bf16.mxu0 0
  %160 = vmatpush1.bf16.msra.mxu0 0
  %161 = vmatprep.subr.bf16.mxu0 0
  %162 = vmatpush1.bf16.msra.mxu0 0
  %163 = vmatprep.subr.bf16.mxu0 0
  %164 = vmatpush1.bf16.msra.mxu0 0
  %165 = vmatprep.subr.bf16.mxu0 0
  %166 = vmatpush1.bf16.msra.mxu0 0
  %167 = vmatprep.subr.bf16.mxu0 0
  %168 = vmatpush1.bf16.msra.mxu0 0
  %169 = vmatprep.mubr.bf16.mxu0 0
  %170 = vmatmul.mubr.bf16.gmra.mrb[0].mxu0 %v70
  %v171 = vpop.f32.mrb[0].mxu0
  %v172 = vadd.f32 0.0, %v171
  %v173 = vpop.f32.mrb[0].mxu0
  %v174 = vpop.f32.mrb[0].mxu0
  %v175 = vadd.f32 0.0, %v174
  %v176 = vpop.f32.mrb[0].mxu0
  %177 = vdwg.mxu0
  %v178 = vadd.f32 %v71, %v172
  %v179 = vadd.f32 %v72, %v175
  %180 = vst [vmem:[#allocation2] sm:$0xff] %v178
  %181 = vst [vmem:[#allocation2 + $0x8] sm:$0xff] %v179
  // Predicated region
  $region26: #{image2smiles_forward.15} parent=0 // pred_check
    %p182 = pneg %p21
  $region27: #{image2smiles_forward.15} parent=0 // pred_check_branch
    %184 = sbr.rel (%p182) target = $region29
  $region28: #{image2smiles_forward.15} parent=0 // pred_region
    %v185 = vld [vmem:[#allocation2] sm:$0xff]
    %v186 = vld [vmem:[#allocation2 + $0x8] sm:$0xff]
    %v187 = vld [vmem:[%s2] sm:$0x1]
    %v189 = vlaneseq
    %v190 = vshrl.u32 %v189, 7
    %v191 = vsub.s32 0, %v190
    %v192 = vrot.slane %v187, %v191
    %v194 = vadd.f32 %v185, %v192
    %v195 = vadd.f32 %v186, %v192
    %v196 = vpack.c.bf16 %v195, %v194
    %v198 = vunpack.c.l.b16 %v196
    %v199 = vunpack.c.h.b16 %v196
    %v200 = vpack.c.b16 %v198, %v198
    %v201 = vpack.c.b16 %v199, %v199
    %204 = vst [vmem:[%s5] sm:$0xf] %v200
    %205 = vst [vmem:[%s5 + $0x4] sm:$0xf] %v201
  $region29: #{image2smiles_forward.15} parent=0 // pred_fallthru
    _
  // Predicated region
  $region30: #{image2smiles_forward.15} parent=0 // pred_check
    _
  $region31: #{image2smiles_forward.15} parent=0 // pred_check_branch
    %207 = sbr.rel (0) target = $region33
  $region32: #{image2smiles_forward.15} parent=0 // pred_region
    _
  $region33: #{image2smiles_forward.15} parent=0 // pred_fallthru
    _
  // Predicated region
  $region34: #{image2smiles_forward.15} parent=0 // pred_check
    _
  $region35: #{image2smiles_forward.15} parent=0 // pred_check_branch
    %209 = sbr.rel (0) target = $region37
  $region36: #{image2smiles_forward.15} parent=0 // pred_region
    _
  $region37: #{image2smiles_forward.15} parent=0 // pred_fallthru
    _

// kernel: image2smiles_forward.14
$region0: #{image2smiles_forward.14}
  #allocation0 [shape = 'u32[]', space=smem, size = 0x4, offset = 0x4, fixed_abs, tag = 'smem constant byte address 0x4 - core index']
  #allocation1 [shape = 'u32[144,128]{1,0:T(1,128)}', space=vmem, size = 0x12000, scoped, tag = 'internal scratch']
  #allocation2 [shape = 'f32[16,128]{1,0:T(8,128)}', space=vmem, size = 0x2000, scoped, tag = 'scratch operand']
  %s0 = inlined_call_operand.vmem [shape: bf16[16,128], index: 0, kind: input, shape index: {}]
  %s1 = inlined_call_operand.vmem [shape: bf16[128,128], index: 1, kind: input, shape index: {}]
  %s2 = inlined_call_operand.vmem [shape: f32[1,128], index: 2, kind: input, shape index: {}]
  %s3 = inlined_call_operand.vmem [shape: f32[16,128], index: 3, kind: input, shape index: {}]
  %s4 = inlined_call_operand.vmem [shape: f32[16,128], index: 4, kind: output, shape index: {}]
  %s5 = sld [smem:[#allocation0]]
  $region34: #{image2smiles_forward.14} parent=0
    _
  %s7 = ssub.s32 1, %s5
  %s8 = scalar_select 0, %s7, %s5
  // Predicated region
  $region2: #{image2smiles_forward.14} parent=0 // pred_check
    _
  $region3: #{image2smiles_forward.14} parent=0 // pred_check_branch
    %10 = sbr.rel (0) target = $region5
  $region4: #{image2smiles_forward.14} parent=0 // pred_region
    _
  $region5: #{image2smiles_forward.14} parent=0 // pred_fallthru
    _
  // Predicated region
  $region6: #{image2smiles_forward.14} parent=0 // pred_check
    _
  $region7: #{image2smiles_forward.14} parent=0 // pred_check_branch
    %12 = sbr.rel (0) target = $region9
  $region8: #{image2smiles_forward.14} parent=0 // pred_region
    _
  $region9: #{image2smiles_forward.14} parent=0 // pred_fallthru
    _
  // Predicated region
  $region10: #{image2smiles_forward.14} parent=0 // pred_check
    _
  $region11: #{image2smiles_forward.14} parent=0 // pred_check_branch
    %14 = sbr.rel (0) target = $region13
  $region12: #{image2smiles_forward.14} parent=0 // pred_region
    _
  $region13: #{image2smiles_forward.14} parent=0 // pred_fallthru
    _
  // Predicated region
  $region14: #{image2smiles_forward.14} parent=0 // pred_check
    _
  $region15: #{image2smiles_forward.14} parent=0 // pred_check_branch
    %16 = sbr.rel (0) target = $region17
  $region16: #{image2smiles_forward.14} parent=0 // pred_region
    _
  $region17: #{image2smiles_forward.14} parent=0 // pred_fallthru
    _
  %p18 = scmp.eq.s32.totalorder 0, 0
  // Predicated region
  $region18: #{image2smiles_forward.14} parent=0 // pred_check
    %p19 = pneg %p18
  $region19: #{image2smiles_forward.14} parent=0 // pred_check_branch
    %21 = sbr.rel (%p19) target = $region21
  $region20: #{image2smiles_forward.14} parent=0 // pred_region
    %22 = vst [vmem:[#allocation2] sm:$0xff] 0.0
    %23 = vst [vmem:[#allocation2 + $0x8] sm:$0xff] 0.0
  $region21: #{image2smiles_forward.14} parent=0 // pred_fallthru
    _
  %v24 = vld [vmem:[%s0] sm:$0xf]
  %v25 = vld [vmem:[%s0 + $0x4] sm:$0xf]
  %v26 = vld [vmem:[#allocation2] sm:$0xff]
  %v27 = vld [vmem:[#allocation2 + $0x8] sm:$0xff]
  %v28 = vld [vmem:[%s1] sm:$0xf]
  %v29 = vld [vmem:[%s1 + $0x4] sm:$0xf]
  %v30 = vld [vmem:[%s1 + $0x8] sm:$0xf]
  %v31 = vld [vmem:[%s1 + $0xc] sm:$0xf]
  %v32 = vld [vmem:[%s1 + $0x10] sm:$0xf]
  %v33 = vld [vmem:[%s1 + $0x14] sm:$0xf]
  %v34 = vld [vmem:[%s1 + $0x18] sm:$0xf]
  %v35 = vld [vmem:[%s1 + $0x1c] sm:$0xf]
  %v36 = vld [vmem:[%s1 + $0x20] sm:$0xf]
  %v37 = vld [vmem:[%s1 + $0x24] sm:$0xf]
  %v38 = vld [vmem:[%s1 + $0x28] sm:$0xf]
  %v39 = vld [vmem:[%s1 + $0x2c] sm:$0xf]
  %v40 = vld [vmem:[%s1 + $0x30] sm:$0xf]
  %v41 = vld [vmem:[%s1 + $0x34] sm:$0xf]
  %v42 = vld [vmem:[%s1 + $0x38] sm:$0xf]
  %v43 = vld [vmem:[%s1 + $0x3c] sm:$0xf]
  %v46 = vunpack.c.l.b16 %v24
  %v47 = vunpack.c.l.b16 %v25
  %v48 = vpack.c.b16 %v47, %v46
  %v66 = vunpack.c.l.b16 %v28
  %v67 = vunpack.c.l.b16 %v29
  %v68 = vunpack.c.l.b16 %v30
  %v69 = vunpack.c.l.b16 %v31
  %v70 = vunpack.c.l.b16 %v32
  %v71 = vunpack.c.l.b16 %v33
  %v72 = vunpack.c.l.b16 %v34
  %v73 = vunpack.c.l.b16 %v35
  %v74 = vunpack.c.l.b16 %v36
  %v75 = vunpack.c.l.b16 %v37
  %v76 = vunpack.c.l.b16 %v38
  %v77 = vunpack.c.l.b16 %v39
  %v78 = vunpack.c.l.b16 %v40
  %v79 = vunpack.c.l.b16 %v41
  %v80 = vunpack.c.l.b16 %v42
  %v81 = vunpack.c.l.b16 %v43
  %v82 = vpack.c.b16 %v67, %v66
  %v83 = vpack.c.b16 %v69, %v68
  %v84 = vpack.c.b16 %v71, %v70
  %v85 = vpack.c.b16 %v73, %v72
  %v86 = vpack.c.b16 %v75, %v74
  %v87 = vpack.c.b16 %v77, %v76
  %v88 = vpack.c.b16 %v79, %v78
  %v89 = vpack.c.b16 %v81, %v80
  %98 = vmatprep.subr.bf16.mxu0 0
  %99 = vmatpush1.bf16.msra.mxu0 %v82
  %100 = vmatprep.subr.bf16.mxu0 0
  %101 = vmatpush1.bf16.msra.mxu0 %v83
  %102 = vmatprep.subr.bf16.mxu0 0
  %103 = vmatpush1.bf16.msra.mxu0 %v84
  %104 = vmatprep.subr.bf16.mxu0 0
  %105 = vmatpush1.bf16.msra.mxu0 %v85
  %106 = vmatprep.subr.bf16.mxu0 0
  %107 = vmatpush1.bf16.msra.mxu0 %v86
  %108 = vmatprep.subr.bf16.mxu0 0
  %109 = vmatpush1.bf16.msra.mxu0 %v87
  %110 = vmatprep.subr.bf16.mxu0 0
  %111 = vmatpush1.bf16.msra.mxu0 %v88
  %112 = vmatprep.subr.bf16.mxu0 0
  %113 = vmatpush1.bf16.msra.mxu0 %v89
  %114 = vmatprep.subr.bf16.mxu0 0
  %115 = vmatpush1.bf16.msra.mxu0 0
  %116 = vmatprep.subr.bf16.mxu0 0
  %117 = vmatpush1.bf16.msra.mxu0 0
  %118 = vmatprep.subr.bf16.mxu0 0
  %119 = vmatpush1.bf16.msra.mxu0 0
  %120 = vmatprep.subr.bf16.mxu0 0
  %121 = vmatpush1.bf16.msra.mxu0 0
  %122 = vmatprep.subr.bf16.mxu0 0
  %123 = vmatpush1.bf16.msra.mxu0 0
  %124 = vmatprep.subr.bf16.mxu0 0
  %125 = vmatpush1.bf16.msra.mxu0 0
  %126 = vmatprep.subr.bf16.mxu0 0
  %127 = vmatpush1.bf16.msra.mxu0 0
  %128 = vmatprep.subr.bf16.mxu0 0
  %129 = vmatpush1.bf16.msra.mxu0 0
  %130 = vmatprep.mubr.bf16.mxu0 0
  %131 = vmatmul.mubr.bf16.gmra.mrb[0].mxu0 %v48
  %v132 = vpop.f32.mrb[0].mxu0
  %v133 = vadd.f32 0.0, %v132
  %v134 = vpop.f32.mrb[0].mxu0
  %v135 = vpop.f32.mrb[0].mxu0
  %v136 = vadd.f32 0.0, %v135
  %v137 = vpop.f32.mrb[0].mxu0
  %138 = vdwg.mxu0
  %v139 = vadd.f32 %v26, %v133
  %v140 = vadd.f32 %v27, %v136
  %141 = vst [vmem:[#allocation2] sm:$0xff] %v139
  %142 = vst [vmem:[#allocation2 + $0x8] sm:$0xff] %v140
  // Predicated region
  $region22: #{image2smiles_forward.14} parent=0 // pred_check
    %p143 = pneg %p18
  $region23: #{image2smiles_forward.14} parent=0 // pred_check_branch
    %145 = sbr.rel (%p143) target = $region25
  $region24: #{image2smiles_forward.14} parent=0 // pred_region
    %v146 = vld [vmem:[#allocation2] sm:$0xff]
    %v147 = vld [vmem:[#allocation2 + $0x8] sm:$0xff]
    %v148 = vld [vmem:[%s2] sm:$0x1]
    %v150 = vlaneseq
    %v151 = vshrl.u32 %v150, 7
    %v152 = vsub.s32 0, %v151
    %v153 = vrot.slane %v148, %v152
    %v155 = vadd.f32 %v146, %v153
    %v156 = vadd.f32 %v147, %v153
    %v157 = vld [vmem:[%s3] sm:$0xff]
    %v158 = vld [vmem:[%s3 + $0x8] sm:$0xff]
    %v159 = vadd.f32 %v155, %v157
    %v160 = vadd.f32 %v156, %v158
    %161 = vst [vmem:[%s4] sm:$0xff] %v159
    %162 = vst [vmem:[%s4 + $0x8] sm:$0xff] %v160
  $region25: #{image2smiles_forward.14} parent=0 // pred_fallthru
    _
  // Predicated region
  $region26: #{image2smiles_forward.14} parent=0 // pred_check
    _
  $region27: #{image2smiles_forward.14} parent=0 // pred_check_branch
    %164 = sbr.rel (0) target = $region29
  $region28: #{image2smiles_forward.14} parent=0 // pred_region
    _
  $region29: #{image2smiles_forward.14} parent=0 // pred_fallthru
    _
  // Predicated region
  $region30: #{image2smiles_forward.14} parent=0 // pred_check
    _
  $region31: #{image2smiles_forward.14} parent=0 // pred_check_branch
    %166 = sbr.rel (0) target = $region33
  $region32: #{image2smiles_forward.14} parent=0 // pred_region
    _
  $region33: #{image2smiles_forward.14} parent=0 // pred_fallthru
    _

// kernel: image2smiles_forward.12
$region0: #{image2smiles_forward.12}
  #allocation0 [shape = 'u32[]', space=smem, size = 0x4, offset = 0x4, fixed_abs, tag = 'smem constant byte address 0x4 - core index']
  #allocation1 [shape = 'u32[144,128]{1,0:T(1,128)}', space=vmem, size = 0x12000, scoped, tag = 'internal scratch']
  #allocation2 [shape = 'f32[16,128]{1,0:T(8,128)}', space=vmem, size = 0x2000, scoped, tag = 'scratch operand']
  %s0 = inlined_call_operand.vmem [shape: f32[16,128], index: 0, kind: input, shape index: {}]
  %s1 = inlined_call_operand.vmem [shape: bf16[128,384], index: 1, kind: input, shape index: {}]
  %s2 = inlined_call_operand.vmem [shape: f32[1,384], index: 2, kind: input, shape index: {}]
  %s3 = inlined_call_operand.vmem [shape: f32[1,128], index: 3, kind: input, shape index: {}]
  %s4 = inlined_call_operand.vmem [shape: f32[1,128], index: 4, kind: input, shape index: {}]
  %s5 = inlined_call_operand.vmem [shape: bf16[16,384], index: 5, kind: output, shape index: {}]
  %s6 = sld [smem:[#allocation0]]
  $region139: #{image2smiles_forward.12} parent=0
    _
  %s8 = ssub.s32 1, %s6
  %s9 = scalar_select 0, %s8, %s6
  $region1: #{image2smiles_forward.12} parent=0
    #allocation3 [shape = 'u8[65536]{0}', space=vmem, size = 0x10000, scoped, tag = 'input window, operand 1']
    #allocation4 [shape = 'u8[8192]{0}', space=vmem, size = 0x2000, scoped, tag = 'output window, operand 0']
    loop: start=0, step=1, limit=5
    $region2: #{image2smiles_forward.12} parent=1 // loop_pre_header
      _
    $region3: #{image2smiles_forward.12} parent=1 // loop_header
      %s11 = sphi 0, %s15
      %p12 = scmp.ge.s32.totalorder %s11, 5
      %s18 = sphi 0, %s37
      %s19 = sphi 0, %s33
      %s20 = sphi 0, %s29
      %s21 = sphi 0, %s18
      %s22 = sphi 0, %s19
      %s23 = sphi 0, %s20
      %s24 = sphi 0, %s21
      %s25 = sphi 0, %s22
      %s26 = sphi 0, %s23
      %s42 = sphi 0, %s44
      %s45 = sphi 0, %s42
      %s46 = sphi 0, %s45
      %s62 = sphi 0, %s46
      %s70 = sphi 0, %s72
      %s73 = sphi 0, %s70
      %s74 = sphi 0, %s73
      %s90 = sphi 0, %s74
      %s96 = sphi 0, %s98
      %s99 = sphi 0, %s96
      %s100 = sphi 0, %s99
      %s116 = sphi 0, %s100
      %s120 = sphi 0, %s120
      %s122 = sphi 0, %s120
      %s123 = sphi 0, %s122
      %s137 = sphi 0, %s123
      %s141 = sphi 0, %s141
      %s143 = sphi 0, %s141
      %s144 = sphi 0, %s143
      %s158 = sphi 0, %s144
      %s166 = sphi 0, %s168
      %s169 = sphi 0, %s166
      %s170 = sphi 0, %s169
      %s186 = sphi 0, %s170
    $region4: #{image2smiles_forward.12} parent=1 // loop_header_branch
      %14 = sbr.rel (%p12) target = $region8
    $region5: #{image2smiles_forward.12} parent=1 // loop_body
      %s16 = ssub.s32 %s11, 1
      %s17 = ssub.s32 %s11, 2
      %s27 = sadd.s32 1, %s20
      %p28 = scmp.ge.s32.totalorder %s27, 1
      %s29 = scalar_select %p28, 0, %s27
      %s30 = sadd.s32 1, %s19
      %s31 = scalar_select %p28, %s30, %s19
      %p32 = scmp.ge.s32.totalorder %s31, 3
      %s33 = scalar_select %p32, 0, %s31
      %s34 = sadd.s32 1, %s18
      %s35 = scalar_select %p32, %s34, %s18
      %p36 = scmp.ge.s32.totalorder %s35, 1
      %s37 = scalar_select %p36, 0, %s35
      %s38 = ssub.s32 %s18, %s37
      %s39 = ssub.s32 %s20, %s29
      %s40 = sor.u32 %s38, %s39
      %p41 = scmp.eq.s32.totalorder %s40, 0
      %s43 = sadd.s32 %s42, 1
      %s44 = scalar_select %p41, %s42, %s43
      %p47 = pneg %p41
      %p48 = scmp.eq.s32.totalorder %s11, 2
      %p49 = por %p47, %p48
      %p50 = scmp.ne.s32.totalorder %s42, %s45
      %p51 = scmp.eq.s32.totalorder %s11, 0
      %p52 = por %p50, %p51
      %p53 = scmp.ne.s32.totalorder %s42, %s45
      %p54 = scmp.eq.s32.totalorder %s16, 2
      %p55 = por %p53, %p54
      %p56 = scmp.ne.s32.totalorder %s45, %s46
      %p57 = scmp.eq.s32.totalorder %s16, 0
      %p58 = por %p56, %p57
      %p59 = scmp.ne.s32.totalorder %s45, %s46
      %p60 = scmp.eq.s32.totalorder %s17, 2
      %p61 = por %p59, %p60
      %p63 = scmp.ne.s32.totalorder %s46, %s62
      %p64 = scmp.eq.s32.totalorder %s17, 0
      %p65 = por %p63, %p64
      %s66 = ssub.s32 %s20, %s29
      %s67 = ssub.s32 %s19, %s33
      %s68 = sor.u32 %s66, %s67
      %p69 = scmp.eq.s32.totalorder %s68, 0
      %s71 = sadd.s32 %s70, 1
      %s72 = scalar_select %p69, %s70, %s71
      %p75 = pneg %p69
      %p76 = scmp.eq.s32.totalorder %s11, 2
      %p77 = por %p75, %p76
      %p78 = scmp.ne.s32.totalorder %s70, %s73
      %p79 = scmp.eq.s32.totalorder %s11, 0
      %p80 = por %p78, %p79
      %p81 = scmp.ne.s32.totalorder %s70, %s73
      %p82 = scmp.eq.s32.totalorder %s16, 2
      %p83 = por %p81, %p82
      %p84 = scmp.ne.s32.totalorder %s73, %s74
      %p85 = scmp.eq.s32.totalorder %s16, 0
      %p86 = por %p84, %p85
      %p87 = scmp.ne.s32.totalorder %s73, %s74
      %p88 = scmp.eq.s32.totalorder %s17, 2
      %p89 = por %p87, %p88
      %p91 = scmp.ne.s32.totalorder %s74, %s90
      %p92 = scmp.eq.s32.totalorder %s17, 0
      %p93 = por %p91, %p92
      %s94 = ssub.s32 %s19, %s33
      %p95 = scmp.eq.s32.totalorder %s94, 0
      %s97 = sadd.s32 %s96, 1
      %s98 = scalar_select %p95, %s96, %s97
      %p101 = pneg %p95
      %p102 = scmp.eq.s32.totalorder %s11, 2
      %p103 = por %p101, %p102
      %p104 = scmp.ne.s32.totalorder %s96, %s99
      %p105 = scmp.eq.s32.totalorder %s11, 0
      %p106 = por %p104, %p105
      %p107 = scmp.ne.s32.totalorder %s96, %s99
      %p108 = scmp.eq.s32.totalorder %s16, 2
      %p109 = por %p107, %p108
      %p110 = scmp.ne.s32.totalorder %s99, %s100
      %p111 = scmp.eq.s32.totalorder %s16, 0
      %p112 = por %p110, %p111
      %p113 = scmp.ne.s32.totalorder %s99, %s100
      %p114 = scmp.eq.s32.totalorder %s17, 2
      %p115 = por %p113, %p114
      %p117 = scmp.ne.s32.totalorder %s100, %s116
      %p118 = scmp.eq.s32.totalorder %s17, 0
      %p119 = por %p117, %p118
      %s121 = sadd.s32 %s120, 1
      %p124 = scmp.eq.s32.totalorder %s11, 2
      %p125 = scmp.ne.s32.totalorder %s120, %s122
      %p126 = scmp.eq.s32.totalorder %s11, 0
      %p127 = por %p125, %p126
      %p128 = scmp.ne.s32.totalorder %s120, %s122
      %p129 = scmp.eq.s32.totalorder %s16, 2
      %p130 = por %p128, %p129
      %p131 = scmp.ne.s32.totalorder %s122, %s123
      %p132 = scmp.eq.s32.totalorder %s16, 0
      %p133 = por %p131, %p132
      %p134 = scmp.ne.s32.totalorder %s122, %s123
      %p135 = scmp.eq.s32.totalorder %s17, 2
      %p136 = por %p134, %p135
      %p138 = scmp.ne.s32.totalorder %s123, %s137
      %p139 = scmp.eq.s32.totalorder %s17, 0
      %p140 = por %p138, %p139
      %s142 = sadd.s32 %s141, 1
      %p145 = scmp.eq.s32.totalorder %s11, 2
      %p146 = scmp.ne.s32.totalorder %s141, %s143
      %p147 = scmp.eq.s32.totalorder %s11, 0
      %p148 = por %p146, %p147
      %p149 = scmp.ne.s32.totalorder %s141, %s143
      %p150 = scmp.eq.s32.totalorder %s16, 2
      %p151 = por %p149, %p150
      %p152 = scmp.ne.s32.totalorder %s143, %s144
      %p153 = scmp.eq.s32.totalorder %s16, 0
      %p154 = por %p152, %p153
      %p155 = scmp.ne.s32.totalorder %s143, %s144
      %p156 = scmp.eq.s32.totalorder %s17, 2
      %p157 = por %p155, %p156
      %p159 = scmp.ne.s32.totalorder %s144, %s158
      %p160 = scmp.eq.s32.totalorder %s17, 0
      %p161 = por %p159, %p160
      %s162 = ssub.s32 %s18, %s37
      %s163 = ssub.s32 %s19, %s33
      %s164 = sor.u32 %s162, %s163
      %p165 = scmp.eq.s32.totalorder %s164, 0
      %s167 = sadd.s32 %s166, 1
      %s168 = scalar_select %p165, %s166, %s167
      %p171 = pneg %p165
      %p172 = scmp.eq.s32.totalorder %s11, 2
      %p173 = por %p171, %p172
      %p174 = scmp.ne.s32.totalorder %s166, %s169
      %p175 = scmp.eq.s32.totalorder %s11, 0
      %p176 = por %p174, %p175
      %p177 = scmp.ne.s32.totalorder %s166, %s169
      %p178 = scmp.eq.s32.totalorder %s16, 2
      %p179 = por %p177, %p178
      %p180 = scmp.ne.s32.totalorder %s169, %s170
      %p181 = scmp.eq.s32.totalorder %s16, 0
      %p182 = por %p180, %p181
      %p183 = scmp.ne.s32.totalorder %s169, %s170
      %p184 = scmp.eq.s32.totalorder %s17, 2
      %p185 = por %p183, %p184
      %p187 = scmp.ne.s32.totalorder %s170, %s186
      %p188 = scmp.eq.s32.totalorder %s17, 0
      %p189 = por %p187, %p188
      %p190 = scmp.le.s32.totalorder 1, %s11
      %p191 = scmp.lt.s32.totalorder %s11, 4
      %p192 = pnand %p190, %p191
      %p193 = pneg %p192
      // Predicated region
      $region9: #{image2smiles_forward.12} parent=5 // pred_check
        _
      $region10: #{image2smiles_forward.12} parent=5 // pred_check_branch
        %195 = sbr.rel (%p192) target = $region12
      $region11: #{image2smiles_forward.12} parent=5 // pred_region
        %s196 = ssub.s32 %s11, 1
        // Predicated region
        $region13: #{image2smiles_forward.12} parent=11 // pred_check
          %p197 = pneg %p58
        $region14: #{image2smiles_forward.12} parent=11 // pred_check_branch
          %199 = sbr.rel (%p197) target = $region16
        $region15: #{image2smiles_forward.12} parent=11 // pred_region
          %s200 = smul.u32 2, %s21
          %p201 = scmp.lt.s32.totalorder %s200, 1
          %s202 = scalar_select %p201, %s200, 1
          %p203 = scmp.lt.s32.totalorder %s23, 0
          %s204 = scalar_select %p203, %s23, 0
          %s205 = sadd.s32 %s204, %s202
          %s206 = smul.addr %s205, 8
          %s207 = scalar_lea.vmem %s0, %s206
          %s208 = smul.u32 2, %s21
        $region16: #{image2smiles_forward.12} parent=11 // pred_fallthru
          _
        // Predicated region
        $region17: #{image2smiles_forward.12} parent=11 // pred_check
          %p209 = pneg %p133
        $region18: #{image2smiles_forward.12} parent=11 // pred_check_branch
          %211 = sbr.rel (%p209) target = $region20
        $region19: #{image2smiles_forward.12} parent=11 // pred_region
          _
        $region20: #{image2smiles_forward.12} parent=11 // pred_fallthru
          _
        // Predicated region
        $region21: #{image2smiles_forward.12} parent=11 // pred_check
          %p212 = pneg %p154
        $region22: #{image2smiles_forward.12} parent=11 // pred_check_branch
          %214 = sbr.rel (%p212) target = $region24
        $region23: #{image2smiles_forward.12} parent=11 // pred_region
          _
        $region24: #{image2smiles_forward.12} parent=11 // pred_fallthru
          _
      $region12: #{image2smiles_forward.12} parent=5 // pred_fallthru
        _
      %p215 = scmp.lt.s32.totalorder %s11, 3
      // Predicated region
      $region25: #{image2smiles_forward.12} parent=5 // pred_check
        %p216 = pneg %p215
      $region26: #{image2smiles_forward.12} parent=5 // pred_check_branch
        %218 = sbr.rel (%p216) target = $region28
      $region27: #{image2smiles_forward.12} parent=5 // pred_region
        // Predicated region
        $region29: #{image2smiles_forward.12} parent=27 // pred_check
          %p219 = pneg %p80
        $region30: #{image2smiles_forward.12} parent=27 // pred_check_branch
          %221 = sbr.rel (%p219) target = $region32
        $region31: #{image2smiles_forward.12} parent=27 // pred_region
          %s222 = sand.u32 %s70, 1
          %s223 = sand.u32 %s70, 1
          %s224 = smul.addr %s223, 64
          %s225 = scalar_lea.vmem [#allocation3], %s224
          %s226 = smul.u32 16, %s20
          %s227 = smul.addr %s226, 3
          %s228 = sadd.s32 %s19, %s227
          %s229 = smul.addr %s228, 4
          %s230 = scalar_lea.vmem %s1, %s229
          // Predicated region
          $region33: #{image2smiles_forward.12} parent=31 // pred_check
            _
          $region34: #{image2smiles_forward.12} parent=31 // pred_check_branch
            %232 = sbr.rel (0) target = $region36
          $region35: #{image2smiles_forward.12} parent=31 // pred_region
            // Predicated region
            $region37: #{image2smiles_forward.12} parent=35 // pred_check
              _
            $region38: #{image2smiles_forward.12} parent=35 // pred_check_branch
              %234 = sbr.rel target = $region40
            $region39: #{image2smiles_forward.12} parent=35 // pred_region
              // Predicated region
              $region52: #{image2smiles_forward.12} parent=39 // pred_check
                _
              $region53: #{image2smiles_forward.12} parent=39 // pred_check_branch
                %279 = sbr.rel (0) target = $region55
              $region54: #{image2smiles_forward.12} parent=39 // pred_region
                loop: start=0, step=1, limit=1
                $region56: #{image2smiles_forward.12} parent=54 // loop_pre_header
                  _
                $region57: #{image2smiles_forward.12} parent=54 // loop_header
                  %s281 = sphi 0, %s285
                  %p282 = scmp.ge.s32.totalorder %s281, 1
                  %s286 = sphi %s230, %s230
                  %s287 = sphi %s225, %s225
                $region58: #{image2smiles_forward.12} parent=54 // loop_header_branch
                  %284 = sbr.rel (%p282) target = $region62
                $region59: #{image2smiles_forward.12} parent=54 // loop_body
                  _
                $region60: #{image2smiles_forward.12} parent=54 // loop_footer
                  %s285 = sadd.s32 1, %s281
                $region61: #{image2smiles_forward.12} parent=54 // loop_footer_branch
                  %280 = sbr.rel target = $region57
                $region62: #{image2smiles_forward.12} parent=54 // loop_exit
                  _
                loop: start=0, step=1, limit=1
                $region63: #{image2smiles_forward.12} parent=54 // loop_pre_header
                  _
                $region64: #{image2smiles_forward.12} parent=54 // loop_header
                  %s290 = sphi 0, %s294
                  %p291 = scmp.ge.s32.totalorder %s290, 1
                  %s295 = sphi %s230, %s230
                  %s296 = sphi %s225, %s225
                $region65: #{image2smiles_forward.12} parent=54 // loop_header_branch
                  %293 = sbr.rel (%p291) target = $region69
                $region66: #{image2smiles_forward.12} parent=54 // loop_body
                  %v297 = vld [vmem:[%s295] sm:$0xf]
                  %298 = vst [vmem:[%s296] sm:$0xf] %v297
                  %v299 = vld [vmem:[%s295 + $0xc] sm:$0xf]
                  %300 = vst [vmem:[%s296 + $0x4] sm:$0xf] %v299
                  %v301 = vld [vmem:[%s295 + $0x18] sm:$0xf]
                  %302 = vst [vmem:[%s296 + $0x8] sm:$0xf] %v301
                  %v303 = vld [vmem:[%s295 + $0x24] sm:$0xf]
                  %304 = vst [vmem:[%s296 + $0xc] sm:$0xf] %v303
                  %v305 = vld [vmem:[%s295 + $0x30] sm:$0xf]
                  %306 = vst [vmem:[%s296 + $0x10] sm:$0xf] %v305
                  %v307 = vld [vmem:[%s295 + $0x3c] sm:$0xf]
                  %308 = vst [vmem:[%s296 + $0x14] sm:$0xf] %v307
                  %v309 = vld [vmem:[%s295 + $0x48] sm:$0xf]
                  %310 = vst [vmem:[%s296 + $0x18] sm:$0xf] %v309
                  %v311 = vld [vmem:[%s295 + $0x54] sm:$0xf]
                  %312 = vst [vmem:[%s296 + $0x1c] sm:$0xf] %v311
                  %v313 = vld [vmem:[%s295 + $0x60] sm:$0xf]
                  %314 = vst [vmem:[%s296 + $0x20] sm:$0xf] %v313
                  %v315 = vld [vmem:[%s295 + $0x6c] sm:$0xf]
                  %316 = vst [vmem:[%s296 + $0x24] sm:$0xf] %v315
                  %v317 = vld [vmem:[%s295 + $0x78] sm:$0xf]
                  %318 = vst [vmem:[%s296 + $0x28] sm:$0xf] %v317
                  %v319 = vld [vmem:[%s295 + $0x84] sm:$0xf]
                  %320 = vst [vmem:[%s296 + $0x2c] sm:$0xf] %v319
                  %v321 = vld [vmem:[%s295 + $0x90] sm:$0xf]
                  %322 = vst [vmem:[%s296 + $0x30] sm:$0xf] %v321
                  %v323 = vld [vmem:[%s295 + $0x9c] sm:$0xf]
                  %324 = vst [vmem:[%s296 + $0x34] sm:$0xf] %v323
                  %v325 = vld [vmem:[%s295 + $0xa8] sm:$0xf]
                  %326 = vst [vmem:[%s296 + $0x38] sm:$0xf] %v325
                  %v327 = vld [vmem:[%s295 + $0xb4] sm:$0xf]
                  %328 = vst [vmem:[%s296 + $0x3c] sm:$0xf] %v327
                $region67: #{image2smiles_forward.12} parent=54 // loop_footer
                  %s294 = sadd.s32 1, %s290
                $region68: #{image2smiles_forward.12} parent=54 // loop_footer_branch
                  %289 = sbr.rel target = $region64
                $region69: #{image2smiles_forward.12} parent=54 // loop_exit
                  _
              $region55: #{image2smiles_forward.12} parent=39 // pred_fallthru
                _
            $region40: #{image2smiles_forward.12} parent=35 // pred_fallthru
              _
            // Predicated region
            $region41: #{image2smiles_forward.12} parent=35 // pred_check
              _
            $region42: #{image2smiles_forward.12} parent=35 // pred_check_branch
              %236 = sbr.rel (0) target = $region44
            $region43: #{image2smiles_forward.12} parent=35 // pred_region
              loop: start=0, step=1, limit=1
              $region45: #{image2smiles_forward.12} parent=43 // loop_pre_header
                _
              $region46: #{image2smiles_forward.12} parent=43 // loop_header
                %s239 = sphi 0, %s243
                %p240 = scmp.ge.s32.totalorder %s239, 1
                %s244 = sphi %s230, %s230
                %s245 = sphi %s225, %s225
              $region47: #{image2smiles_forward.12} parent=43 // loop_header_branch
                %242 = sbr.rel (%p240) target = $region51
              $region48: #{image2smiles_forward.12} parent=43 // loop_body
                %v246 = vld [vmem:[%s244] sm:$0xf]
                %247 = vst [vmem:[%s245] sm:$0xf] %v246
                %v248 = vld [vmem:[%s244 + $0xc] sm:$0xf]
                %249 = vst [vmem:[%s245 + $0x4] sm:$0xf] %v248
                %v250 = vld [vmem:[%s244 + $0x18] sm:$0xf]
                %251 = vst [vmem:[%s245 + $0x8] sm:$0xf] %v250
                %v252 = vld [vmem:[%s244 + $0x24] sm:$0xf]
                %253 = vst [vmem:[%s245 + $0xc] sm:$0xf] %v252
                %v254 = vld [vmem:[%s244 + $0x30] sm:$0xf]
                %255 = vst [vmem:[%s245 + $0x10] sm:$0xf] %v254
                %v256 = vld [vmem:[%s244 + $0x3c] sm:$0xf]
                %257 = vst [vmem:[%s245 + $0x14] sm:$0xf] %v256
                %v258 = vld [vmem:[%s244 + $0x48] sm:$0xf]
                %259 = vst [vmem:[%s245 + $0x18] sm:$0xf] %v258
                %v260 = vld [vmem:[%s244 + $0x54] sm:$0xf]
                %261 = vst [vmem:[%s245 + $0x1c] sm:$0xf] %v260
                %v262 = vld [vmem:[%s244 + $0x60] sm:$0xf]
                %263 = vst [vmem:[%s245 + $0x20] sm:$0xf] %v262
                %v264 = vld [vmem:[%s244 + $0x6c] sm:$0xf]
                %265 = vst [vmem:[%s245 + $0x24] sm:$0xf] %v264
                %v266 = vld [vmem:[%s244 + $0x78] sm:$0xf]
                %267 = vst [vmem:[%s245 + $0x28] sm:$0xf] %v266
                %v268 = vld [vmem:[%s244 + $0x84] sm:$0xf]
                %269 = vst [vmem:[%s245 + $0x2c] sm:$0xf] %v268
                %v270 = vld [vmem:[%s244 + $0x90] sm:$0xf]
                %271 = vst [vmem:[%s245 + $0x30] sm:$0xf] %v270
                %v272 = vld [vmem:[%s244 + $0x9c] sm:$0xf]
                %273 = vst [vmem:[%s245 + $0x34] sm:$0xf] %v272
                %v274 = vld [vmem:[%s244 + $0xa8] sm:$0xf]
                %275 = vst [vmem:[%s245 + $0x38] sm:$0xf] %v274
                %v276 = vld [vmem:[%s244 + $0xb4] sm:$0xf]
                %277 = vst [vmem:[%s245 + $0x3c] sm:$0xf] %v276
              $region49: #{image2smiles_forward.12} parent=43 // loop_footer
                %s243 = sadd.s32 1, %s239
              $region50: #{image2smiles_forward.12} parent=43 // loop_footer_branch
                %238 = sbr.rel target = $region46
              $region51: #{image2smiles_forward.12} parent=43 // loop_exit
                _
            $region44: #{image2smiles_forward.12} parent=35 // pred_fallthru
              _
          $region36: #{image2smiles_forward.12} parent=31 // pred_fallthru
            _
          %329 = vnop
        $region32: #{image2smiles_forward.12} parent=27 // pred_fallthru
          _
        // Predicated region
        $region70: #{image2smiles_forward.12} parent=27 // pred_check
          %p330 = pneg %p106
        $region71: #{image2smiles_forward.12} parent=27 // pred_check_branch
          %332 = sbr.rel (%p330) target = $region73
        $region72: #{image2smiles_forward.12} parent=27 // pred_region
          %p333 = scmp.lt.s32.totalorder %s19, 2
          %s334 = scalar_select %p333, %s19, 2
          %s335 = scalar_lea.vmem %s2, %s334
        $region73: #{image2smiles_forward.12} parent=27 // pred_fallthru
          _
      $region28: #{image2smiles_forward.12} parent=5 // pred_fallthru
        _
      %p336 = scmp.le.s32.totalorder 1, %s11
      %p337 = scmp.lt.s32.totalorder %s11, 4
      %p338 = pnand %p336, %p337
      %p339 = pneg %p338
      // Predicated region
      $region74: #{image2smiles_forward.12} parent=5 // pred_check
        _
      $region75: #{image2smiles_forward.12} parent=5 // pred_check_branch
        %341 = sbr.rel (%p338) target = $region77
      $region76: #{image2smiles_forward.12} parent=5 // pred_region
        %s342 = ssub.s32 %s11, 1
        %s343 = sand.u32 %s73, 1
        %s344 = sand.u32 %s73, 1
        %s345 = smul.addr %s344, 64
        %s346 = scalar_lea.vmem [#allocation3], %s345
        // Predicated region
        $region78: #{image2smiles_forward.12} parent=76 // pred_check
          %p347 = pneg %p86
        $region79: #{image2smiles_forward.12} parent=76 // pred_check_branch
          %349 = sbr.rel (%p347) target = $region81
        $region80: #{image2smiles_forward.12} parent=76 // pred_region
          _
        $region81: #{image2smiles_forward.12} parent=76 // pred_fallthru
          _
        %s350 = smul.u32 2, %s21
        %p351 = scmp.lt.s32.totalorder %s350, 1
        %s352 = scalar_select %p351, %s350, 1
        %p353 = scmp.lt.s32.totalorder %s23, 0
        %s354 = scalar_select %p353, %s23, 0
        %s355 = sadd.s32 %s354, %s352
        %s356 = smul.addr %s355, 8
        %s357 = scalar_lea.vmem %s0, %s356
        %p358 = pneg %p58
        %p359 = pneg %p55
        %s360 = sand.u32 %s73, 1
        %s361 = sand.u32 %s73, 1
        %s362 = smul.addr %s361, 64
        %s363 = scalar_lea.vmem [#allocation3], %s362
        %p364 = pneg %p86
        %p365 = pneg %p83
        %p366 = scmp.lt.s32.totalorder %s22, 2
        %s367 = scalar_select %p366, %s22, 2
        %s368 = scalar_lea.vmem %s2, %s367
        %p369 = pneg %p112
        %p370 = pneg %p109
        %p371 = pneg %p133
        %p372 = pneg %p130
        %p373 = pneg %p154
        %p374 = pneg %p151
        %p375 = pneg %p182
        %p376 = pneg %p179
        %s377 = sand.u32 %s169, 1
        %s378 = sand.u32 %s169, 1
        %s379 = smul.addr %s378, 8
        %s380 = scalar_lea.vmem [#allocation4], %s379
        %s381 = smul.u32 2, %s21
        %p382 = scmp.lt.s32.totalorder %s381, 1
        %s383 = scalar_select %p382, %s381, 1
        %p384 = scmp.lt.s32.totalorder %s23, 0
        %s385 = scalar_select %p384, %s23, 0
        %s386 = sadd.s32 %s385, %s383
        %s387 = smul.addr %s386, 8
        %s388 = scalar_lea.vmem %s0, %s387
        %s389 = smul.u32 2, %s21
        %s390 = smul.u32 16, %s23
        %p391 = scmp.lt.s32.totalorder %s22, 2
        %s392 = scalar_select %p391, %s22, 2
        %s393 = scalar_lea.vmem %s2, %s392
        %s394 = smul.u32 2, %s21
        %p396 = scmp.eq.s32.totalorder %s23, 0
        // Predicated region
        $region82: #{image2smiles_forward.12} parent=76 // pred_check
          %p397 = pneg %p396
        $region83: #{image2smiles_forward.12} parent=76 // pred_check_branch
          %399 = sbr.rel (%p397) target = $region85
        $region84: #{image2smiles_forward.12} parent=76 // pred_region
          %400 = vst [vmem:[#allocation2] sm:$0xff] 0.0
          %401 = vst [vmem:[#allocation2 + $0x8] sm:$0xff] 0.0
        $region85: #{image2smiles_forward.12} parent=76 // pred_fallthru
          _
        %v402 = vld [vmem:[%s388] sm:$0xff]
        %v403 = vld [vmem:[%s388 + $0x8] sm:$0xff]
        %404 = vadd.xlane.f32.xlu0 %v402
        %v405 = vpop.xlane.xlu0 %404
        %406 = vadd.xlane.f32.xlu0 %v403
        %v407 = vpop.xlane.xlu0 %406
        %v408 = vrcp.pop 128.0
        %v409 = vmul.f32 %v405, %v408
        %v410 = vmul.f32 %v407, %v408
        %v411 = vsub.f32 %v402, %v409
        %v412 = vsub.f32 %v403, %v410
        %v413 = vmul.f32 %v411, %v411
        %v414 = vmul.f32 %v412, %v412
        %415 = vadd.xlane.f32.xlu0 %v413
        %v416 = vpop.xlane.xlu0 %415
        %417 = vadd.xlane.f32.xlu0 %v414
        %v418 = vpop.xlane.xlu0 %417
        %v419 = vmul.f32 %v416, %v408
        %v420 = vmul.f32 %v418, %v408
        %v421 = vadd.f32 %v419, 1e-05
        %v422 = vadd.f32 %v420, 1e-05
        %v423 = vrsqrt.pop %v421
        %v424 = vrsqrt.pop %v422
        %v425 = vmul.f32 %v411, %v423
        %v426 = vmul.f32 %v412, %v424
        %v427 = vld [vmem:[%s3] sm:$0x1]
        %v429 = vlaneseq
        %v430 = vshrl.u32 %v429, 7
        %v431 = vsub.s32 0, %v430
        %v432 = vrot.slane %v427, %v431
        %v434 = vmul.f32 %v425, %v432
        %v435 = vmul.f32 %v426, %v432
        %v436 = vld [vmem:[%s4] sm:$0x1]
        %v438 = vlaneseq
        %v439 = vshrl.u32 %v438, 7
        %v440 = vsub.s32 0, %v439
        %v441 = vrot.slane %v436, %v440
        %v443 = vadd.f32 %v434, %v441
        %v444 = vadd.f32 %v435, %v441
        %v445 = vpack.c.bf16 %v444, %v443
        %v446 = vld [vmem:[#allocation2] sm:$0xff]
        %v447 = vld [vmem:[#allocation2 + $0x8] sm:$0xff]
        %v448 = vld [vmem:[%s346] sm:$0xf]
        %v449 = vld [vmem:[%s346 + $0x4] sm:$0xf]
        %v450 = vld [vmem:[%s346 + $0x8] sm:$0xf]
        %v451 = vld [vmem:[%s346 + $0xc] sm:$0xf]
        %v452 = vld [vmem:[%s346 + $0x10] sm:$0xf]
        %v453 = vld [vmem:[%s346 + $0x14] sm:$0xf]
        %v454 = vld [vmem:[%s346 + $0x18] sm:$0xf]
        %v455 = vld [vmem:[%s346 + $0x1c] sm:$0xf]
        %v456 = vld [vmem:[%s346 + $0x20] sm:$0xf]
        %v457 = vld [vmem:[%s346 + $0x24] sm:$0xf]
        %v458 = vld [vmem:[%s346 + $0x28] sm:$0xf]
        %v459 = vld [vmem:[%s346 + $0x2c] sm:$0xf]
        %v460 = vld [vmem:[%s346 + $0x30] sm:$0xf]
        %v461 = vld [vmem:[%s346 + $0x34] sm:$0xf]
        %v462 = vld [vmem:[%s346 + $0x38] sm:$0xf]
        %v463 = vld [vmem:[%s346 + $0x3c] sm:$0xf]
        %v480 = vunpack.c.l.b16 %v448
        %v481 = vunpack.c.l.b16 %v449
        %v482 = vunpack.c.l.b16 %v450
        %v483 = vunpack.c.l.b16 %v451
        %v484 = vunpack.c.l.b16 %v452
        %v485 = vunpack.c.l.b16 %v453
        %v486 = vunpack.c.l.b16 %v454
        %v487 = vunpack.c.l.b16 %v455
        %v488 = vunpack.c.l.b16 %v456
        %v489 = vunpack.c.l.b16 %v457
        %v490 = vunpack.c.l.b16 %v458
        %v491 = vunpack.c.l.b16 %v459
        %v492 = vunpack.c.l.b16 %v460
        %v493 = vunpack.c.l.b16 %v461
        %v494 = vunpack.c.l.b16 %v462
        %v495 = vunpack.c.l.b16 %v463
        %v496 = vpack.c.b16 %v481, %v480
        %v497 = vpack.c.b16 %v483, %v482
        %v498 = vpack.c.b16 %v485, %v484
        %v499 = vpack.c.b16 %v487, %v486
        %v500 = vpack.c.b16 %v489, %v488
        %v501 = vpack.c.b16 %v491, %v490
        %v502 = vpack.c.b16 %v493, %v492
        %v503 = vpack.c.b16 %v495, %v494
        %512 = vmatprep.subr.bf16.mxu0 0
        %513 = vmatpush1.bf16.msra.mxu0 %v496
        %514 = vmatprep.subr.bf16.mxu0 0
        %515 = vmatpush1.bf16.msra.mxu0 %v497
        %516 = vmatprep.subr.bf16.mxu0 0
        %517 = vmatpush1.bf16.msra.mxu0 %v498
        %518 = vmatprep.subr.bf16.mxu0 0
        %519 = vmatpush1.bf16.msra.mxu0 %v499
        %520 = vmatprep.subr.bf16.mxu0 0
        %521 = vmatpush1.bf16.msra.mxu0 %v500
        %522 = vmatprep.subr.bf16.mxu0 0
        %523 = vmatpush1.bf16.msra.mxu0 %v501
        %524 = vmatprep.subr.bf16.mxu0 0
        %525 = vmatpush1.bf16.msra.mxu0 %v502
        %526 = vmatprep.subr.bf16.mxu0 0
        %527 = vmatpush1.bf16.msra.mxu0 %v503
        %528 = vmatprep.subr.bf16.mxu0 0
        %529 = vmatpush1.bf16.msra.mxu0 0
        %530 = vmatprep.subr.bf16.mxu0 0
        %531 = vmatpush1.bf16.msra.mxu0 0
        %532 = vmatprep.subr.bf16.mxu0 0
        %533 = vmatpush1.bf16.msra.mxu0 0
        %534 = vmatprep.subr.bf16.mxu0 0
        %535 = vmatpush1.bf16.msra.mxu0 0
        %536 = vmatprep.subr.bf16.mxu0 0
        %537 = vmatpush1.bf16.msra.mxu0 0
        %538 = vmatprep.subr.bf16.mxu0 0
        %539 = vmatpush1.bf16.msra.mxu0 0
        %540 = vmatprep.subr.bf16.mxu0 0
        %541 = vmatpush1.bf16.msra.mxu0 0
        %542 = vmatprep.subr.bf16.mxu0 0
        %543 = vmatpush1.bf16.msra.mxu0 0
        %544 = vmatprep.mubr.bf16.mxu0 0
        %545 = vmatmul.mubr.bf16.gmra.mrb[0].mxu0 %v445
        %v546 = vpop.f32.mrb[0].mxu0
        %v547 = vadd.f32 0.0, %v546
        %v548 = vpop.f32.mrb[0].mxu0
        %v549 = vpop.f32.mrb[0].mxu0
        %v550 = vadd.f32 0.0, %v549
        %v551 = vpop.f32.mrb[0].mxu0
        %552 = vdwg.mxu0
        %v553 = vadd.f32 %v446, %v547
        %v554 = vadd.f32 %v447, %v550
        %555 = vst [vmem:[#allocation2] sm:$0xff] %v553
        %556 = vst [vmem:[#allocation2 + $0x8] sm:$0xff] %v554
        // Predicated region
        $region86: #{image2smiles_forward.12} parent=76 // pred_check
          %p557 = pneg %p396
        $region87: #{image2smiles_forward.12} parent=76 // pred_check_branch
          %559 = sbr.rel (%p557) target = $region89
        $region88: #{image2smiles_forward.12} parent=76 // pred_region
          %v560 = vld [vmem:[#allocation2] sm:$0xff]
          %v561 = vld [vmem:[#allocation2 + $0x8] sm:$0xff]
          %v562 = vld [vmem:[%s393] sm:$0x1]
          %v564 = vlaneseq
          %v565 = vshrl.u32 %v564, 7
          %v566 = vsub.s32 0, %v565
          %v567 = vrot.slane %v562, %v566
          %v569 = vadd.f32 %v560, %v567
          %v570 = vadd.f32 %v561, %v567
          %v571 = vpack.c.bf16 %v570, %v569
          %v573 = vunpack.c.l.b16 %v571
          %v574 = vunpack.c.h.b16 %v571
          %v575 = vpack.c.b16 %v573, %v573
          %v576 = vpack.c.b16 %v574, %v574
          %579 = vst [vmem:[%s380] sm:$0xf] %v575
          %580 = vst [vmem:[%s380 + $0x4] sm:$0xf] %v576
        $region89: #{image2smiles_forward.12} parent=76 // pred_fallthru
          _
        %s581 = sand.u32 %s169, 1
        %s582 = sand.u32 %s169, 1
        %s583 = smul.addr %s582, 8
        %s584 = scalar_lea.vmem [#allocation4], %s583
        // Predicated region
        $region90: #{image2smiles_forward.12} parent=76 // pred_check
          %p585 = pneg %p179
        $region91: #{image2smiles_forward.12} parent=76 // pred_check_branch
          %587 = sbr.rel (%p585) target = $region93
        $region92: #{image2smiles_forward.12} parent=76 // pred_region
          %s588 = smul.u32 2, %s21
          %s589 = smul.addr %s588, 3
          %s590 = sadd.s32 %s22, %s589
          %s591 = smul.addr %s590, 4
          %s592 = scalar_lea.vmem %s5, %s591
          // Predicated region
          $region94: #{image2smiles_forward.12} parent=92 // pred_check
            _
          $region95: #{image2smiles_forward.12} parent=92 // pred_check_branch
            %594 = sbr.rel (0) target = $region97
          $region96: #{image2smiles_forward.12} parent=92 // pred_region
            // Predicated region
            $region98: #{image2smiles_forward.12} parent=96 // pred_check
              _
            $region99: #{image2smiles_forward.12} parent=96 // pred_check_branch
              %596 = sbr.rel target = $region101
            $region100: #{image2smiles_forward.12} parent=96 // pred_region
              // Predicated region
              $region113: #{image2smiles_forward.12} parent=100 // pred_check
                _
              $region114: #{image2smiles_forward.12} parent=100 // pred_check_branch
                %613 = sbr.rel (0) target = $region116
              $region115: #{image2smiles_forward.12} parent=100 // pred_region
                loop: start=0, step=1, limit=1
                $region117: #{image2smiles_forward.12} parent=115 // loop_pre_header
                  _
                $region118: #{image2smiles_forward.12} parent=115 // loop_header
                  %s615 = sphi 0, %s619
                  %p616 = scmp.ge.s32.totalorder %s615, 1
                  %s620 = sphi %s584, %s584
                  %s621 = sphi %s592, %s592
                $region119: #{image2smiles_forward.12} parent=115 // loop_header_branch
                  %618 = sbr.rel (%p616) target = $region123
                $region120: #{image2smiles_forward.12} parent=115 // loop_body
                  _
                $region121: #{image2smiles_forward.12} parent=115 // loop_footer
                  %s619 = sadd.s32 1, %s615
                $region122: #{image2smiles_forward.12} parent=115 // loop_footer_branch
                  %614 = sbr.rel target = $region118
                $region123: #{image2smiles_forward.12} parent=115 // loop_exit
                  _
                loop: start=0, step=1, limit=1
                $region124: #{image2smiles_forward.12} parent=115 // loop_pre_header
                  _
                $region125: #{image2smiles_forward.12} parent=115 // loop_header
                  %s624 = sphi 0, %s628
                  %p625 = scmp.ge.s32.totalorder %s624, 1
                  %s629 = sphi %s584, %s584
                  %s630 = sphi %s592, %s592
                $region126: #{image2smiles_forward.12} parent=115 // loop_header_branch
                  %627 = sbr.rel (%p625) target = $region130
                $region127: #{image2smiles_forward.12} parent=115 // loop_body
                  %v631 = vld [vmem:[%s629] sm:$0xf]
                  %632 = vst [vmem:[%s630] sm:$0xf] %v631
                  %v633 = vld [vmem:[%s629 + $0x4] sm:$0xf]
                  %634 = vst [vmem:[%s630 + $0xc] sm:$0xf] %v633
                $region128: #{image2smiles_forward.12} parent=115 // loop_footer
                  %s628 = sadd.s32 1, %s624
                $region129: #{image2smiles_forward.12} parent=115 // loop_footer_branch
                  %623 = sbr.rel target = $region125
                $region130: #{image2smiles_forward.12} parent=115 // loop_exit
                  _
              $region116: #{image2smiles_forward.12} parent=100 // pred_fallthru
                _
            $region101: #{image2smiles_forward.12} parent=96 // pred_fallthru
              _
            // Predicated region
            $region102: #{image2smiles_forward.12} parent=96 // pred_check
              _
            $region103: #{image2smiles_forward.12} parent=96 // pred_check_branch
              %598 = sbr.rel (0) target = $region105
            $region104: #{image2smiles_forward.12} parent=96 // pred_region
              loop: start=0, step=1, limit=1
              $region106: #{image2smiles_forward.12} parent=104 // loop_pre_header
                _
              $region107: #{image2smiles_forward.12} parent=104 // loop_header
                %s601 = sphi 0, %s605
                %p602 = scmp.ge.s32.totalorder %s601, 1
                %s606 = sphi %s584, %s584
                %s607 = sphi %s592, %s592
              $region108: #{image2smiles_forward.12} parent=104 // loop_header_branch
                %604 = sbr.rel (%p602) target = $region112
              $region109: #{image2smiles_forward.12} parent=104 // loop_body
                %v608 = vld [vmem:[%s606] sm:$0xf]
                %609 = vst [vmem:[%s607] sm:$0xf] %v608
                %v610 = vld [vmem:[%s606 + $0x4] sm:$0xf]
                %611 = vst [vmem:[%s607 + $0xc] sm:$0xf] %v610
              $region110: #{image2smiles_forward.12} parent=104 // loop_footer
                %s605 = sadd.s32 1, %s601
              $region111: #{image2smiles_forward.12} parent=104 // loop_footer_branch
                %600 = sbr.rel target = $region107
              $region112: #{image2smiles_forward.12} parent=104 // loop_exit
                _
            $region105: #{image2smiles_forward.12} parent=96 // pred_fallthru
              _
          $region97: #{image2smiles_forward.12} parent=92 // pred_fallthru
            _
          %635 = vnop
        $region93: #{image2smiles_forward.12} parent=76 // pred_fallthru
          _
      $region77: #{image2smiles_forward.12} parent=5 // pred_fallthru
        _
      %p636 = scmp.le.s32.totalorder 2, %s11
      // Predicated region
      $region131: #{image2smiles_forward.12} parent=5 // pred_check
        %p637 = pneg %p636
      $region132: #{image2smiles_forward.12} parent=5 // pred_check_branch
        %639 = sbr.rel (%p637) target = $region134
      $region133: #{image2smiles_forward.12} parent=5 // pred_region
        %s640 = ssub.s32 %s11, 2
        // Predicated region
        $region135: #{image2smiles_forward.12} parent=133 // pred_check
          %p641 = pneg %p185
        $region136: #{image2smiles_forward.12} parent=133 // pred_check_branch
          %643 = sbr.rel (%p641) target = $region138
        $region137: #{image2smiles_forward.12} parent=133 // pred_region
          %s644 = sand.u32 %s170, 1
          %s645 = sand.u32 %s170, 1
          %s646 = smul.addr %s645, 8
          %s647 = scalar_lea.vmem [#allocation4], %s646
        $region138: #{image2smiles_forward.12} parent=133 // pred_fallthru
          _
      $region134: #{image2smiles_forward.12} parent=5 // pred_fallthru
        _
    $region6: #{image2smiles_forward.12} parent=1 // loop_footer
      %s15 = sadd.s32 1, %s11
    $region7: #{image2smiles_forward.12} parent=1 // loop_footer_branch
      %10 = sbr.rel target = $region3
    $region8: #{image2smiles_forward.12} parent=1 // loop_exit
      _

// kernel: image2smiles_forward.11
$region0: #{image2smiles_forward.11}
  #allocation0 [shape = 'u32[]', space=smem, size = 0x4, offset = 0x4, fixed_abs, tag = 'smem constant byte address 0x4 - core index']
  #allocation1 [shape = 'u32[144,128]{1,0:T(1,128)}', space=vmem, size = 0x12000, scoped, tag = 'internal scratch']
  #allocation2 [shape = 'f32[32,128]{1,0:T(8,128)}', space=vmem, size = 0x4000, scoped, tag = 'scratch operand']
  %s0 = inlined_call_operand.vmem [shape: f32[32,64], index: 0, kind: input, shape index: {}]
  %s1 = inlined_call_operand.vmem [shape: bf16[64,128], index: 1, kind: input, shape index: {}]
  %s2 = inlined_call_operand.vmem [shape: f32[1,128], index: 2, kind: input, shape index: {}]
  %s3 = inlined_call_operand.vmem [shape: bf16[32,128], index: 3, kind: output, shape index: {}]
  %s4 = sld [smem:[#allocation0]]
  $region30: #{image2smiles_forward.11} parent=0
    _
  %s6 = ssub.s32 1, %s4
  %s7 = scalar_select 0, %s6, %s4
  // Predicated region
  $region2: #{image2smiles_forward.11} parent=0 // pred_check
    _
  $region3: #{image2smiles_forward.11} parent=0 // pred_check_branch
    %9 = sbr.rel (0) target = $region5
  $region4: #{image2smiles_forward.11} parent=0 // pred_region
    _
  $region5: #{image2smiles_forward.11} parent=0 // pred_fallthru
    _
  // Predicated region
  $region6: #{image2smiles_forward.11} parent=0 // pred_check
    _
  $region7: #{image2smiles_forward.11} parent=0 // pred_check_branch
    %11 = sbr.rel (0) target = $region9
  $region8: #{image2smiles_forward.11} parent=0 // pred_region
    _
  $region9: #{image2smiles_forward.11} parent=0 // pred_fallthru
    _
  // Predicated region
  $region10: #{image2smiles_forward.11} parent=0 // pred_check
    _
  $region11: #{image2smiles_forward.11} parent=0 // pred_check_branch
    %13 = sbr.rel (0) target = $region13
  $region12: #{image2smiles_forward.11} parent=0 // pred_region
    _
  $region13: #{image2smiles_forward.11} parent=0 // pred_fallthru
    _
  %p15 = scmp.eq.s32.totalorder 0, 0
  // Predicated region
  $region14: #{image2smiles_forward.11} parent=0 // pred_check
    %p16 = pneg %p15
  $region15: #{image2smiles_forward.11} parent=0 // pred_check_branch
    %18 = sbr.rel (%p16) target = $region17
  $region16: #{image2smiles_forward.11} parent=0 // pred_region
    %19 = vst [vmem:[#allocation2] sm:$0xff] 0.0
    %20 = vst [vmem:[#allocation2 + $0x8] sm:$0xff] 0.0
    %21 = vst [vmem:[#allocation2 + $0x10] sm:$0xff] 0.0
    %22 = vst [vmem:[#allocation2 + $0x18] sm:$0xff] 0.0
  $region17: #{image2smiles_forward.11} parent=0 // pred_fallthru
    _
  %v23 = vld [vmem:[%s0] sm:$0xff]
  %v24 = vld [vmem:[%s0 + $0x8] sm:$0xff]
  %v25 = vld [vmem:[%s0 + $0x10] sm:$0xff]
  %v26 = vld [vmem:[%s0 + $0x18] sm:$0xff]
  %v27 = vpack.c.bf16 %v24, %v23
  %v28 = vpack.c.bf16 %v26, %v25
  %v29 = vld [vmem:[#allocation2] sm:$0xff]
  %v30 = vld [vmem:[#allocation2 + $0x8] sm:$0xff]
  %v31 = vld [vmem:[#allocation2 + $0x10] sm:$0xff]
  %v32 = vld [vmem:[#allocation2 + $0x18] sm:$0xff]
  %v33 = vld [vmem:[%s1] sm:$0xf]
  %v34 = vld [vmem:[%s1 + $0x4] sm:$0xf]
  %v35 = vld [vmem:[%s1 + $0x8] sm:$0xf]
  %v36 = vld [vmem:[%s1 + $0xc] sm:$0xf]
  %v37 = vld [vmem:[%s1 + $0x10] sm:$0xf]
  %v38 = vld [vmem:[%s1 + $0x14] sm:$0xf]
  %v39 = vld [vmem:[%s1 + $0x18] sm:$0xf]
  %v40 = vld [vmem:[%s1 + $0x1c] sm:$0xf]
  %v49 = vunpack.c.l.b16 %v33
  %v50 = vunpack.c.l.b16 %v34
  %v51 = vunpack.c.l.b16 %v35
  %v52 = vunpack.c.l.b16 %v36
  %v53 = vunpack.c.l.b16 %v37
  %v54 = vunpack.c.l.b16 %v38
  %v55 = vunpack.c.l.b16 %v39
  %v56 = vunpack.c.l.b16 %v40
  %v57 = vpack.c.b16 %v50, %v49
  %v58 = vpack.c.b16 %v52, %v51
  %v59 = vpack.c.b16 %v54, %v53
  %v60 = vpack.c.b16 %v56, %v55
  %vm65 = vcmask 523264
  %v67 = vsel %vm65, %v27, 0
  %v70 = vsel %vm65, %v28, 0
  %72 = vmatprep.subr.bf16.mxu0 0
  %73 = vmatpush1.bf16.msra.mxu0 %v57
  %74 = vmatprep.subr.bf16.mxu0 0
  %75 = vmatpush1.bf16.msra.mxu0 %v58
  %76 = vmatprep.subr.bf16.mxu0 0
  %77 = vmatpush1.bf16.msra.mxu0 %v59
  %78 = vmatprep.subr.bf16.mxu0 0
  %79 = vmatpush1.bf16.msra.mxu0 %v60
  %80 = vmatprep.subr.bf16.mxu0 0
  %81 = vmatpush1.bf16.msra.mxu0 0
  %82 = vmatprep.subr.bf16.mxu0 0
  %83 = vmatpush1.bf16.msra.mxu0 0
  %84 = vmatprep.subr.bf16.mxu0 0
  %85 = vmatpush1.bf16.msra.mxu0 0
  %86 = vmatprep.subr.bf16.mxu0 0
  %87 = vmatpush1.bf16.msra.mxu0 0
  %88 = vmatprep.subr.bf16.mxu0 0
  %89 = vmatpush1.bf16.msra.mxu0 0
  %90 = vmatprep.subr.bf16.mxu0 0
  %91 = vmatpush1.bf16.msra.mxu0 0
  %92 = vmatprep.subr.bf16.mxu0 0
  %93 = vmatpush1.bf16.msra.mxu0 0
  %94 = vmatprep.subr.bf16.mxu0 0
  %95 = vmatpush1.bf16.msra.mxu0 0
  %96 = vmatprep.subr.bf16.mxu0 0
  %97 = vmatpush1.bf16.msra.mxu0 0
  %98 = vmatprep.subr.bf16.mxu0 0
  %99 = vmatpush1.bf16.msra.mxu0 0
  %100 = vmatprep.subr.bf16.mxu0 0
  %101 = vmatpush1.bf16.msra.mxu0 0
  %102 = vmatprep.subr.bf16.mxu0 0
  %103 = vmatpush1.bf16.msra.mxu0 0
  %104 = vmatprep.mubr.bf16.mxu0 0
  %105 = vmatmul.mubr.bf16.gmra.mrb[0].mxu0 %v67
  %v106 = vpop.f32.mrb[0].mxu0
  %v107 = vadd.f32 0.0, %v106
  %v108 = vpop.f32.mrb[0].mxu0
  %v109 = vpop.f32.mrb[0].mxu0
  %v110 = vadd.f32 0.0, %v109
  %v111 = vpop.f32.mrb[0].mxu0
  %112 = vmatprep.mubr.bf16.mxu0 0
  %113 = vmatmul.mubr.bf16.gmra.mrb[0].mxu0 %v70
  %v114 = vpop.f32.mrb[0].mxu0
  %v115 = vadd.f32 0.0, %v114
  %v116 = vpop.f32.mrb[0].mxu0
  %v117 = vpop.f32.mrb[0].mxu0
  %v118 = vadd.f32 0.0, %v117
  %v119 = vpop.f32.mrb[0].mxu0
  %120 = vdwg.mxu0
  %v121 = vadd.f32 %v29, %v107
  %v122 = vadd.f32 %v30, %v110
  %v123 = vadd.f32 %v31, %v115
  %v124 = vadd.f32 %v32, %v118
  %125 = vst [vmem:[#allocation2] sm:$0xff] %v121
  %126 = vst [vmem:[#allocation2 + $0x8] sm:$0xff] %v122
  %127 = vst [vmem:[#allocation2 + $0x10] sm:$0xff] %v123
  %128 = vst [vmem:[#allocation2 + $0x18] sm:$0xff] %v124
  // Predicated region
  $region18: #{image2smiles_forward.11} parent=0 // pred_check
    %p129 = pneg %p15
  $region19: #{image2smiles_forward.11} parent=0 // pred_check_branch
    %131 = sbr.rel (%p129) target = $region21
  $region20: #{image2smiles_forward.11} parent=0 // pred_region
    %v132 = vld [vmem:[#allocation2] sm:$0xff]
    %v133 = vld [vmem:[#allocation2 + $0x8] sm:$0xff]
    %v134 = vld [vmem:[#allocation2 + $0x10] sm:$0xff]
    %v135 = vld [vmem:[#allocation2 + $0x18] sm:$0xff]
    %v136 = vld [vmem:[%s2] sm:$0x1]
    %v138 = vlaneseq
    %v139 = vshrl.u32 %v138, 7
    %v140 = vsub.s32 0, %v139
    %v141 = vrot.slane %v136, %v140
    %v143 = vadd.f32 %v132, %v141
    %v144 = vadd.f32 %v133, %v141
    %v145 = vadd.f32 %v134, %v141
    %v146 = vadd.f32 %v135, %v141
    %v147 = vmax.f32 %v143, 0.0
    %v148 = vmax.f32 %v144, 0.0
    %v149 = vmax.f32 %v145, 0.0
    %v150 = vmax.f32 %v146, 0.0
    %v151 = vpack.c.bf16 %v148, %v147
    %v152 = vpack.c.bf16 %v150, %v149
    %v155 = vunpack.c.l.b16 %v151
    %v156 = vunpack.c.h.b16 %v151
    %v157 = vunpack.c.l.b16 %v152
    %v158 = vunpack.c.h.b16 %v152
    %v159 = vpack.c.b16 %v155, %v155
    %v160 = vpack.c.b16 %v156, %v156
    %v161 = vpack.c.b16 %v157, %v157
    %v162 = vpack.c.b16 %v158, %v158
    %167 = vst [vmem:[%s3] sm:$0xf] %v159
    %168 = vst [vmem:[%s3 + $0x4] sm:$0xf] %v160
    %169 = vst [vmem:[%s3 + $0x8] sm:$0xf] %v161
    %170 = vst [vmem:[%s3 + $0xc] sm:$0xf] %v162
  $region21: #{image2smiles_forward.11} parent=0 // pred_fallthru
    _
  // Predicated region
  $region22: #{image2smiles_forward.11} parent=0 // pred_check
    _
  $region23: #{image2smiles_forward.11} parent=0 // pred_check_branch
    %172 = sbr.rel (0) target = $region25
  $region24: #{image2smiles_forward.11} parent=0 // pred_region
    _
  $region25: #{image2smiles_forward.11} parent=0 // pred_fallthru
    _
  // Predicated region
  $region26: #{image2smiles_forward.11} parent=0 // pred_check
    _
  $region27: #{image2smiles_forward.11} parent=0 // pred_check_branch
    %174 = sbr.rel (0) target = $region29
  $region28: #{image2smiles_forward.11} parent=0 // pred_region
    _
  $region29: #{image2smiles_forward.11} parent=0 // pred_fallthru
    _

// kernel: image2smiles_forward.16
$region0: #{image2smiles_forward.16}
  #allocation0 [shape = 'u32[]', space=smem, size = 0x4, offset = 0x4, fixed_abs, tag = 'smem constant byte address 0x4 - core index']
  #allocation1 [shape = 'u32[144,128]{1,0:T(1,128)}', space=vmem, size = 0x12000, scoped, tag = 'internal scratch']
  #allocation2 [shape = 'f32[32,256]{1,0:T(8,128)}', space=vmem, size = 0x8000, scoped, tag = 'scratch operand']
  %s0 = inlined_call_operand.vmem [shape: bf16[32,128], index: 0, kind: input, shape index: {}]
  %s1 = inlined_call_operand.vmem [shape: bf16[128,256], index: 1, kind: input, shape index: {}]
  %s2 = inlined_call_operand.vmem [shape: f32[1,256], index: 2, kind: input, shape index: {}]
  %s3 = inlined_call_operand.vmem [shape: bf16[32,256], index: 3, kind: output, shape index: {}]
  %s4 = sld [smem:[#allocation0]]
  $region30: #{image2smiles_forward.16} parent=0
    _
  %s6 = ssub.s32 1, %s4
  %s7 = scalar_select 0, %s6, %s4
  // Predicated region
  $region2: #{image2smiles_forward.16} parent=0 // pred_check
    _
  $region3: #{image2smiles_forward.16} parent=0 // pred_check_branch
    %9 = sbr.rel (0) target = $region5
  $region4: #{image2smiles_forward.16} parent=0 // pred_region
    _
  $region5: #{image2smiles_forward.16} parent=0 // pred_fallthru
    _
  // Predicated region
  $region6: #{image2smiles_forward.16} parent=0 // pred_check
    _
  $region7: #{image2smiles_forward.16} parent=0 // pred_check_branch
    %11 = sbr.rel (0) target = $region9
  $region8: #{image2smiles_forward.16} parent=0 // pred_region
    _
  $region9: #{image2smiles_forward.16} parent=0 // pred_fallthru
    _
  // Predicated region
  $region10: #{image2smiles_forward.16} parent=0 // pred_check
    _
  $region11: #{image2smiles_forward.16} parent=0 // pred_check_branch
    %13 = sbr.rel (0) target = $region13
  $region12: #{image2smiles_forward.16} parent=0 // pred_region
    _
  $region13: #{image2smiles_forward.16} parent=0 // pred_fallthru
    _
  %p15 = scmp.eq.s32.totalorder 0, 0
  // Predicated region
  $region14: #{image2smiles_forward.16} parent=0 // pred_check
    %p16 = pneg %p15
  $region15: #{image2smiles_forward.16} parent=0 // pred_check_branch
    %18 = sbr.rel (%p16) target = $region17
  $region16: #{image2smiles_forward.16} parent=0 // pred_region
    %19 = vst [vmem:[#allocation2] sm:$0xff] 0.0
    %20 = vst [vmem:[#allocation2 + $0x8] sm:$0xff] 0.0
    %21 = vst [vmem:[#allocation2 + $0x10] sm:$0xff] 0.0
    %22 = vst [vmem:[#allocation2 + $0x18] sm:$0xff] 0.0
    %23 = vst [vmem:[#allocation2 + $0x20] sm:$0xff] 0.0
    %24 = vst [vmem:[#allocation2 + $0x28] sm:$0xff] 0.0
    %25 = vst [vmem:[#allocation2 + $0x30] sm:$0xff] 0.0
    %26 = vst [vmem:[#allocation2 + $0x38] sm:$0xff] 0.0
  $region17: #{image2smiles_forward.16} parent=0 // pred_fallthru
    _
  %v27 = vld [vmem:[%s0] sm:$0xf]
  %v28 = vld [vmem:[%s0 + $0x4] sm:$0xf]
  %v29 = vld [vmem:[%s0 + $0x8] sm:$0xf]
  %v30 = vld [vmem:[%s0 + $0xc] sm:$0xf]
  %v31 = vld [vmem:[#allocation2] sm:$0xff]
  %v32 = vld [vmem:[#allocation2 + $0x8] sm:$0xff]
  %v33 = vld [vmem:[#allocation2 + $0x10] sm:$0xff]
  %v34 = vld [vmem:[#allocation2 + $0x18] sm:$0xff]
  %v35 = vld [vmem:[#allocation2 + $0x20] sm:$0xff]
  %v36 = vld [vmem:[#allocation2 + $0x28] sm:$0xff]
  %v37 = vld [vmem:[#allocation2 + $0x30] sm:$0xff]
  %v38 = vld [vmem:[#allocation2 + $0x38] sm:$0xff]
  %v39 = vld [vmem:[%s1] sm:$0xff]
  %v40 = vld [vmem:[%s1 + $0x8] sm:$0xff]
  %v41 = vld [vmem:[%s1 + $0x10] sm:$0xff]
  %v42 = vld [vmem:[%s1 + $0x18] sm:$0xff]
  %v43 = vld [vmem:[%s1 + $0x20] sm:$0xff]
  %v44 = vld [vmem:[%s1 + $0x28] sm:$0xff]
  %v45 = vld [vmem:[%s1 + $0x30] sm:$0xff]
  %v46 = vld [vmem:[%s1 + $0x38] sm:$0xff]
  %v47 = vld [vmem:[%s1 + $0x40] sm:$0xff]
  %v48 = vld [vmem:[%s1 + $0x48] sm:$0xff]
  %v49 = vld [vmem:[%s1 + $0x50] sm:$0xff]
  %v50 = vld [vmem:[%s1 + $0x58] sm:$0xff]
  %v51 = vld [vmem:[%s1 + $0x60] sm:$0xff]
  %v52 = vld [vmem:[%s1 + $0x68] sm:$0xff]
  %v53 = vld [vmem:[%s1 + $0x70] sm:$0xff]
  %v54 = vld [vmem:[%s1 + $0x78] sm:$0xff]
  %v59 = vunpack.c.l.b16 %v27
  %v60 = vunpack.c.l.b16 %v28
  %v61 = vunpack.c.l.b16 %v29
  %v62 = vunpack.c.l.b16 %v30
  %v63 = vpack.c.b16 %v60, %v59
  %v64 = vpack.c.b16 %v62, %v61
  %v83 = vunpack.c.l.b16 %v39
  %v84 = vunpack.c.h.b16 %v39
  %v85 = vunpack.c.l.b16 %v40
  %v86 = vunpack.c.h.b16 %v40
  %v87 = vunpack.c.l.b16 %v41
  %v88 = vunpack.c.h.b16 %v41
  %v89 = vunpack.c.l.b16 %v42
  %v90 = vunpack.c.h.b16 %v42
  %v91 = vunpack.c.l.b16 %v43
  %v92 = vunpack.c.h.b16 %v43
  %v93 = vunpack.c.l.b16 %v44
  %v94 = vunpack.c.h.b16 %v44
  %v95 = vunpack.c.l.b16 %v45
  %v96 = vunpack.c.h.b16 %v45
  %v97 = vunpack.c.l.b16 %v46
  %v98 = vunpack.c.h.b16 %v46
  %v99 = vunpack.c.l.b16 %v47
  %v100 = vunpack.c.h.b16 %v47
  %v101 = vunpack.c.l.b16 %v48
  %v102 = vunpack.c.h.b16 %v48
  %v103 = vunpack.c.l.b16 %v49
  %v104 = vunpack.c.h.b16 %v49
  %v105 = vunpack.c.l.b16 %v50
  %v106 = vunpack.c.h.b16 %v50
  %v107 = vunpack.c.l.b16 %v51
  %v108 = vunpack.c.h.b16 %v51
  %v109 = vunpack.c.l.b16 %v52
  %v110 = vunpack.c.h.b16 %v52
  %v111 = vunpack.c.l.b16 %v53
  %v112 = vunpack.c.h.b16 %v53
  %v113 = vunpack.c.l.b16 %v54
  %v114 = vunpack.c.h.b16 %v54
  %v115 = vpack.c.b16 %v85, %v83
  %v116 = vpack.c.b16 %v86, %v84
  %v117 = vpack.c.b16 %v89, %v87
  %v118 = vpack.c.b16 %v90, %v88
  %v119 = vpack.c.b16 %v93, %v91
  %v120 = vpack.c.b16 %v94, %v92
  %v121 = vpack.c.b16 %v97, %v95
  %v122 = vpack.c.b16 %v98, %v96
  %v123 = vpack.c.b16 %v101, %v99
  %v124 = vpack.c.b16 %v102, %v100
  %v125 = vpack.c.b16 %v105, %v103
  %v126 = vpack.c.b16 %v106, %v104
  %v127 = vpack.c.b16 %v109, %v107
  %v128 = vpack.c.b16 %v110, %v108
  %v129 = vpack.c.b16 %v113, %v111
  %v130 = vpack.c.b16 %v114, %v112
  %147 = vmatprep.subr.bf16.mxu0 %v116
  %148 = vmatpush1.bf16.msra.mxu0 %v115
  %149 = vmatprep.subr.bf16.mxu0 %v118
  %150 = vmatpush1.bf16.msra.mxu0 %v117
  %151 = vmatprep.subr.bf16.mxu0 %v120
  %152 = vmatpush1.bf16.msra.mxu0 %v119
  %153 = vmatprep.subr.bf16.mxu0 %v122
  %154 = vmatpush1.bf16.msra.mxu0 %v121
  %155 = vmatprep.subr.bf16.mxu0 %v124
  %156 = vmatpush1.bf16.msra.mxu0 %v123
  %157 = vmatprep.subr.bf16.mxu0 %v126
  %158 = vmatpush1.bf16.msra.mxu0 %v125
  %159 = vmatprep.subr.bf16.mxu0 %v128
  %160 = vmatpush1.bf16.msra.mxu0 %v127
  %161 = vmatprep.subr.bf16.mxu0 %v130
  %162 = vmatpush1.bf16.msra.mxu0 %v129
  %163 = vmatprep.subr.bf16.mxu0 0
  %164 = vmatpush1.bf16.msra.mxu0 0
  %165 = vmatprep.subr.bf16.mxu0 0
  %166 = vmatpush1.bf16.msra.mxu0 0
  %167 = vmatprep.subr.bf16.mxu0 0
  %168 = vmatpush1.bf16.msra.mxu0 0
  %169 = vmatprep.subr.bf16.mxu0 0
  %170 = vmatpush1.bf16.msra.mxu0 0
  %171 = vmatprep.subr.bf16.mxu0 0
  %172 = vmatpush1.bf16.msra.mxu0 0
  %173 = vmatprep.subr.bf16.mxu0 0
  %174 = vmatpush1.bf16.msra.mxu0 0
  %175 = vmatprep.subr.bf16.mxu0 0
  %176 = vmatpush1.bf16.msra.mxu0 0
  %177 = vmatprep.subr.bf16.mxu0 0
  %178 = vmatpush1.bf16.msra.mxu0 0
  %179 = vmatprep.mubr.bf16.mxu0 0
  %180 = vmatmul.mubr.bf16.gmra.mrb[0].mxu0 %v63
  %v181 = vpop.f32.mrb[0].mxu0
  %v182 = vadd.f32 0.0, %v181
  %v183 = vpop.f32.mrb[0].mxu0
  %v184 = vadd.f32 0.0, %v183
  %v185 = vpop.f32.mrb[0].mxu0
  %v186 = vadd.f32 0.0, %v185
  %v187 = vpop.f32.mrb[0].mxu0
  %v188 = vadd.f32 0.0, %v187
  %189 = vmatprep.mubr.bf16.mxu0 0
  %190 = vmatmul.mubr.bf16.gmra.mrb[0].mxu0 %v64
  %v191 = vpop.f32.mrb[0].mxu0
  %v192 = vadd.f32 0.0, %v191
  %v193 = vpop.f32.mrb[0].mxu0
  %v194 = vadd.f32 0.0, %v193
  %v195 = vpop.f32.mrb[0].mxu0
  %v196 = vadd.f32 0.0, %v195
  %v197 = vpop.f32.mrb[0].mxu0
  %v198 = vadd.f32 0.0, %v197
  %199 = vdwg.mxu0
  %v200 = vadd.f32 %v31, %v182
  %v201 = vadd.f32 %v32, %v184
  %v202 = vadd.f32 %v33, %v186
  %v203 = vadd.f32 %v34, %v188
  %v204 = vadd.f32 %v35, %v192
  %v205 = vadd.f32 %v36, %v194
  %v206 = vadd.f32 %v37, %v196
  %v207 = vadd.f32 %v38, %v198
  %208 = vst [vmem:[#allocation2] sm:$0xff] %v200
  %209 = vst [vmem:[#allocation2 + $0x8] sm:$0xff] %v201
  %210 = vst [vmem:[#allocation2 + $0x10] sm:$0xff] %v202
  %211 = vst [vmem:[#allocation2 + $0x18] sm:$0xff] %v203
  %212 = vst [vmem:[#allocation2 + $0x20] sm:$0xff] %v204
  %213 = vst [vmem:[#allocation2 + $0x28] sm:$0xff] %v205
  %214 = vst [vmem:[#allocation2 + $0x30] sm:$0xff] %v206
  %215 = vst [vmem:[#allocation2 + $0x38] sm:$0xff] %v207
  // Predicated region
  $region18: #{image2smiles_forward.16} parent=0 // pred_check
    %p216 = pneg %p15
  $region19: #{image2smiles_forward.16} parent=0 // pred_check_branch
    %218 = sbr.rel (%p216) target = $region21
  $region20: #{image2smiles_forward.16} parent=0 // pred_region
    %v219 = vld [vmem:[#allocation2] sm:$0xff]
    %v220 = vld [vmem:[#allocation2 + $0x8] sm:$0xff]
    %v221 = vld [vmem:[#allocation2 + $0x10] sm:$0xff]
    %v222 = vld [vmem:[#allocation2 + $0x18] sm:$0xff]
    %v223 = vld [vmem:[#allocation2 + $0x20] sm:$0xff]
    %v224 = vld [vmem:[#allocation2 + $0x28] sm:$0xff]
    %v225 = vld [vmem:[#allocation2 + $0x30] sm:$0xff]
    %v226 = vld [vmem:[#allocation2 + $0x38] sm:$0xff]
    %v227 = vld [vmem:[%s2] sm:$0x3]
    %v229 = vlaneseq
    %v230 = vshrl.u32 %v229, 7
    %v231 = vsub.s32 0, %v230
    %v232 = vrot.slane %v227, %v231
    %v233 = vlaneseq
    %v234 = vshrl.u32 %v233, 7
    %v235 = vsub.s32 1, %v234
    %v236 = vrot.slane %v227, %v235
    %v239 = vadd.f32 %v219, %v232
    %v240 = vadd.f32 %v220, %v236
    %v241 = vadd.f32 %v221, %v232
    %v242 = vadd.f32 %v222, %v236
    %v243 = vadd.f32 %v223, %v232
    %v244 = vadd.f32 %v224, %v236
    %v245 = vadd.f32 %v225, %v232
    %v246 = vadd.f32 %v226, %v236
    %v247 = vpack.c.bf16 %v241, %v239
    %v248 = vpack.c.bf16 %v242, %v240
    %v249 = vpack.c.bf16 %v245, %v243
    %v250 = vpack.c.bf16 %v246, %v244
    %v255 = vunpack.c.l.b16 %v247
    %v256 = vunpack.c.l.b16 %v248
    %v257 = vunpack.c.h.b16 %v247
    %v258 = vunpack.c.h.b16 %v248
    %v259 = vunpack.c.l.b16 %v249
    %v260 = vunpack.c.l.b16 %v250
    %v261 = vunpack.c.h.b16 %v249
    %v262 = vunpack.c.h.b16 %v250
    %v263 = vpack.c.b16 %v256, %v255
    %v264 = vpack.c.b16 %v258, %v257
    %v265 = vpack.c.b16 %v260, %v259
    %v266 = vpack.c.b16 %v262, %v261
    %271 = vst [vmem:[%s3] sm:$0xff] %v263
    %272 = vst [vmem:[%s3 + $0x8] sm:$0xff] %v264
    %273 = vst [vmem:[%s3 + $0x10] sm:$0xff] %v265
    %274 = vst [vmem:[%s3 + $0x18] sm:$0xff] %v266
  $region21: #{image2smiles_forward.16} parent=0 // pred_fallthru
    _
  // Predicated region
  $region22: #{image2smiles_forward.16} parent=0 // pred_check
    _
  $region23: #{image2smiles_forward.16} parent=0 // pred_check_branch
    %276 = sbr.rel (0) target = $region25
  $region24: #{image2smiles_forward.16} parent=0 // pred_region
    _
  $region25: #{image2smiles_forward.16} parent=0 // pred_fallthru
    _
  // Predicated region
  $region26: #{image2smiles_forward.16} parent=0 // pred_check
    _
  $region27: #{image2smiles_forward.16} parent=0 // pred_check_branch
    %278 = sbr.rel (0) target = $region29
  $region28: #{image2smiles_forward.16} parent=0 // pred_region
    _
  $region29: #{image2smiles_forward.16} parent=0 // pred_fallthru
    _

// kernel: image2smiles_forward.17
$region0: #{image2smiles_forward.17}
  #allocation0 [shape = 'u32[]', space=smem, size = 0x4, offset = 0x4, fixed_abs, tag = 'smem constant byte address 0x4 - core index']
  #allocation1 [shape = 'u32[144,128]{1,0:T(1,128)}', space=vmem, size = 0x12000, scoped, tag = 'internal scratch']
  #allocation2 [shape = 'f32[8,1]{1,0:T(8,128)}', space=vmem, size = 0x1000, scoped, tag = 'scratch operand']
  #allocation3 [shape = 'f32[8,1]{1,0:T(8,128)}', space=vmem, size = 0x1000, scoped, tag = 'scratch operand']
  #allocation4 [shape = 'f32[8,128]{1,0:T(8,128)}', space=vmem, size = 0x1000, scoped, tag = 'scratch operand']
  %s0 = inlined_call_operand.vmem [shape: bf16[2,8,128], index: 0, kind: input, shape index: {}]
  %s1 = inlined_call_operand.vmem [shape: bf16[2,16,256], index: 1, kind: input, shape index: {}, may-alias: {1,2}]
  %s2 = inlined_call_operand.vmem [shape: bf16[2,16,256], index: 2, kind: input, shape index: {}, may-alias: {1,2}]
  %s3 = inlined_call_operand.vmem [shape: bf16[2,8,128], index: 3, kind: output, shape index: {}]
  %s4 = sld [smem:[#allocation0]]
  $region135: #{image2smiles_forward.17} parent=0
    _
  %s6 = ssub.s32 1, %s4
  %s7 = scalar_select 0, %s6, %s4
  $region1: #{image2smiles_forward.17} parent=0
    #allocation5 [shape = 'u8[8192]{0}', space=vmem, size = 0x2000, scoped, tag = 'input window, operand 1']
    #allocation6 [shape = 'u8[8192]{0}', space=vmem, size = 0x2000, scoped, tag = 'input window, operand 2']
    loop: start=0, step=1, limit=4
    $region2: #{image2smiles_forward.17} parent=1 // loop_pre_header
      _
    $region3: #{image2smiles_forward.17} parent=1 // loop_header
      %s9 = sphi 0, %s13
      %p10 = scmp.ge.s32.totalorder %s9, 4
      %s16 = sphi 0, %s35
      %s17 = sphi 0, %s31
      %s18 = sphi 0, %s27
      %s19 = sphi 0, %s16
      %s20 = sphi 0, %s17
      %s21 = sphi 0, %s18
      %s22 = sphi 0, %s19
      %s23 = sphi 0, %s20
      %s24 = sphi 0, %s21
      %s40 = sphi 0, %s42
      %s43 = sphi 0, %s40
      %s44 = sphi 0, %s43
      %s60 = sphi 0, %s44
      %s68 = sphi 0, %s70
      %s71 = sphi 0, %s68
      %s72 = sphi 0, %s71
      %s88 = sphi 0, %s72
      %s96 = sphi 0, %s98
      %s99 = sphi 0, %s96
      %s100 = sphi 0, %s99
      %s116 = sphi 0, %s100
      %s124 = sphi 0, %s126
      %s127 = sphi 0, %s124
      %s128 = sphi 0, %s127
      %s144 = sphi 0, %s128
    $region4: #{image2smiles_forward.17} parent=1 // loop_header_branch
      %12 = sbr.rel (%p10) target = $region8
    $region5: #{image2smiles_forward.17} parent=1 // loop_body
      %s14 = ssub.s32 %s9, 1
      %s15 = ssub.s32 %s9, 2
      %s25 = sadd.s32 1, %s18
      %p26 = scmp.ge.s32.totalorder %s25, 1
      %s27 = scalar_select %p26, 0, %s25
      %s28 = sadd.s32 1, %s17
      %s29 = scalar_select %p26, %s28, %s17
      %p30 = scmp.ge.s32.totalorder %s29, 1
      %s31 = scalar_select %p30, 0, %s29
      %s32 = sadd.s32 1, %s16
      %s33 = scalar_select %p30, %s32, %s16
      %p34 = scmp.ge.s32.totalorder %s33, 2
      %s35 = scalar_select %p34, 0, %s33
      %s36 = ssub.s32 %s16, %s35
      %s37 = ssub.s32 %s17, %s31
      %s38 = sor.u32 %s36, %s37
      %p39 = scmp.eq.s32.totalorder %s38, 0
      %s41 = sadd.s32 %s40, 1
      %s42 = scalar_select %p39, %s40, %s41
      %p45 = pneg %p39
      %p46 = scmp.eq.s32.totalorder %s9, 1
      %p47 = por %p45, %p46
      %p48 = scmp.ne.s32.totalorder %s40, %s43
      %p49 = scmp.eq.s32.totalorder %s9, 0
      %p50 = por %p48, %p49
      %p51 = scmp.ne.s32.totalorder %s40, %s43
      %p52 = scmp.eq.s32.totalorder %s14, 1
      %p53 = por %p51, %p52
      %p54 = scmp.ne.s32.totalorder %s43, %s44
      %p55 = scmp.eq.s32.totalorder %s14, 0
      %p56 = por %p54, %p55
      %p57 = scmp.ne.s32.totalorder %s43, %s44
      %p58 = scmp.eq.s32.totalorder %s15, 1
      %p59 = por %p57, %p58
      %p61 = scmp.ne.s32.totalorder %s44, %s60
      %p62 = scmp.eq.s32.totalorder %s15, 0
      %p63 = por %p61, %p62
      %s64 = ssub.s32 %s16, %s35
      %s65 = ssub.s32 %s18, %s27
      %s66 = sor.u32 %s64, %s65
      %p67 = scmp.eq.s32.totalorder %s66, 0
      %s69 = sadd.s32 %s68, 1
      %s70 = scalar_select %p67, %s68, %s69
      %p73 = pneg %p67
      %p74 = scmp.eq.s32.totalorder %s9, 1
      %p75 = por %p73, %p74
      %p76 = scmp.ne.s32.totalorder %s68, %s71
      %p77 = scmp.eq.s32.totalorder %s9, 0
      %p78 = por %p76, %p77
      %p79 = scmp.ne.s32.totalorder %s68, %s71
      %p80 = scmp.eq.s32.totalorder %s14, 1
      %p81 = por %p79, %p80
      %p82 = scmp.ne.s32.totalorder %s71, %s72
      %p83 = scmp.eq.s32.totalorder %s14, 0
      %p84 = por %p82, %p83
      %p85 = scmp.ne.s32.totalorder %s71, %s72
      %p86 = scmp.eq.s32.totalorder %s15, 1
      %p87 = por %p85, %p86
      %p89 = scmp.ne.s32.totalorder %s72, %s88
      %p90 = scmp.eq.s32.totalorder %s15, 0
      %p91 = por %p89, %p90
      %s92 = ssub.s32 %s16, %s35
      %s93 = ssub.s32 %s18, %s27
      %s94 = sor.u32 %s92, %s93
      %p95 = scmp.eq.s32.totalorder %s94, 0
      %s97 = sadd.s32 %s96, 1
      %s98 = scalar_select %p95, %s96, %s97
      %p101 = pneg %p95
      %p102 = scmp.eq.s32.totalorder %s9, 1
      %p103 = por %p101, %p102
      %p104 = scmp.ne.s32.totalorder %s96, %s99
      %p105 = scmp.eq.s32.totalorder %s9, 0
      %p106 = por %p104, %p105
      %p107 = scmp.ne.s32.totalorder %s96, %s99
      %p108 = scmp.eq.s32.totalorder %s14, 1
      %p109 = por %p107, %p108
      %p110 = scmp.ne.s32.totalorder %s99, %s100
      %p111 = scmp.eq.s32.totalorder %s14, 0
      %p112 = por %p110, %p111
      %p113 = scmp.ne.s32.totalorder %s99, %s100
      %p114 = scmp.eq.s32.totalorder %s15, 1
      %p115 = por %p113, %p114
      %p117 = scmp.ne.s32.totalorder %s100, %s116
      %p118 = scmp.eq.s32.totalorder %s15, 0
      %p119 = por %p117, %p118
      %s120 = ssub.s32 %s16, %s35
      %s121 = ssub.s32 %s17, %s31
      %s122 = sor.u32 %s120, %s121
      %p123 = scmp.eq.s32.totalorder %s122, 0
      %s125 = sadd.s32 %s124, 1
      %s126 = scalar_select %p123, %s124, %s125
      %p129 = pneg %p123
      %p130 = scmp.eq.s32.totalorder %s9, 1
      %p131 = por %p129, %p130
      %p132 = scmp.ne.s32.totalorder %s124, %s127
      %p133 = scmp.eq.s32.totalorder %s9, 0
      %p134 = por %p132, %p133
      %p135 = scmp.ne.s32.totalorder %s124, %s127
      %p136 = scmp.eq.s32.totalorder %s14, 1
      %p137 = por %p135, %p136
      %p138 = scmp.ne.s32.totalorder %s127, %s128
      %p139 = scmp.eq.s32.totalorder %s14, 0
      %p140 = por %p138, %p139
      %p141 = scmp.ne.s32.totalorder %s127, %s128
      %p142 = scmp.eq.s32.totalorder %s15, 1
      %p143 = por %p141, %p142
      %p145 = scmp.ne.s32.totalorder %s128, %s144
      %p146 = scmp.eq.s32.totalorder %s15, 0
      %p147 = por %p145, %p146
      %p148 = scmp.le.s32.totalorder 1, %s9
      %p149 = scmp.lt.s32.totalorder %s9, 3
      %p150 = pnand %p148, %p149
      %p151 = pneg %p150
      // Predicated region
      $region9: #{image2smiles_forward.17} parent=5 // pred_check
        _
      $region10: #{image2smiles_forward.17} parent=5 // pred_check_branch
        %153 = sbr.rel (%p150) target = $region12
      $region11: #{image2smiles_forward.17} parent=5 // pred_region
        %s154 = ssub.s32 %s9, 1
      $region12: #{image2smiles_forward.17} parent=5 // pred_fallthru
        _
      %p155 = scmp.lt.s32.totalorder %s9, 2
      // Predicated region
      $region13: #{image2smiles_forward.17} parent=5 // pred_check
        %p156 = pneg %p155
      $region14: #{image2smiles_forward.17} parent=5 // pred_check_branch
        %158 = sbr.rel (%p156) target = $region16
      $region15: #{image2smiles_forward.17} parent=5 // pred_region
        // Predicated region
        $region17: #{image2smiles_forward.17} parent=15 // pred_check
          %p159 = pneg %p50
        $region18: #{image2smiles_forward.17} parent=15 // pred_check_branch
          %161 = sbr.rel (%p159) target = $region20
        $region19: #{image2smiles_forward.17} parent=15 // pred_region
          %p162 = scmp.lt.s32.totalorder %s16, 1
          %s163 = scalar_select %p162, %s16, 1
          %p164 = scmp.lt.s32.totalorder %s17, 0
          %s165 = scalar_select %p164, %s17, 0
          %s166 = sadd.s32 %s165, %s163
          %s167 = smul.addr %s166, 4
          %s168 = scalar_lea.vmem %s0, %s167
        $region20: #{image2smiles_forward.17} parent=15 // pred_fallthru
          _
        // Predicated region
        $region21: #{image2smiles_forward.17} parent=15 // pred_check
          %p169 = pneg %p78
        $region22: #{image2smiles_forward.17} parent=15 // pred_check_branch
          %171 = sbr.rel (%p169) target = $region24
        $region23: #{image2smiles_forward.17} parent=15 // pred_region
          %s172 = sand.u32 %s68, 1
          %s173 = sand.u32 %s68, 1
          %s174 = smul.addr %s173, 8
          %s175 = scalar_lea.vmem [#allocation5], %s174
          %s176 = smul.u32 2, %s18
          %s177 = smul.addr %s176, 2
          %s178 = smul.addr %s16, 4
          %s179 = sadd.s32 %s177, %s178
          %s180 = smul.addr %s179, 4
          %s181 = scalar_lea.vmem %s1, %s180
          // Predicated region
          $region25: #{image2smiles_forward.17} parent=23 // pred_check
            _
          $region26: #{image2smiles_forward.17} parent=23 // pred_check_branch
            %183 = sbr.rel (0) target = $region28
          $region27: #{image2smiles_forward.17} parent=23 // pred_region
            // Predicated region
            $region29: #{image2smiles_forward.17} parent=27 // pred_check
              _
            $region30: #{image2smiles_forward.17} parent=27 // pred_check_branch
              %185 = sbr.rel target = $region32
            $region31: #{image2smiles_forward.17} parent=27 // pred_region
              // Predicated region
              $region44: #{image2smiles_forward.17} parent=31 // pred_check
                _
              $region45: #{image2smiles_forward.17} parent=31 // pred_check_branch
                %202 = sbr.rel (0) target = $region47
              $region46: #{image2smiles_forward.17} parent=31 // pred_region
                loop: start=0, step=1, limit=1
                $region48: #{image2smiles_forward.17} parent=46 // loop_pre_header
                  _
                $region49: #{image2smiles_forward.17} parent=46 // loop_header
                  %s204 = sphi 0, %s208
                  %p205 = scmp.ge.s32.totalorder %s204, 1
                  %s209 = sphi %s181, %s181
                  %s210 = sphi %s175, %s175
                $region50: #{image2smiles_forward.17} parent=46 // loop_header_branch
                  %207 = sbr.rel (%p205) target = $region54
                $region51: #{image2smiles_forward.17} parent=46 // loop_body
                  _
                $region52: #{image2smiles_forward.17} parent=46 // loop_footer
                  %s208 = sadd.s32 1, %s204
                $region53: #{image2smiles_forward.17} parent=46 // loop_footer_branch
                  %203 = sbr.rel target = $region49
                $region54: #{image2smiles_forward.17} parent=46 // loop_exit
                  _
                loop: start=0, step=1, limit=1
                $region55: #{image2smiles_forward.17} parent=46 // loop_pre_header
                  _
                $region56: #{image2smiles_forward.17} parent=46 // loop_header
                  %s213 = sphi 0, %s217
                  %p214 = scmp.ge.s32.totalorder %s213, 1
                  %s218 = sphi %s181, %s181
                  %s219 = sphi %s175, %s175
                $region57: #{image2smiles_forward.17} parent=46 // loop_header_branch
                  %216 = sbr.rel (%p214) target = $region61
                $region58: #{image2smiles_forward.17} parent=46 // loop_body
                  %v220 = vld [vmem:[%s218] sm:$0xf]
                  %221 = vst [vmem:[%s219] sm:$0xf] %v220
                  %v222 = vld [vmem:[%s218 + $0x8] sm:$0xf]
                  %223 = vst [vmem:[%s219 + $0x4] sm:$0xf] %v222
                $region59: #{image2smiles_forward.17} parent=46 // loop_footer
                  %s217 = sadd.s32 1, %s213
                $region60: #{image2smiles_forward.17} parent=46 // loop_footer_branch
                  %212 = sbr.rel target = $region56
                $region61: #{image2smiles_forward.17} parent=46 // loop_exit
                  _
              $region47: #{image2smiles_forward.17} parent=31 // pred_fallthru
                _
            $region32: #{image2smiles_forward.17} parent=27 // pred_fallthru
              _
            // Predicated region
            $region33: #{image2smiles_forward.17} parent=27 // pred_check
              _
            $region34: #{image2smiles_forward.17} parent=27 // pred_check_branch
              %187 = sbr.rel (0) target = $region36
            $region35: #{image2smiles_forward.17} parent=27 // pred_region
              loop: start=0, step=1, limit=1
              $region37: #{image2smiles_forward.17} parent=35 // loop_pre_header
                _
              $region38: #{image2smiles_forward.17} parent=35 // loop_header
                %s190 = sphi 0, %s194
                %p191 = scmp.ge.s32.totalorder %s190, 1
                %s195 = sphi %s181, %s181
                %s196 = sphi %s175, %s175
              $region39: #{image2smiles_forward.17} parent=35 // loop_header_branch
                %193 = sbr.rel (%p191) target = $region43
              $region40: #{image2smiles_forward.17} parent=35 // loop_body
                %v197 = vld [vmem:[%s195] sm:$0xf]
                %198 = vst [vmem:[%s196] sm:$0xf] %v197
                %v199 = vld [vmem:[%s195 + $0x8] sm:$0xf]
                %200 = vst [vmem:[%s196 + $0x4] sm:$0xf] %v199
              $region41: #{image2smiles_forward.17} parent=35 // loop_footer
                %s194 = sadd.s32 1, %s190
              $region42: #{image2smiles_forward.17} parent=35 // loop_footer_branch
                %189 = sbr.rel target = $region38
              $region43: #{image2smiles_forward.17} parent=35 // loop_exit
                _
            $region36: #{image2smiles_forward.17} parent=27 // pred_fallthru
              _
          $region28: #{image2smiles_forward.17} parent=23 // pred_fallthru
            _
          %224 = vnop
        $region24: #{image2smiles_forward.17} parent=15 // pred_fallthru
          _
        // Predicated region
        $region62: #{image2smiles_forward.17} parent=15 // pred_check
          %p225 = pneg %p106
        $region63: #{image2smiles_forward.17} parent=15 // pred_check_branch
          %227 = sbr.rel (%p225) target = $region65
        $region64: #{image2smiles_forward.17} parent=15 // pred_region
          %s228 = sand.u32 %s96, 1
          %s229 = sand.u32 %s96, 1
          %s230 = smul.addr %s229, 8
          %s231 = scalar_lea.vmem [#allocation6], %s230
          %s232 = smul.u32 2, %s18
          %s233 = smul.addr %s232, 2
          %s234 = sadd.s32 1, %s233
          %s235 = smul.addr %s16, 4
          %s236 = sadd.s32 %s234, %s235
          %s237 = smul.addr %s236, 4
          %s238 = scalar_lea.vmem %s2, %s237
          // Predicated region
          $region66: #{image2smiles_forward.17} parent=64 // pred_check
            _
          $region67: #{image2smiles_forward.17} parent=64 // pred_check_branch
            %240 = sbr.rel (0) target = $region69
          $region68: #{image2smiles_forward.17} parent=64 // pred_region
            // Predicated region
            $region70: #{image2smiles_forward.17} parent=68 // pred_check
              _
            $region71: #{image2smiles_forward.17} parent=68 // pred_check_branch
              %242 = sbr.rel target = $region73
            $region72: #{image2smiles_forward.17} parent=68 // pred_region
              // Predicated region
              $region85: #{image2smiles_forward.17} parent=72 // pred_check
                _
              $region86: #{image2smiles_forward.17} parent=72 // pred_check_branch
                %259 = sbr.rel (0) target = $region88
              $region87: #{image2smiles_forward.17} parent=72 // pred_region
                loop: start=0, step=1, limit=1
                $region89: #{image2smiles_forward.17} parent=87 // loop_pre_header
                  _
                $region90: #{image2smiles_forward.17} parent=87 // loop_header
                  %s261 = sphi 0, %s265
                  %p262 = scmp.ge.s32.totalorder %s261, 1
                  %s266 = sphi %s238, %s238
                  %s267 = sphi %s231, %s231
                $region91: #{image2smiles_forward.17} parent=87 // loop_header_branch
                  %264 = sbr.rel (%p262) target = $region95
                $region92: #{image2smiles_forward.17} parent=87 // loop_body
                  _
                $region93: #{image2smiles_forward.17} parent=87 // loop_footer
                  %s265 = sadd.s32 1, %s261
                $region94: #{image2smiles_forward.17} parent=87 // loop_footer_branch
                  %260 = sbr.rel target = $region90
                $region95: #{image2smiles_forward.17} parent=87 // loop_exit
                  _
                loop: start=0, step=1, limit=1
                $region96: #{image2smiles_forward.17} parent=87 // loop_pre_header
                  _
                $region97: #{image2smiles_forward.17} parent=87 // loop_header
                  %s270 = sphi 0, %s274
                  %p271 = scmp.ge.s32.totalorder %s270, 1
                  %s275 = sphi %s238, %s238
                  %s276 = sphi %s231, %s231
                $region98: #{image2smiles_forward.17} parent=87 // loop_header_branch
                  %273 = sbr.rel (%p271) target = $region102
                $region99: #{image2smiles_forward.17} parent=87 // loop_body
                  %v277 = vld [vmem:[%s275] sm:$0xf]
                  %278 = vst [vmem:[%s276] sm:$0xf] %v277
                  %v279 = vld [vmem:[%s275 + $0x8] sm:$0xf]
                  %280 = vst [vmem:[%s276 + $0x4] sm:$0xf] %v279
                $region100: #{image2smiles_forward.17} parent=87 // loop_footer
                  %s274 = sadd.s32 1, %s270
                $region101: #{image2smiles_forward.17} parent=87 // loop_footer_branch
                  %269 = sbr.rel target = $region97
                $region102: #{image2smiles_forward.17} parent=87 // loop_exit
                  _
              $region88: #{image2smiles_forward.17} parent=72 // pred_fallthru
                _
            $region73: #{image2smiles_forward.17} parent=68 // pred_fallthru
              _
            // Predicated region
            $region74: #{image2smiles_forward.17} parent=68 // pred_check
              _
            $region75: #{image2smiles_forward.17} parent=68 // pred_check_branch
              %244 = sbr.rel (0) target = $region77
            $region76: #{image2smiles_forward.17} parent=68 // pred_region
              loop: start=0, step=1, limit=1
              $region78: #{image2smiles_forward.17} parent=76 // loop_pre_header
                _
              $region79: #{image2smiles_forward.17} parent=76 // loop_header
                %s247 = sphi 0, %s251
                %p248 = scmp.ge.s32.totalorder %s247, 1
                %s252 = sphi %s238, %s238
                %s253 = sphi %s231, %s231
              $region80: #{image2smiles_forward.17} parent=76 // loop_header_branch
                %250 = sbr.rel (%p248) target = $region84
              $region81: #{image2smiles_forward.17} parent=76 // loop_body
                %v254 = vld [vmem:[%s252] sm:$0xf]
                %255 = vst [vmem:[%s253] sm:$0xf] %v254
                %v256 = vld [vmem:[%s252 + $0x8] sm:$0xf]
                %257 = vst [vmem:[%s253 + $0x4] sm:$0xf] %v256
              $region82: #{image2smiles_forward.17} parent=76 // loop_footer
                %s251 = sadd.s32 1, %s247
              $region83: #{image2smiles_forward.17} parent=76 // loop_footer_branch
                %246 = sbr.rel target = $region79
              $region84: #{image2smiles_forward.17} parent=76 // loop_exit
                _
            $region77: #{image2smiles_forward.17} parent=68 // pred_fallthru
              _
          $region69: #{image2smiles_forward.17} parent=64 // pred_fallthru
            _
          %281 = vnop
        $region65: #{image2smiles_forward.17} parent=15 // pred_fallthru
          _
      $region16: #{image2smiles_forward.17} parent=5 // pred_fallthru
        _
      %p282 = scmp.le.s32.totalorder 1, %s9
      %p283 = scmp.lt.s32.totalorder %s9, 3
      %p284 = pnand %p282, %p283
      %p285 = pneg %p284
      // Predicated region
      $region103: #{image2smiles_forward.17} parent=5 // pred_check
        _
      $region104: #{image2smiles_forward.17} parent=5 // pred_check_branch
        %287 = sbr.rel (%p284) target = $region106
      $region105: #{image2smiles_forward.17} parent=5 // pred_region
        %s288 = ssub.s32 %s9, 1
        %s289 = sand.u32 %s71, 1
        %s290 = sand.u32 %s71, 1
        %s291 = smul.addr %s290, 8
        %s292 = scalar_lea.vmem [#allocation5], %s291
        // Predicated region
        $region107: #{image2smiles_forward.17} parent=105 // pred_check
          %p293 = pneg %p84
        $region108: #{image2smiles_forward.17} parent=105 // pred_check_branch
          %295 = sbr.rel (%p293) target = $region110
        $region109: #{image2smiles_forward.17} parent=105 // pred_region
          _
        $region110: #{image2smiles_forward.17} parent=105 // pred_fallthru
          _
        %s296 = sand.u32 %s99, 1
        %s297 = sand.u32 %s99, 1
        %s298 = smul.addr %s297, 8
        %s299 = scalar_lea.vmem [#allocation6], %s298
        // Predicated region
        $region111: #{image2smiles_forward.17} parent=105 // pred_check
          %p300 = pneg %p112
        $region112: #{image2smiles_forward.17} parent=105 // pred_check_branch
          %302 = sbr.rel (%p300) target = $region114
        $region113: #{image2smiles_forward.17} parent=105 // pred_region
          _
        $region114: #{image2smiles_forward.17} parent=105 // pred_fallthru
          _
        %p303 = scmp.lt.s32.totalorder %s19, 1
        %s304 = scalar_select %p303, %s19, 1
        %p305 = scmp.lt.s32.totalorder %s20, 0
        %s306 = scalar_select %p305, %s20, 0
        %s307 = sadd.s32 %s306, %s304
        %s308 = smul.addr %s307, 4
        %s309 = scalar_lea.vmem %s0, %s308
        %p310 = pneg %p56
        %p311 = pneg %p53
        %s312 = sand.u32 %s71, 1
        %s313 = sand.u32 %s71, 1
        %s314 = smul.addr %s313, 8
        %s315 = scalar_lea.vmem [#allocation5], %s314
        %p316 = pneg %p84
        %p317 = pneg %p81
        %s318 = sand.u32 %s99, 1
        %s319 = sand.u32 %s99, 1
        %s320 = smul.addr %s319, 8
        %s321 = scalar_lea.vmem [#allocation6], %s320
        %p322 = pneg %p112
        %p323 = pneg %p109
        %p324 = pneg %p140
        %p325 = pneg %p137
        %p326 = scmp.lt.s32.totalorder %s19, 1
        %s327 = scalar_select %p326, %s19, 1
        %p328 = scmp.lt.s32.totalorder %s20, 0
        %s329 = scalar_select %p328, %s20, 0
        %s330 = sadd.s32 %s329, %s327
        %s331 = smul.addr %s330, 4
        %s332 = scalar_lea.vmem %s3, %s331
        %p333 = scmp.lt.s32.totalorder %s19, 1
        %s334 = scalar_select %p333, %s19, 1
        %p335 = scmp.lt.s32.totalorder %s20, 0
        %s336 = scalar_select %p335, %s20, 0
        %s337 = sadd.s32 %s336, %s334
        %s338 = smul.addr %s337, 4
        %s339 = scalar_lea.vmem %s0, %s338
        %s340 = smul.u32 2, %s21
        %s341 = smul.u32 2, %s21
        %p342 = scmp.lt.s32.totalorder %s19, 1
        %s343 = scalar_select %p342, %s19, 1
        %p344 = scmp.lt.s32.totalorder %s20, 0
        %s345 = scalar_select %p344, %s20, 0
        %s346 = sadd.s32 %s345, %s343
        %s347 = smul.addr %s346, 4
        %s348 = scalar_lea.vmem %s3, %s347
        %p350 = scmp.eq.s32.totalorder %s21, 0
        // Predicated region
        $region115: #{image2smiles_forward.17} parent=105 // pred_check
          %p351 = pneg %p350
        $region116: #{image2smiles_forward.17} parent=105 // pred_check_branch
          %353 = sbr.rel (%p351) target = $region118
        $region117: #{image2smiles_forward.17} parent=105 // pred_region
          %vm354 = vcmask 7168
          %355 = vst.msk [vmem:[#allocation2] sm:$0xff] %vm354, -inf
          %356 = vst.msk [vmem:[#allocation3] sm:$0xff] %vm354, 0.0
          %357 = vst [vmem:[#allocation4] sm:$0xff] 0.0
        $region118: #{image2smiles_forward.17} parent=105 // pred_fallthru
          _
        %v358 = vld [vmem:[%s339] sm:$0xf]
        %v359 = vunpack.c.l.bf16 %v358
        %v360 = vld [vmem:[%s292] sm:$0xf]
        %v361 = vld [vmem:[%s292 + $0x4] sm:$0xf]
        %v362 = vunpack.c.l.bf16 %v360
        %v363 = vunpack.c.l.bf16 %v361
        %v364 = vld [vmem:[%s299] sm:$0xf]
        %v365 = vld [vmem:[%s299 + $0x4] sm:$0xf]
        %366 = vmatprep.subr.mxu0 0.0
        %367 = vmatpush1.xpose.msra.mxu0 %v362
        %368 = vmatprep.subr.mxu0 0.0
        %369 = vmatpush1.xpose.msra.mxu0 %v363
        %370 = vmatprep.subr.mxu0 0.0
        %371 = vmatpush1.xpose.msra.mxu0 0.0
        %372 = vmatprep.subr.mxu0 0.0
        %373 = vmatpush1.xpose.msra.mxu0 0.0
        %374 = vmatprep.subr.mxu0 0.0
        %375 = vmatpush1.xpose.msra.mxu0 0.0
        %376 = vmatprep.subr.mxu0 0.0
        %377 = vmatpush1.xpose.msra.mxu0 0.0
        %378 = vmatprep.subr.mxu0 0.0
        %379 = vmatpush1.xpose.msra.mxu0 0.0
        %380 = vmatprep.subr.mxu0 0.0
        %381 = vmatpush1.xpose.msra.mxu0 0.0
        %382 = vmatprep.subr.mxu0 0.0
        %383 = vmatpush1.xpose.msra.mxu0 0.0
        %384 = vmatprep.subr.mxu0 0.0
        %385 = vmatpush1.xpose.msra.mxu0 0.0
        %386 = vmatprep.subr.mxu0 0.0
        %387 = vmatpush1.xpose.msra.mxu0 0.0
        %388 = vmatprep.subr.mxu0 0.0
        %389 = vmatpush1.xpose.msra.mxu0 0.0
        %390 = vmatprep.subr.mxu0 0.0
        %391 = vmatpush1.xpose.msra.mxu0 0.0
        %392 = vmatprep.subr.mxu0 0.0
        %393 = vmatpush1.xpose.msra.mxu0 0.0
        %394 = vmatprep.subr.mxu0 0.0
        %395 = vmatpush1.xpose.msra.mxu0 0.0
        %396 = vmatprep.subr.mxu0 0.0
        %397 = vmatpush1.xpose.msra.mxu0 0.0
        %398 = vmatprep.subr.mxu0 0.0
        %399 = vmatpush1.xpose.msra.mxu0 0.0
        %400 = vmatprep.subr.mxu0 0.0
        %401 = vmatpush1.xpose.msra.mxu0 0.0
        %402 = vmatprep.subr.mxu0 0.0
        %403 = vmatpush1.xpose.msra.mxu0 0.0
        %404 = vmatprep.subr.mxu0 0.0
        %405 = vmatpush1.xpose.msra.mxu0 0.0
        %406 = vmatprep.subr.mxu0 0.0
        %407 = vmatpush1.xpose.msra.mxu0 0.0
        %408 = vmatprep.subr.mxu0 0.0
        %409 = vmatpush1.xpose.msra.mxu0 0.0
        %410 = vmatprep.subr.mxu0 0.0
        %411 = vmatpush1.xpose.msra.mxu0 0.0
        %412 = vmatprep.subr.mxu0 0.0
        %413 = vmatpush1.xpose.msra.mxu0 0.0
        %414 = vmatprep.subr.mxu0 0.0
        %415 = vmatpush1.xpose.msra.mxu0 0.0
        %416 = vmatprep.subr.mxu0 0.0
        %417 = vmatpush1.xpose.msra.mxu0 0.0
        %418 = vmatprep.subr.mxu0 0.0
        %419 = vmatpush1.xpose.msra.mxu0 0.0
        %420 = vmatprep.subr.mxu0 0.0
        %421 = vmatpush1.xpose.msra.mxu0 0.0
        %422 = vmatprep.subr.mxu0 0.0
        %423 = vmatpush1.xpose.msra.mxu0 0.0
        %424 = vmatprep.subr.mxu0 0.0
        %425 = vmatpush1.xpose.msra.mxu0 0.0
        %426 = vmatprep.subr.mxu0 0.0
        %427 = vmatpush1.xpose.msra.mxu0 0.0
        %428 = vmatprep.subr.mxu0 0.0
        %429 = vmatpush1.xpose.msra.mxu0 0.0
        %430 = vmatprep.mubr.f32.mxu0 0.0
        %431 = vmatmul.mubr.f32.gmra.mrb[0].mxu0 %v359
        %v432 = vpop.f32.mrb[0].mxu0
        %v433 = vadd.f32 0.0, %v432
        %v434 = vpop.f32.mrb[0].mxu0
        %435 = vdwg.mxu0
        %v436 = vld [vmem:[#allocation2] sm:$0xff]
        %vm437 = vcmask 130048
        %v438 = vsel %vm437, %v433, -inf
        %439 = vmax.xlane.f32.xlu0 %v438
        %v440 = vpop.xlane.xlu0 %439
        %v441 = vmax.f32 %v436, %v440
        %v442 = vsub.f32 %v436, %v441
        %v443 = vmul.f32 %v442, 1.442695
        %v444 = vpow.pop %v443
        %446 = vset.pattern.permute.xlu0 0
        %447 = vperm.xlu0 %446, %v441
        %v448 = vpop.permute.xlu0 %447
        %v450 = vsub.f32 %v433, %v448
        %v451 = vmul.f32 %v450, 1.442695
        %v452 = vpow.pop %v451
        %v453 = vld [vmem:[#allocation3] sm:$0xff]
        %v454 = vmul.f32 %v444, %v453
        %v455 = vsel %vm437, %v452, 0.0
        %456 = vadd.xlane.f32.xlu0 %v455
        %v457 = vpop.xlane.xlu0 %456
        %v458 = vadd.f32 %v454, %v457
        %vm459 = vcmask 7168
        %460 = vst.msk [vmem:[#allocation3] sm:$0xff] %vm459, %v458
        %v461 = vld [vmem:[#allocation4] sm:$0xff]
        %463 = vset.pattern.permute.xlu0 0
        %464 = vperm.xlu0 %463, %v444
        %v465 = vpop.permute.xlu0 %464
        %v467 = vmul.f32 %v465, %v461
        %v468 = vpack.c.bf16 %v452, %v452
        %v471 = vunpack.c.l.b16 %v364
        %v472 = vunpack.c.l.b16 %v365
        %v473 = vpack.c.b16 %v472, %v471
        %v476 = vsel %vm437, %v468, 0
        %478 = vmatprep.subr.bf16.mxu0 0
        %479 = vmatpush1.bf16.msra.mxu0 %v473
        %480 = vmatprep.subr.bf16.mxu0 0
        %481 = vmatpush1.bf16.msra.mxu0 0
        %482 = vmatprep.subr.bf16.mxu0 0
        %483 = vmatpush1.bf16.msra.mxu0 0
        %484 = vmatprep.subr.bf16.mxu0 0
        %485 = vmatpush1.bf16.msra.mxu0 0
        %486 = vmatprep.subr.bf16.mxu0 0
        %487 = vmatpush1.bf16.msra.mxu0 0
        %488 = vmatprep.subr.bf16.mxu0 0
        %489 = vmatpush1.bf16.msra.mxu0 0
        %490 = vmatprep.subr.bf16.mxu0 0
        %491 = vmatpush1.bf16.msra.mxu0 0
        %492 = vmatprep.subr.bf16.mxu0 0
        %493 = vmatpush1.bf16.msra.mxu0 0
        %494 = vmatprep.subr.bf16.mxu0 0
        %495 = vmatpush1.bf16.msra.mxu0 0
        %496 = vmatprep.subr.bf16.mxu0 0
        %497 = vmatpush1.bf16.msra.mxu0 0
        %498 = vmatprep.subr.bf16.mxu0 0
        %499 = vmatpush1.bf16.msra.mxu0 0
        %500 = vmatprep.subr.bf16.mxu0 0
        %501 = vmatpush1.bf16.msra.mxu0 0
        %502 = vmatprep.subr.bf16.mxu0 0
        %503 = vmatpush1.bf16.msra.mxu0 0
        %504 = vmatprep.subr.bf16.mxu0 0
        %505 = vmatpush1.bf16.msra.mxu0 0
        %506 = vmatprep.subr.bf16.mxu0 0
        %507 = vmatpush1.bf16.msra.mxu0 0
        %508 = vmatprep.subr.bf16.mxu0 0
        %509 = vmatpush1.bf16.msra.mxu0 0
        %510 = vmatprep.mubr.bf16.mxu0 0
        %511 = vmatmul.mubr.bf16.gmra.mrb[0].mxu0 %v476
        %v512 = vpop.f32.mrb[0].mxu0
        %v513 = vadd.f32 0.0, %v512
        %v514 = vpop.f32.mrb[0].mxu0
        %v515 = vpop.f32.mrb[0].mxu0
        %v516 = vpop.f32.mrb[0].mxu0
        %517 = vdwg.mxu0
        %v518 = vadd.f32 %v467, %v513
        %519 = vst [vmem:[#allocation4] sm:$0xff] %v518
        %520 = vst.msk [vmem:[#allocation2] sm:$0xff] %vm459, %v441
        // Predicated region
        $region119: #{image2smiles_forward.17} parent=105 // pred_check
          %p521 = pneg %p350
        $region120: #{image2smiles_forward.17} parent=105 // pred_check_branch
          %523 = sbr.rel (%p521) target = $region122
        $region121: #{image2smiles_forward.17} parent=105 // pred_region
          %v524 = vld [vmem:[#allocation3] sm:$0xff]
          %v525 = vrcp.pop %v524
          %v526 = vld [vmem:[#allocation4] sm:$0xff]
          %528 = vset.pattern.permute.xlu0 0
          %529 = vperm.xlu0 %528, %v525
          %v530 = vpop.permute.xlu0 %529
          %v532 = vmul.f32 %v526, %v530
          %v533 = vpack.c.bf16 %v532, %v532
          %534 = vst [vmem:[%s348] sm:$0xf] %v533
        $region122: #{image2smiles_forward.17} parent=105 // pred_fallthru
          _
        %p535 = scmp.lt.s32.totalorder %s19, 1
        %s536 = scalar_select %p535, %s19, 1
        %p537 = scmp.lt.s32.totalorder %s20, 0
        %s538 = scalar_select %p537, %s20, 0
        %s539 = sadd.s32 %s538, %s536
        %s540 = smul.addr %s539, 4
        %s541 = scalar_lea.vmem %s3, %s540
        // Predicated region
        $region123: #{image2smiles_forward.17} parent=105 // pred_check
          %p542 = pneg %p137
        $region124: #{image2smiles_forward.17} parent=105 // pred_check_branch
          %544 = sbr.rel (%p542) target = $region126
        $region125: #{image2smiles_forward.17} parent=105 // pred_region
          _
        $region126: #{image2smiles_forward.17} parent=105 // pred_fallthru
          _
      $region106: #{image2smiles_forward.17} parent=5 // pred_fallthru
        _
      %p545 = scmp.le.s32.totalorder 2, %s9
      // Predicated region
      $region127: #{image2smiles_forward.17} parent=5 // pred_check
        %p546 = pneg %p545
      $region128: #{image2smiles_forward.17} parent=5 // pred_check_branch
        %548 = sbr.rel (%p546) target = $region130
      $region129: #{image2smiles_forward.17} parent=5 // pred_region
        %s549 = ssub.s32 %s9, 2
        // Predicated region
        $region131: #{image2smiles_forward.17} parent=129 // pred_check
          %p550 = pneg %p143
        $region132: #{image2smiles_forward.17} parent=129 // pred_check_branch
          %552 = sbr.rel (%p550) target = $region134
        $region133: #{image2smiles_forward.17} parent=129 // pred_region
          %p553 = scmp.lt.s32.totalorder %s22, 1
          %s554 = scalar_select %p553, %s22, 1
          %p555 = scmp.lt.s32.totalorder %s23, 0
          %s556 = scalar_select %p555, %s23, 0
          %s557 = sadd.s32 %s556, %s554
          %s558 = smul.addr %s557, 4
          %s559 = scalar_lea.vmem %s3, %s558
        $region134: #{image2smiles_forward.17} parent=129 // pred_fallthru
          _
      $region130: #{image2smiles_forward.17} parent=5 // pred_fallthru
        _
    $region6: #{image2smiles_forward.17} parent=1 // loop_footer
      %s13 = sadd.s32 1, %s9
    $region7: #{image2smiles_forward.17} parent=1 // loop_footer_branch
      %8 = sbr.rel target = $region3
    $region8: #{image2smiles_forward.17} parent=1 // loop_exit
      _

// kernel: image2smiles_forward.19
$region0: #{image2smiles_forward.19}
  #allocation0 [shape = 'u32[]', space=smem, size = 0x4, offset = 0x4, fixed_abs, tag = 'smem constant byte address 0x4 - core index']
  #allocation1 [shape = 'u32[144,128]{1,0:T(1,128)}', space=vmem, size = 0x12000, scoped, tag = 'internal scratch']
  #allocation2 [shape = 'f32[16,256]{1,0:T(8,128)}', space=vmem, size = 0x4000, scoped, tag = 'scratch operand']
  %s0 = inlined_call_operand.vmem [shape: f32[16,128], index: 0, kind: input, shape index: {}]
  %s1 = inlined_call_operand.vmem [shape: bf16[128,256], index: 1, kind: input, shape index: {}]
  %s2 = inlined_call_operand.vmem [shape: f32[1,256], index: 2, kind: input, shape index: {}]
  %s3 = inlined_call_operand.vmem [shape: f32[1,128], index: 3, kind: input, shape index: {}]
  %s4 = inlined_call_operand.vmem [shape: f32[1,128], index: 4, kind: input, shape index: {}]
  %s5 = inlined_call_operand.vmem [shape: bf16[16,256], index: 5, kind: output, shape index: {}]
  %s6 = sld [smem:[#allocation0]]
  $region38: #{image2smiles_forward.19} parent=0
    _
  %s8 = ssub.s32 1, %s6
  %s9 = scalar_select 0, %s8, %s6
  // Predicated region
  $region2: #{image2smiles_forward.19} parent=0 // pred_check
    _
  $region3: #{image2smiles_forward.19} parent=0 // pred_check_branch
    %11 = sbr.rel (0) target = $region5
  $region4: #{image2smiles_forward.19} parent=0 // pred_region
    _
  $region5: #{image2smiles_forward.19} parent=0 // pred_fallthru
    _
  // Predicated region
  $region6: #{image2smiles_forward.19} parent=0 // pred_check
    _
  $region7: #{image2smiles_forward.19} parent=0 // pred_check_branch
    %13 = sbr.rel (0) target = $region9
  $region8: #{image2smiles_forward.19} parent=0 // pred_region
    _
  $region9: #{image2smiles_forward.19} parent=0 // pred_fallthru
    _
  // Predicated region
  $region10: #{image2smiles_forward.19} parent=0 // pred_check
    _
  $region11: #{image2smiles_forward.19} parent=0 // pred_check_branch
    %15 = sbr.rel (0) target = $region13
  $region12: #{image2smiles_forward.19} parent=0 // pred_region
    _
  $region13: #{image2smiles_forward.19} parent=0 // pred_fallthru
    _
  // Predicated region
  $region14: #{image2smiles_forward.19} parent=0 // pred_check
    _
  $region15: #{image2smiles_forward.19} parent=0 // pred_check_branch
    %17 = sbr.rel (0) target = $region17
  $region16: #{image2smiles_forward.19} parent=0 // pred_region
    _
  $region17: #{image2smiles_forward.19} parent=0 // pred_fallthru
    _
  // Predicated region
  $region18: #{image2smiles_forward.19} parent=0 // pred_check
    _
  $region19: #{image2smiles_forward.19} parent=0 // pred_check_branch
    %19 = sbr.rel (0) target = $region21
  $region20: #{image2smiles_forward.19} parent=0 // pred_region
    _
  $region21: #{image2smiles_forward.19} parent=0 // pred_fallthru
    _
  %p21 = scmp.eq.s32.totalorder 0, 0
  // Predicated region
  $region22: #{image2smiles_forward.19} parent=0 // pred_check
    %p22 = pneg %p21
  $region23: #{image2smiles_forward.19} parent=0 // pred_check_branch
    %24 = sbr.rel (%p22) target = $region25
  $region24: #{image2smiles_forward.19} parent=0 // pred_region
    %25 = vst [vmem:[#allocation2] sm:$0xff] 0.0
    %26 = vst [vmem:[#allocation2 + $0x8] sm:$0xff] 0.0
    %27 = vst [vmem:[#allocation2 + $0x10] sm:$0xff] 0.0
    %28 = vst [vmem:[#allocation2 + $0x18] sm:$0xff] 0.0
  $region25: #{image2smiles_forward.19} parent=0 // pred_fallthru
    _
  %v29 = vld [vmem:[%s0] sm:$0xff]
  %v30 = vld [vmem:[%s0 + $0x8] sm:$0xff]
  %31 = vadd.xlane.f32.xlu0 %v29
  %v32 = vpop.xlane.xlu0 %31
  %33 = vadd.xlane.f32.xlu0 %v30
  %v34 = vpop.xlane.xlu0 %33
  %v35 = vrcp.pop 128.0
  %v36 = vmul.f32 %v32, %v35
  %v37 = vmul.f32 %v34, %v35
  %v38 = vsub.f32 %v29, %v36
  %v39 = vsub.f32 %v30, %v37
  %v40 = vmul.f32 %v38, %v38
  %v41 = vmul.f32 %v39, %v39
  %42 = vadd.xlane.f32.xlu0 %v40
  %v43 = vpop.xlane.xlu0 %42
  %44 = vadd.xlane.f32.xlu0 %v41
  %v45 = vpop.xlane.xlu0 %44
  %v46 = vmul.f32 %v43, %v35
  %v47 = vmul.f32 %v45, %v35
  %v48 = vadd.f32 %v46, 1e-05
  %v49 = vadd.f32 %v47, 1e-05
  %v50 = vrsqrt.pop %v48
  %v51 = vrsqrt.pop %v49
  %v52 = vmul.f32 %v38, %v50
  %v53 = vmul.f32 %v39, %v51
  %v54 = vld [vmem:[%s3] sm:$0x1]
  %v56 = vlaneseq
  %v57 = vshrl.u32 %v56, 7
  %v58 = vsub.s32 0, %v57
  %v59 = vrot.slane %v54, %v58
  %v61 = vmul.f32 %v52, %v59
  %v62 = vmul.f32 %v53, %v59
  %v63 = vld [vmem:[%s4] sm:$0x1]
  %v65 = vlaneseq
  %v66 = vshrl.u32 %v65, 7
  %v67 = vsub.s32 0, %v66
  %v68 = vrot.slane %v63, %v67
  %v70 = vadd.f32 %v61, %v68
  %v71 = vadd.f32 %v62, %v68
  %v72 = vpack.c.bf16 %v71, %v70
  %v73 = vld [vmem:[#allocation2] sm:$0xff]
  %v74 = vld [vmem:[#allocation2 + $0x8] sm:$0xff]
  %v75 = vld [vmem:[#allocation2 + $0x10] sm:$0xff]
  %v76 = vld [vmem:[#allocation2 + $0x18] sm:$0xff]
  %v77 = vld [vmem:[%s1] sm:$0xff]
  %v78 = vld [vmem:[%s1 + $0x8] sm:$0xff]
  %v79 = vld [vmem:[%s1 + $0x10] sm:$0xff]
  %v80 = vld [vmem:[%s1 + $0x18] sm:$0xff]
  %v81 = vld [vmem:[%s1 + $0x20] sm:$0xff]
  %v82 = vld [vmem:[%s1 + $0x28] sm:$0xff]
  %v83 = vld [vmem:[%s1 + $0x30] sm:$0xff]
  %v84 = vld [vmem:[%s1 + $0x38] sm:$0xff]
  %v85 = vld [vmem:[%s1 + $0x40] sm:$0xff]
  %v86 = vld [vmem:[%s1 + $0x48] sm:$0xff]
  %v87 = vld [vmem:[%s1 + $0x50] sm:$0xff]
  %v88 = vld [vmem:[%s1 + $0x58] sm:$0xff]
  %v89 = vld [vmem:[%s1 + $0x60] sm:$0xff]
  %v90 = vld [vmem:[%s1 + $0x68] sm:$0xff]
  %v91 = vld [vmem:[%s1 + $0x70] sm:$0xff]
  %v92 = vld [vmem:[%s1 + $0x78] sm:$0xff]
  %v109 = vunpack.c.l.b16 %v77
  %v110 = vunpack.c.h.b16 %v77
  %v111 = vunpack.c.l.b16 %v78
  %v112 = vunpack.c.h.b16 %v78
  %v113 = vunpack.c.l.b16 %v79
  %v114 = vunpack.c.h.b16 %v79
  %v115 = vunpack.c.l.b16 %v80
  %v116 = vunpack.c.h.b16 %v80
  %v117 = vunpack.c.l.b16 %v81
  %v118 = vunpack.c.h.b16 %v81
  %v119 = vunpack.c.l.b16 %v82
  %v120 = vunpack.c.h.b16 %v82
  %v121 = vunpack.c.l.b16 %v83
  %v122 = vunpack.c.h.b16 %v83
  %v123 = vunpack.c.l.b16 %v84
  %v124 = vunpack.c.h.b16 %v84
  %v125 = vunpack.c.l.b16 %v85
  %v126 = vunpack.c.h.b16 %v85
  %v127 = vunpack.c.l.b16 %v86
  %v128 = vunpack.c.h.b16 %v86
  %v129 = vunpack.c.l.b16 %v87
  %v130 = vunpack.c.h.b16 %v87
  %v131 = vunpack.c.l.b16 %v88
  %v132 = vunpack.c.h.b16 %v88
  %v133 = vunpack.c.l.b16 %v89
  %v134 = vunpack.c.h.b16 %v89
  %v135 = vunpack.c.l.b16 %v90
  %v136 = vunpack.c.h.b16 %v90
  %v137 = vunpack.c.l.b16 %v91
  %v138 = vunpack.c.h.b16 %v91
  %v139 = vunpack.c.l.b16 %v92
  %v140 = vunpack.c.h.b16 %v92
  %v141 = vpack.c.b16 %v111, %v109
  %v142 = vpack.c.b16 %v112, %v110
  %v143 = vpack.c.b16 %v115, %v113
  %v144 = vpack.c.b16 %v116, %v114
  %v145 = vpack.c.b16 %v119, %v117
  %v146 = vpack.c.b16 %v120, %v118
  %v147 = vpack.c.b16 %v123, %v121
  %v148 = vpack.c.b16 %v124, %v122
  %v149 = vpack.c.b16 %v127, %v125
  %v150 = vpack.c.b16 %v128, %v126
  %v151 = vpack.c.b16 %v131, %v129
  %v152 = vpack.c.b16 %v132, %v130
  %v153 = vpack.c.b16 %v135, %v133
  %v154 = vpack.c.b16 %v136, %v134
  %v155 = vpack.c.b16 %v139, %v137
  %v156 = vpack.c.b16 %v140, %v138
  %173 = vmatprep.subr.bf16.mxu0 %v142
  %174 = vmatpush1.bf16.msra.mxu0 %v141
  %175 = vmatprep.subr.bf16.mxu0 %v144
  %176 = vmatpush1.bf16.msra.mxu0 %v143
  %177 = vmatprep.subr.bf16.mxu0 %v146
  %178 = vmatpush1.bf16.msra.mxu0 %v145
  %179 = vmatprep.subr.bf16.mxu0 %v148
  %180 = vmatpush1.bf16.msra.mxu0 %v147
  %181 = vmatprep.subr.bf16.mxu0 %v150
  %182 = vmatpush1.bf16.msra.mxu0 %v149
  %183 = vmatprep.subr.bf16.mxu0 %v152
  %184 = vmatpush1.bf16.msra.mxu0 %v151
  %185 = vmatprep.subr.bf16.mxu0 %v154
  %186 = vmatpush1.bf16.msra.mxu0 %v153
  %187 = vmatprep.subr.bf16.mxu0 %v156
  %188 = vmatpush1.bf16.msra.mxu0 %v155
  %189 = vmatprep.subr.bf16.mxu0 0
  %190 = vmatpush1.bf16.msra.mxu0 0
  %191 = vmatprep.subr.bf16.mxu0 0
  %192 = vmatpush1.bf16.msra.mxu0 0
  %193 = vmatprep.subr.bf16.mxu0 0
  %194 = vmatpush1.bf16.msra.mxu0 0
  %195 = vmatprep.subr.bf16.mxu0 0
  %196 = vmatpush1.bf16.msra.mxu0 0
  %197 = vmatprep.subr.bf16.mxu0 0
  %198 = vmatpush1.bf16.msra.mxu0 0
  %199 = vmatprep.subr.bf16.mxu0 0
  %200 = vmatpush1.bf16.msra.mxu0 0
  %201 = vmatprep.subr.bf16.mxu0 0
  %202 = vmatpush1.bf16.msra.mxu0 0
  %203 = vmatprep.subr.bf16.mxu0 0
  %204 = vmatpush1.bf16.msra.mxu0 0
  %205 = vmatprep.mubr.bf16.mxu0 0
  %206 = vmatmul.mubr.bf16.gmra.mrb[0].mxu0 %v72
  %v207 = vpop.f32.mrb[0].mxu0
  %v208 = vadd.f32 0.0, %v207
  %v209 = vpop.f32.mrb[0].mxu0
  %v210 = vadd.f32 0.0, %v209
  %v211 = vpop.f32.mrb[0].mxu0
  %v212 = vadd.f32 0.0, %v211
  %v213 = vpop.f32.mrb[0].mxu0
  %v214 = vadd.f32 0.0, %v213
  %215 = vdwg.mxu0
  %v216 = vadd.f32 %v73, %v208
  %v217 = vadd.f32 %v74, %v210
  %v218 = vadd.f32 %v75, %v212
  %v219 = vadd.f32 %v76, %v214
  %220 = vst [vmem:[#allocation2] sm:$0xff] %v216
  %221 = vst [vmem:[#allocation2 + $0x8] sm:$0xff] %v217
  %222 = vst [vmem:[#allocation2 + $0x10] sm:$0xff] %v218
  %223 = vst [vmem:[#allocation2 + $0x18] sm:$0xff] %v219
  // Predicated region
  $region26: #{image2smiles_forward.19} parent=0 // pred_check
    %p224 = pneg %p21
  $region27: #{image2smiles_forward.19} parent=0 // pred_check_branch
    %226 = sbr.rel (%p224) target = $region29
  $region28: #{image2smiles_forward.19} parent=0 // pred_region
    %v227 = vld [vmem:[#allocation2] sm:$0xff]
    %v228 = vld [vmem:[#allocation2 + $0x8] sm:$0xff]
    %v229 = vld [vmem:[#allocation2 + $0x10] sm:$0xff]
    %v230 = vld [vmem:[#allocation2 + $0x18] sm:$0xff]
    %v231 = vld [vmem:[%s2] sm:$0x3]
    %v233 = vlaneseq
    %v234 = vshrl.u32 %v233, 7
    %v235 = vsub.s32 0, %v234
    %v236 = vrot.slane %v231, %v235
    %v237 = vlaneseq
    %v238 = vshrl.u32 %v237, 7
    %v239 = vsub.s32 1, %v238
    %v240 = vrot.slane %v231, %v239
    %v243 = vadd.f32 %v227, %v236
    %v244 = vadd.f32 %v228, %v240
    %v245 = vadd.f32 %v229, %v236
    %v246 = vadd.f32 %v230, %v240
    %v247 = vmax.f32 %v243, 0.0
    %v248 = vmax.f32 %v244, 0.0
    %v249 = vmax.f32 %v245, 0.0
    %v250 = vmax.f32 %v246, 0.0
    %v251 = vpack.c.bf16 %v249, %v247
    %v252 = vpack.c.bf16 %v250, %v248
    %v255 = vunpack.c.l.b16 %v251
    %v256 = vunpack.c.l.b16 %v252
    %v257 = vunpack.c.h.b16 %v251
    %v258 = vunpack.c.h.b16 %v252
    %v259 = vpack.c.b16 %v256, %v255
    %v260 = vpack.c.b16 %v258, %v257
    %263 = vst [vmem:[%s5] sm:$0xff] %v259
    %264 = vst [vmem:[%s5 + $0x8] sm:$0xff] %v260
  $region29: #{image2smiles_forward.19} parent=0 // pred_fallthru
    _
  // Predicated region
  $region30: #{image2smiles_forward.19} parent=0 // pred_check
    _
  $region31: #{image2smiles_forward.19} parent=0 // pred_check_branch
    %266 = sbr.rel (0) target = $region33
  $region32: #{image2smiles_forward.19} parent=0 // pred_region
    _
  $region33: #{image2smiles_forward.19} parent=0 // pred_fallthru
    _
  // Predicated region
  $region34: #{image2smiles_forward.19} parent=0 // pred_check
    _
  $region35: #{image2smiles_forward.19} parent=0 // pred_check_branch
    %268 = sbr.rel (0) target = $region37
  $region36: #{image2smiles_forward.19} parent=0 // pred_region
    _
  $region37: #{image2smiles_forward.19} parent=0 // pred_fallthru
    _

// kernel: image2smiles_forward.21
$region0: #{image2smiles_forward.21}
  #allocation0 [shape = 'u32[]', space=smem, size = 0x4, offset = 0x4, fixed_abs, tag = 'smem constant byte address 0x4 - core index']
  #allocation1 [shape = 'u32[144,128]{1,0:T(1,128)}', space=vmem, size = 0x12000, scoped, tag = 'internal scratch']
  #allocation2 [shape = 'f32[16,128]{1,0:T(8,128)}', space=vmem, size = 0x2000, scoped, tag = 'scratch operand']
  %s0 = inlined_call_operand.vmem [shape: f32[16,128], index: 0, kind: input, shape index: {}]
  %s1 = inlined_call_operand.vmem [shape: bf16[128,128], index: 1, kind: input, shape index: {}]
  %s2 = inlined_call_operand.vmem [shape: f32[1,128], index: 2, kind: input, shape index: {}]
  %s3 = inlined_call_operand.hbm [shape: f32[16,128], index: 3, kind: output, shape index: {}]
  %s4 = sld [smem:[#allocation0]]
  $region30: #{image2smiles_forward.21} parent=0
    _
  %s6 = ssub.s32 1, %s4
  %s7 = scalar_select 0, %s6, %s4
  $region1: #{image2smiles_forward.21} parent=0
    #allocation3 [shape = 'u8[8192]{0}', space=vmem, size = 0x2000, scoped, tag = 'output window, operand 0, single buffered']
    #allocation4 [shape = 's32[1]{0}', space=sflag, size = 0x4, scoped, tag = 'scoped memory for image2smiles_forward.21']
    %8 = vsyncpa [#allocation4], 0
    // Predicated region
    $region2: #{image2smiles_forward.21} parent=1 // pred_check
      _
    $region3: #{image2smiles_forward.21} parent=1 // pred_check_branch
      %10 = sbr.rel (0) target = $region5
    $region4: #{image2smiles_forward.21} parent=1 // pred_region
      _
    $region5: #{image2smiles_forward.21} parent=1 // pred_fallthru
      _
    // Predicated region
    $region6: #{image2smiles_forward.21} parent=1 // pred_check
      _
    $region7: #{image2smiles_forward.21} parent=1 // pred_check_branch
      %12 = sbr.rel (0) target = $region9
    $region8: #{image2smiles_forward.21} parent=1 // pred_region
      _
    $region9: #{image2smiles_forward.21} parent=1 // pred_fallthru
      _
    // Predicated region
    $region10: #{image2smiles_forward.21} parent=1 // pred_check
      _
    $region11: #{image2smiles_forward.21} parent=1 // pred_check_branch
      %14 = sbr.rel (0) target = $region13
    $region12: #{image2smiles_forward.21} parent=1 // pred_region
      _
    $region13: #{image2smiles_forward.21} parent=1 // pred_fallthru
      _
    %p16 = scmp.eq.s32.totalorder 0, 0
    // Predicated region
    $region14: #{image2smiles_forward.21} parent=1 // pred_check
      %p17 = pneg %p16
    $region15: #{image2smiles_forward.21} parent=1 // pred_check_branch
      %19 = sbr.rel (%p17) target = $region17
    $region16: #{image2smiles_forward.21} parent=1 // pred_region
      %20 = vst [vmem:[#allocation2] sm:$0xff] 0.0
      %21 = vst [vmem:[#allocation2 + $0x8] sm:$0xff] 0.0
    $region17: #{image2smiles_forward.21} parent=1 // pred_fallthru
      _
    %v22 = vld [vmem:[%s0] sm:$0xff]
    %v23 = vld [vmem:[%s0 + $0x8] sm:$0xff]
    %v24 = vpack.c.bf16 %v23, %v22
    %v25 = vld [vmem:[#allocation2] sm:$0xff]
    %v26 = vld [vmem:[#allocation2 + $0x8] sm:$0xff]
    %v27 = vld [vmem:[%s1] sm:$0xf]
    %v28 = vld [vmem:[%s1 + $0x4] sm:$0xf]
    %v29 = vld [vmem:[%s1 + $0x8] sm:$0xf]
    %v30 = vld [vmem:[%s1 + $0xc] sm:$0xf]
    %v31 = vld [vmem:[%s1 + $0x10] sm:$0xf]
    %v32 = vld [vmem:[%s1 + $0x14] sm:$0xf]
    %v33 = vld [vmem:[%s1 + $0x18] sm:$0xf]
    %v34 = vld [vmem:[%s1 + $0x1c] sm:$0xf]
    %v35 = vld [vmem:[%s1 + $0x20] sm:$0xf]
    %v36 = vld [vmem:[%s1 + $0x24] sm:$0xf]
    %v37 = vld [vmem:[%s1 + $0x28] sm:$0xf]
    %v38 = vld [vmem:[%s1 + $0x2c] sm:$0xf]
    %v39 = vld [vmem:[%s1 + $0x30] sm:$0xf]
    %v40 = vld [vmem:[%s1 + $0x34] sm:$0xf]
    %v41 = vld [vmem:[%s1 + $0x38] sm:$0xf]
    %v42 = vld [vmem:[%s1 + $0x3c] sm:$0xf]
    %v59 = vunpack.c.l.b16 %v27
    %v60 = vunpack.c.l.b16 %v28
    %v61 = vunpack.c.l.b16 %v29
    %v62 = vunpack.c.l.b16 %v30
    %v63 = vunpack.c.l.b16 %v31
    %v64 = vunpack.c.l.b16 %v32
    %v65 = vunpack.c.l.b16 %v33
    %v66 = vunpack.c.l.b16 %v34
    %v67 = vunpack.c.l.b16 %v35
    %v68 = vunpack.c.l.b16 %v36
    %v69 = vunpack.c.l.b16 %v37
    %v70 = vunpack.c.l.b16 %v38
    %v71 = vunpack.c.l.b16 %v39
    %v72 = vunpack.c.l.b16 %v40
    %v73 = vunpack.c.l.b16 %v41
    %v74 = vunpack.c.l.b16 %v42
    %v75 = vpack.c.b16 %v60, %v59
    %v76 = vpack.c.b16 %v62, %v61
    %v77 = vpack.c.b16 %v64, %v63
    %v78 = vpack.c.b16 %v66, %v65
    %v79 = vpack.c.b16 %v68, %v67
    %v80 = vpack.c.b16 %v70, %v69
    %v81 = vpack.c.b16 %v72, %v71
    %v82 = vpack.c.b16 %v74, %v73
    %91 = vmatprep.subr.bf16.mxu0 0
    %92 = vmatpush1.bf16.msra.mxu0 %v75
    %93 = vmatprep.subr.bf16.mxu0 0
    %94 = vmatpush1.bf16.msra.mxu0 %v76
    %95 = vmatprep.subr.bf16.mxu0 0
    %96 = vmatpush1.bf16.msra.mxu0 %v77
    %97 = vmatprep.subr.bf16.mxu0 0
    %98 = vmatpush1.bf16.msra.mxu0 %v78
    %99 = vmatprep.subr.bf16.mxu0 0
    %100 = vmatpush1.bf16.msra.mxu0 %v79
    %101 = vmatprep.subr.bf16.mxu0 0
    %102 = vmatpush1.bf16.msra.mxu0 %v80
    %103 = vmatprep.subr.bf16.mxu0 0
    %104 = vmatpush1.bf16.msra.mxu0 %v81
    %105 = vmatprep.subr.bf16.mxu0 0
    %106 = vmatpush1.bf16.msra.mxu0 %v82
    %107 = vmatprep.subr.bf16.mxu0 0
    %108 = vmatpush1.bf16.msra.mxu0 0
    %109 = vmatprep.subr.bf16.mxu0 0
    %110 = vmatpush1.bf16.msra.mxu0 0
    %111 = vmatprep.subr.bf16.mxu0 0
    %112 = vmatpush1.bf16.msra.mxu0 0
    %113 = vmatprep.subr.bf16.mxu0 0
    %114 = vmatpush1.bf16.msra.mxu0 0
    %115 = vmatprep.subr.bf16.mxu0 0
    %116 = vmatpush1.bf16.msra.mxu0 0
    %117 = vmatprep.subr.bf16.mxu0 0
    %118 = vmatpush1.bf16.msra.mxu0 0
    %119 = vmatprep.subr.bf16.mxu0 0
    %120 = vmatpush1.bf16.msra.mxu0 0
    %121 = vmatprep.subr.bf16.mxu0 0
    %122 = vmatpush1.bf16.msra.mxu0 0
    %123 = vmatprep.mubr.bf16.mxu0 0
    %124 = vmatmul.mubr.bf16.gmra.mrb[0].mxu0 %v24
    %v125 = vpop.f32.mrb[0].mxu0
    %v126 = vadd.f32 0.0, %v125
    %v127 = vpop.f32.mrb[0].mxu0
    %v128 = vpop.f32.mrb[0].mxu0
    %v129 = vadd.f32 0.0, %v128
    %v130 = vpop.f32.mrb[0].mxu0
    %131 = vdwg.mxu0
    %v132 = vadd.f32 %v25, %v126
    %v133 = vadd.f32 %v26, %v129
    %134 = vst [vmem:[#allocation2] sm:$0xff] %v132
    %135 = vst [vmem:[#allocation2 + $0x8] sm:$0xff] %v133
    // Predicated region
    $region18: #{image2smiles_forward.21} parent=1 // pred_check
      %p136 = pneg %p16
    $region19: #{image2smiles_forward.21} parent=1 // pred_check_branch
      %138 = sbr.rel (%p136) target = $region21
    $region20: #{image2smiles_forward.21} parent=1 // pred_region
      %v139 = vld [vmem:[#allocation2] sm:$0xff]
      %v140 = vld [vmem:[#allocation2 + $0x8] sm:$0xff]
      %v141 = vld [vmem:[%s2] sm:$0x1]
      %v143 = vlaneseq
      %v144 = vshrl.u32 %v143, 7
      %v145 = vsub.s32 0, %v144
      %v146 = vrot.slane %v141, %v145
      %v148 = vadd.f32 %v139, %v146
      %v149 = vadd.f32 %v140, %v146
      %150 = vst [vmem:[#allocation3] sm:$0xff] %v148
      %151 = vst [vmem:[#allocation3 + $0x8] sm:$0xff] %v149
    $region21: #{image2smiles_forward.21} parent=1 // pred_fallthru
      _
    // Predicated region
    $region22: #{image2smiles_forward.21} parent=1 // pred_check
      _
    $region23: #{image2smiles_forward.21} parent=1 // pred_check_branch
      %153 = sbr.rel (0) target = $region25
    $region24: #{image2smiles_forward.21} parent=1 // pred_region
      %s155 = ssub.s32 256, 256
      %156 = vsyncadd [#allocation4], %s155
      %s157 = sshll.u32 [#allocation3], 4
      %s158 = int_to_ptr.vmem [resolvable:$true] %s157
      %163 = dma.vmem_to_hbm [thread:$0]  %s158, 256, %s3, [#allocation4], 128, 128, 8
    $region25: #{image2smiles_forward.21} parent=1 // pred_fallthru
      _
    // Predicated region
    $region26: #{image2smiles_forward.21} parent=1 // pred_check
      _
    $region27: #{image2smiles_forward.21} parent=1 // pred_check_branch
      %165 = sbr.rel (0) target = $region29
    $region28: #{image2smiles_forward.21} parent=1 // pred_region
      %166 = dma.done [#allocation4], 256
    $region29: #{image2smiles_forward.21} parent=1 // pred_fallthru
      _
    %167 = vsyncpa [#allocation4], 1

// kernel: image2smiles_forward.20
$region0: #{image2smiles_forward.20}
  #allocation0 [shape = 'u32[]', space=smem, size = 0x4, offset = 0x4, fixed_abs, tag = 'smem constant byte address 0x4 - core index']
  #allocation1 [shape = 'u32[144,128]{1,0:T(1,128)}', space=vmem, size = 0x12000, scoped, tag = 'internal scratch']
  #allocation2 [shape = 'f32[16,128]{1,0:T(8,128)}', space=vmem, size = 0x2000, scoped, tag = 'scratch operand']
  %s0 = inlined_call_operand.vmem [shape: bf16[16,256], index: 0, kind: input, shape index: {}]
  %s1 = inlined_call_operand.vmem [shape: bf16[256,128], index: 1, kind: input, shape index: {}]
  %s2 = inlined_call_operand.vmem [shape: f32[1,128], index: 2, kind: input, shape index: {}]
  %s3 = inlined_call_operand.vmem [shape: f32[16,128], index: 3, kind: input, shape index: {}]
  %s4 = inlined_call_operand.vmem [shape: f32[16,128], index: 4, kind: output, shape index: {}]
  %s5 = sld [smem:[#allocation0]]
  $region34: #{image2smiles_forward.20} parent=0
    _
  %s7 = ssub.s32 1, %s5
  %s8 = scalar_select 0, %s7, %s5
  // Predicated region
  $region2: #{image2smiles_forward.20} parent=0 // pred_check
    _
  $region3: #{image2smiles_forward.20} parent=0 // pred_check_branch
    %10 = sbr.rel (0) target = $region5
  $region4: #{image2smiles_forward.20} parent=0 // pred_region
    _
  $region5: #{image2smiles_forward.20} parent=0 // pred_fallthru
    _
  // Predicated region
  $region6: #{image2smiles_forward.20} parent=0 // pred_check
    _
  $region7: #{image2smiles_forward.20} parent=0 // pred_check_branch
    %12 = sbr.rel (0) target = $region9
  $region8: #{image2smiles_forward.20} parent=0 // pred_region
    _
  $region9: #{image2smiles_forward.20} parent=0 // pred_fallthru
    _
  // Predicated region
  $region10: #{image2smiles_forward.20} parent=0 // pred_check
    _
  $region11: #{image2smiles_forward.20} parent=0 // pred_check_branch
    %14 = sbr.rel (0) target = $region13
  $region12: #{image2smiles_forward.20} parent=0 // pred_region
    _
  $region13: #{image2smiles_forward.20} parent=0 // pred_fallthru
    _
  // Predicated region
  $region14: #{image2smiles_forward.20} parent=0 // pred_check
    _
  $region15: #{image2smiles_forward.20} parent=0 // pred_check_branch
    %16 = sbr.rel (0) target = $region17
  $region16: #{image2smiles_forward.20} parent=0 // pred_region
    _
  $region17: #{image2smiles_forward.20} parent=0 // pred_fallthru
    _
  %p18 = scmp.eq.s32.totalorder 0, 0
  // Predicated region
  $region18: #{image2smiles_forward.20} parent=0 // pred_check
    %p19 = pneg %p18
  $region19: #{image2smiles_forward.20} parent=0 // pred_check_branch
    %21 = sbr.rel (%p19) target = $region21
  $region20: #{image2smiles_forward.20} parent=0 // pred_region
    %22 = vst [vmem:[#allocation2] sm:$0xff] 0.0
    %23 = vst [vmem:[#allocation2 + $0x8] sm:$0xff] 0.0
  $region21: #{image2smiles_forward.20} parent=0 // pred_fallthru
    _
  %v24 = vld [vmem:[%s0] sm:$0xff]
  %v25 = vld [vmem:[%s0 + $0x8] sm:$0xff]
  %v26 = vld [vmem:[#allocation2] sm:$0xff]
  %v27 = vld [vmem:[#allocation2 + $0x8] sm:$0xff]
  %v28 = vld [vmem:[%s1] sm:$0xf]
  %v29 = vld [vmem:[%s1 + $0x4] sm:$0xf]
  %v30 = vld [vmem:[%s1 + $0x8] sm:$0xf]
  %v31 = vld [vmem:[%s1 + $0xc] sm:$0xf]
  %v32 = vld [vmem:[%s1 + $0x10] sm:$0xf]
  %v33 = vld [vmem:[%s1 + $0x14] sm:$0xf]
  %v34 = vld [vmem:[%s1 + $0x18] sm:$0xf]
  %v35 = vld [vmem:[%s1 + $0x1c] sm:$0xf]
  %v36 = vld [vmem:[%s1 + $0x20] sm:$0xf]
  %v37 = vld [vmem:[%s1 + $0x24] sm:$0xf]
  %v38 = vld [vmem:[%s1 + $0x28] sm:$0xf]
  %v39 = vld [vmem:[%s1 + $0x2c] sm:$0xf]
  %v40 = vld [vmem:[%s1 + $0x30] sm:$0xf]
  %v41 = vld [vmem:[%s1 + $0x34] sm:$0xf]
  %v42 = vld [vmem:[%s1 + $0x38] sm:$0xf]
  %v43 = vld [vmem:[%s1 + $0x3c] sm:$0xf]
  %v44 = vld [vmem:[%s1 + $0x40] sm:$0xf]
  %v45 = vld [vmem:[%s1 + $0x44] sm:$0xf]
  %v46 = vld [vmem:[%s1 + $0x48] sm:$0xf]
  %v47 = vld [vmem:[%s1 + $0x4c] sm:$0xf]
  %v48 = vld [vmem:[%s1 + $0x50] sm:$0xf]
  %v49 = vld [vmem:[%s1 + $0x54] sm:$0xf]
  %v50 = vld [vmem:[%s1 + $0x58] sm:$0xf]
  %v51 = vld [vmem:[%s1 + $0x5c] sm:$0xf]
  %v52 = vld [vmem:[%s1 + $0x60] sm:$0xf]
  %v53 = vld [vmem:[%s1 + $0x64] sm:$0xf]
  %v54 = vld [vmem:[%s1 + $0x68] sm:$0xf]
  %v55 = vld [vmem:[%s1 + $0x6c] sm:$0xf]
  %v56 = vld [vmem:[%s1 + $0x70] sm:$0xf]
  %v57 = vld [vmem:[%s1 + $0x74] sm:$0xf]
  %v58 = vld [vmem:[%s1 + $0x78] sm:$0xf]
  %v59 = vld [vmem:[%s1 + $0x7c] sm:$0xf]
  %v62 = vunpack.c.l.b16 %v24
  %v63 = vunpack.c.h.b16 %v24
  %v64 = vunpack.c.l.b16 %v25
  %v65 = vunpack.c.h.b16 %v25
  %v66 = vpack.c.b16 %v64, %v62
  %v67 = vpack.c.b16 %v65, %v63
  %v102 = vunpack.c.l.b16 %v28
  %v103 = vunpack.c.l.b16 %v29
  %v104 = vunpack.c.l.b16 %v30
  %v105 = vunpack.c.l.b16 %v31
  %v106 = vunpack.c.l.b16 %v32
  %v107 = vunpack.c.l.b16 %v33
  %v108 = vunpack.c.l.b16 %v34
  %v109 = vunpack.c.l.b16 %v35
  %v110 = vunpack.c.l.b16 %v36
  %v111 = vunpack.c.l.b16 %v37
  %v112 = vunpack.c.l.b16 %v38
  %v113 = vunpack.c.l.b16 %v39
  %v114 = vunpack.c.l.b16 %v40
  %v115 = vunpack.c.l.b16 %v41
  %v116 = vunpack.c.l.b16 %v42
  %v117 = vunpack.c.l.b16 %v43
  %v118 = vunpack.c.l.b16 %v44
  %v119 = vunpack.c.l.b16 %v45
  %v120 = vunpack.c.l.b16 %v46
  %v121 = vunpack.c.l.b16 %v47
  %v122 = vunpack.c.l.b16 %v48
  %v123 = vunpack.c.l.b16 %v49
  %v124 = vunpack.c.l.b16 %v50
  %v125 = vunpack.c.l.b16 %v51
  %v126 = vunpack.c.l.b16 %v52
  %v127 = vunpack.c.l.b16 %v53
  %v128 = vunpack.c.l.b16 %v54
  %v129 = vunpack.c.l.b16 %v55
  %v130 = vunpack.c.l.b16 %v56
  %v131 = vunpack.c.l.b16 %v57
  %v132 = vunpack.c.l.b16 %v58
  %v133 = vunpack.c.l.b16 %v59
  %v134 = vpack.c.b16 %v103, %v102
  %v135 = vpack.c.b16 %v105, %v104
  %v136 = vpack.c.b16 %v107, %v106
  %v137 = vpack.c.b16 %v109, %v108
  %v138 = vpack.c.b16 %v111, %v110
  %v139 = vpack.c.b16 %v113, %v112
  %v140 = vpack.c.b16 %v115, %v114
  %v141 = vpack.c.b16 %v117, %v116
  %v142 = vpack.c.b16 %v119, %v118
  %v143 = vpack.c.b16 %v121, %v120
  %v144 = vpack.c.b16 %v123, %v122
  %v145 = vpack.c.b16 %v125, %v124
  %v146 = vpack.c.b16 %v127, %v126
  %v147 = vpack.c.b16 %v129, %v128
  %v148 = vpack.c.b16 %v131, %v130
  %v149 = vpack.c.b16 %v133, %v132
  %166 = vmatprep.subr.bf16.mxu0 0
  %167 = vmatpush1.bf16.msra.mxu0 %v134
  %168 = vmatprep.subr.bf16.mxu0 0
  %169 = vmatpush1.bf16.msra.mxu0 %v135
  %170 = vmatprep.subr.bf16.mxu0 0
  %171 = vmatpush1.bf16.msra.mxu0 %v136
  %172 = vmatprep.subr.bf16.mxu0 0
  %173 = vmatpush1.bf16.msra.mxu0 %v137
  %174 = vmatprep.subr.bf16.mxu0 0
  %175 = vmatpush1.bf16.msra.mxu0 %v138
  %176 = vmatprep.subr.bf16.mxu0 0
  %177 = vmatpush1.bf16.msra.mxu0 %v139
  %178 = vmatprep.subr.bf16.mxu0 0
  %179 = vmatpush1.bf16.msra.mxu0 %v140
  %180 = vmatprep.subr.bf16.mxu0 0
  %181 = vmatpush1.bf16.msra.mxu0 %v141
  %182 = vmatprep.subr.bf16.mxu0 0
  %183 = vmatpush1.bf16.msra.mxu0 %v142
  %184 = vmatprep.subr.bf16.mxu0 0
  %185 = vmatpush1.bf16.msra.mxu0 %v143
  %186 = vmatprep.subr.bf16.mxu0 0
  %187 = vmatpush1.bf16.msra.mxu0 %v144
  %188 = vmatprep.subr.bf16.mxu0 0
  %189 = vmatpush1.bf16.msra.mxu0 %v145
  %190 = vmatprep.subr.bf16.mxu0 0
  %191 = vmatpush1.bf16.msra.mxu0 %v146
  %192 = vmatprep.subr.bf16.mxu0 0
  %193 = vmatpush1.bf16.msra.mxu0 %v147
  %194 = vmatprep.subr.bf16.mxu0 0
  %195 = vmatpush1.bf16.msra.mxu0 %v148
  %196 = vmatprep.subr.bf16.mxu0 0
  %197 = vmatpush1.bf16.msra.mxu0 %v149
  %198 = vmatprep.mubr.bf16.mxu0 %v67
  %199 = vmatmul.mubr.bf16.gmra.mrb[0].mxu0 %v66
  %v200 = vpop.f32.mrb[0].mxu0
  %v201 = vadd.f32 0.0, %v200
  %v202 = vpop.f32.mrb[0].mxu0
  %v203 = vpop.f32.mrb[0].mxu0
  %v204 = vadd.f32 0.0, %v203
  %v205 = vpop.f32.mrb[0].mxu0
  %206 = vdwg.mxu0
  %v207 = vadd.f32 %v26, %v201
  %v208 = vadd.f32 %v27, %v204
  %209 = vst [vmem:[#allocation2] sm:$0xff] %v207
  %210 = vst [vmem:[#allocation2 + $0x8] sm:$0xff] %v208
  // Predicated region
  $region22: #{image2smiles_forward.20} parent=0 // pred_check
    %p211 = pneg %p18
  $region23: #{image2smiles_forward.20} parent=0 // pred_check_branch
    %213 = sbr.rel (%p211) target = $region25
  $region24: #{image2smiles_forward.20} parent=0 // pred_region
    %v214 = vld [vmem:[#allocation2] sm:$0xff]
    %v215 = vld [vmem:[#allocation2 + $0x8] sm:$0xff]
    %v216 = vld [vmem:[%s2] sm:$0x1]
    %v218 = vlaneseq
    %v219 = vshrl.u32 %v218, 7
    %v220 = vsub.s32 0, %v219
    %v221 = vrot.slane %v216, %v220
    %v223 = vadd.f32 %v214, %v221
    %v224 = vadd.f32 %v215, %v221
    %v225 = vld [vmem:[%s3] sm:$0xff]
    %v226 = vld [vmem:[%s3 + $0x8] sm:$0xff]
    %v227 = vadd.f32 %v223, %v225
    %v228 = vadd.f32 %v224, %v226
    %229 = vst [vmem:[%s4] sm:$0xff] %v227
    %230 = vst [vmem:[%s4 + $0x8] sm:$0xff] %v228
  $region25: #{image2smiles_forward.20} parent=0 // pred_fallthru
    _
  // Predicated region
  $region26: #{image2smiles_forward.20} parent=0 // pred_check
    _
  $region27: #{image2smiles_forward.20} parent=0 // pred_check_branch
    %232 = sbr.rel (0) target = $region29
  $region28: #{image2smiles_forward.20} parent=0 // pred_region
    _
  $region29: #{image2smiles_forward.20} parent=0 // pred_fallthru
    _
  // Predicated region
  $region30: #{image2smiles_forward.20} parent=0 // pred_check
    _
  $region31: #{image2smiles_forward.20} parent=0 // pred_check_branch
    %234 = sbr.rel (0) target = $region33
  $region32: #{image2smiles_forward.20} parent=0 // pred_region
    _
  $region33: #{image2smiles_forward.20} parent=0 // pred_fallthru
    _

</llo_original>
